<compile_context>
chip_gen: v6e
topology: v6e:2x2x1
jax: 0.10.0
libtpu: 0.0.40
codegen_flags: <defaults>
</compile_context>

<pallas_src>
import functools

import numpy as np
import jax
import jax.numpy as jnp
from jax.experimental import pallas as pl
from jax.experimental.pallas import tpu as pltpu


MATMUL_DTYPE = jnp.bfloat16   # MXU operand dtype (set to jnp.float32 for exact)

# (kd, kh) tap order -- must match the K-stacking order of w2 on the host.
_TAPS = tuple((kd, kh) for kd in range(3) for kh in range(3))


# -----------------------------------------------------------------------------
# Fused kernel: conv1+bn1+relu -> conv3x3x3+bn2+relu -> conv1x1x1+bn3
#               -> residual add -> relu.   One grid step per Bn-image block.
# -----------------------------------------------------------------------------
def _make_fused_kernel(Bn, D, H, stack_k):
    Hp = H + 2                       # padded height rows per depth slab
    P_rows = (D + 2) * Hp            # padded (depth, height) rows per image
    DH = D * H
    M = Bn * DH                      # compact rows per grid step

    def kernel(x_ref, w1_ref, b1_ref, w2_ref, b2_ref, w3_ref, b3_ref,
               o_ref, h1f_ref, h2k_ref):
        WC = x_ref.shape[1]

        # ---- conv1 (1x1x1) + bn1 + relu: one (M, WC) x (WC, WC) matmul ------
        # Runs on interior rows only, so bn1's shift is a plain bias.
        h1 = jnp.dot(x_ref[...].astype(MATMUL_DTYPE), w1_ref[...],
                     preferred_element_type=jnp.float32)
        h1 = jnp.maximum(h1 + b1_ref[...], 0.0)

        # ---- build the zero-halo padded h1 layout in VMEM -------------------
        # (memset every step: correct regardless of how grid steps are split
        # across TensorCores; interior rows are then overwritten below.)
        h1f_ref[...] = jnp.zeros(h1f_ref.shape, h1f_ref.dtype)
        for b in range(Bn):
            for d in range(D):
                h1f_ref[pl.ds(b * P_rows + (d + 1) * Hp + 1, H), :] = \
                    h1[b * DH + d * H: b * DH + d * H + H, :]

        # ---- stage the 9 (kd,kh) taps into the K-stacked bf16 buffer --------
        # kw taps + W zero-padding live inside the lane-structured weights;
        # (kd, kh) taps are value-slices of a per-(image, depth) 3*Hp-row slab
        # that is loaded and cast to bf16 once (no 9x re-load / re-cast).
        for b in range(Bn):
            for d in range(D):
                dst = b * DH + d * H                       # multiple of 8
                slab = h1f_ref[pl.ds(b * P_rows + d * Hp, 3 * Hp), :]
                slab = slab.astype(MATMUL_DTYPE)           # single cast / slab
                for t, (kd, kh) in enumerate(_TAPS):
                    src = kd * Hp + kh
                    h2k_ref[pl.ds(dst, H), pl.ds(t * WC, WC)] = \
                        slab[src: src + H, :]

        # ---- conv2 (3x3x3) + bn2 + relu --------------------------------------
        if stack_k:
            # One fat (M, 9*WC) x (9*WC, WC) matmul: fills the 256-wide MXU on
            # v6e/v7x and pays a single weight push/drain.
            h2 = jnp.dot(h2k_ref[...], w2_ref[...],
                         preferred_element_type=jnp.float32)
        else:
            # v5e-friendly K=128 shapes (its 128x128 MXU is already full).
            h2 = jnp.zeros((M, WC), jnp.float32)
            for t in range(9):
                h2 = h2 + jnp.dot(h2k_ref[:, pl.ds(t * WC, WC)],
                                  w2_ref[pl.ds(t * WC, WC), :],
                                  preferred_element_type=jnp.float32)
        h2 = jnp.maximum(h2 + b2_ref[...], 0.0)

        # ---- conv3 (1x1x1) + bn3 + residual + relu (all whole-block) --------
        h3 = jnp.dot(h2.astype(MATMUL_DTYPE), w3_ref[...],
                     preferred_element_type=jnp.float32)
        o_ref[...] = jnp.maximum(h3 + b3_ref[...] + x_ref[...],
                                 0.0).astype(o_ref.dtype)

    return kernel


# -----------------------------------------------------------------------------
# Host-side weight preparation
# -----------------------------------------------------------------------------
def fold_bn(gamma, beta, mean, var, eps=1e-5):
    scale = gamma / jnp.sqrt(var + eps)
    shift = beta - mean * scale
    return scale, shift


def _lane_block(w_cc, shift_w, W):
    """Embed a (C, C) channel matrix into a (W*C, W*C) lane matrix mapping
    input lane (w_in, cin) -> output lane (w_out, cout), w_in = w_out + shift_w.
    Out-of-range w_in (the W zero-padding of the conv) has no entries."""
    C = w_cc.shape[0]
    sel = jnp.eye(W, k=-shift_w, dtype=w_cc.dtype)          # sel[w_in, w_out]
    return jnp.einsum("uv,io->uivo", sel, w_cc).reshape(W * C, W * C)


def basic_block_forward(x_ncdhw, p, *, batch_block=None, stack_conv2_k=True):
    N, Cin, D, H, W = x_ncdhw.shape
    C = p["w1"].shape[1]
    assert Cin == C, "residual add requires in_channels == channels (downsample=None)"
    WC = W * C
    assert WC % 128 == 0, "W*C must be lane-dense (multiple of 128)"
    # TODO(synk): for W*C >> 128 tile W/C on the lane axis + rolling h1 window.

    # Batch blocking: Bn images per grid step, keep >= 2 grid steps when N >= 2.
    if batch_block is None:
        batch_block = N // 2 if (N >= 2 and N % 2 == 0) else 1
    Bn = batch_block
    assert N % Bn == 0
    G = N // Bn

    Hp = H + 2
    P_rows = (D + 2) * Hp
    DH = D * H
    M = Bn * DH
    assert M % 8 == 0

    # Fold BN scales into the conv weights (bias adds stay in-kernel).
    s1, b1 = fold_bn(p["bn1_g"], p["bn1_b"], p["bn1_m"], p["bn1_v"])
    s2, b2 = fold_bn(p["bn2_g"], p["bn2_b"], p["bn2_m"], p["bn2_v"])
    s3, b3 = fold_bn(p["bn3_g"], p["bn3_b"], p["bn3_m"], p["bn3_v"])
    w1f = p["w1"] * s1[None, :]
    w2f = p["w2"] * s2[None, None, None, None, :]
    w3f = p["w3"] * s3[None, :]

    # Lane-structured weight matrices (bf16 operands for the MXU).
    w1_big = _lane_block(w1f, 0, W).astype(MATMUL_DTYPE)                 # (WC, WC)
    w3_big = _lane_block(w3f, 0, W).astype(MATMUL_DTYPE)                 # (WC, WC)
    # conv2 weights stacked along K in the same order as _TAPS.
    w2_stack = jnp.concatenate(
        [sum(_lane_block(w2f[kd, kh, kw], kw - 1, W) for kw in range(3))
         for (kd, kh) in _TAPS], axis=0).astype(MATMUL_DTYPE)            # (9*WC, WC)

    b1_row = jnp.tile(b1, W)[None, :]                                    # (1, WC)
    b2_row = jnp.tile(b2, W)[None, :]                                    # (1, WC)
    b3_row = jnp.tile(b3, W)[None, :]                                    # (1, WC)

    # Channels-last, (W, C) merged on the lane axis, compact rows, batch blocked.
    x_cl = jnp.transpose(x_ncdhw, (0, 2, 3, 4, 1)).astype(jnp.float32)   # (N,D,H,W,C)
    x_rows = x_cl.reshape(G, M, WC)

    out_rows = pl.pallas_call(
        _make_fused_kernel(Bn, D, H, stack_conv2_k),
        out_shape=jax.ShapeDtypeStruct((G, M, WC), jnp.float32),
        grid_spec=pltpu.PrefetchScalarGridSpec(
            num_scalar_prefetch=0,
            grid=(G,),
            in_specs=[
                pl.BlockSpec((None, M, WC), lambda g: (g, 0, 0)),        # x (once)
                pl.BlockSpec((WC, WC), lambda g: (0, 0)),                # w1
                pl.BlockSpec((1, WC), lambda g: (0, 0)),                 # b1
                pl.BlockSpec((9 * WC, WC), lambda g: (0, 0)),            # w2 (K-stacked)
                pl.BlockSpec((1, WC), lambda g: (0, 0)),                 # b2
                pl.BlockSpec((WC, WC), lambda g: (0, 0)),                # w3
                pl.BlockSpec((1, WC), lambda g: (0, 0)),                 # b3
            ],
            out_specs=pl.BlockSpec((None, M, WC), lambda g: (g, 0, 0)),
            scratch_shapes=[
                pltpu.VMEM((Bn * P_rows, WC), jnp.float32),   # padded h1 (zero halo)
                pltpu.VMEM((M, 9 * WC), MATMUL_DTYPE),        # stacked conv2 taps
            ],
        ),
        compiler_params=pltpu.CompilerParams(
            dimension_semantics=("parallel",),
            vmem_limit_bytes=48 * 1024 * 1024,                # safe on v5e/v6e/v7x
        ),
    )(x_rows, w1_big, b1_row, w2_stack, b2_row, w3_big, b3_row)

    # Compact rows -> (N, D, H, W, C) is a pure reshape; one transpose back.
    out = out_rows.reshape(N, D, H, W, C)
    return jnp.transpose(out, (0, 4, 1, 2, 3))                           # NCDHW


# -----------------------------------------------------------------------------
# Pure-JAX f32 reference (same math, NCDHW in/out)
# -----------------------------------------------------------------------------
def reference_forward(x_ncdhw, p, eps=1e-5):
    def bn(y, g, b, m, v):
        return (y - m) / jnp.sqrt(v + eps) * g + b

    x = jnp.transpose(x_ncdhw, (0, 2, 3, 4, 1)).astype(jnp.float32)
    h = jnp.einsum("ndhwi,io->ndhwo", x, p["w1"])
    h = jax.nn.relu(bn(h, p["bn1_g"], p["bn1_b"], p["bn1_m"], p["bn1_v"]))
    N, D, H, W, C = h.shape
    hp = jnp.pad(h, ((0, 0), (1, 1), (1, 1), (1, 1), (0, 0)))
    acc = jnp.zeros_like(h)
    for kd in range(3):
        for kh in range(3):
            for kw in range(3):
                acc = acc + jnp.einsum(
                    "ndhwi,io->ndhwo",
                    hp[:, kd:kd + D, kh:kh + H, kw:kw + W, :],
                    p["w2"][kd, kh, kw])
    h = jax.nn.relu(bn(acc, p["bn2_g"], p["bn2_b"], p["bn2_m"], p["bn2_v"]))
    h = jnp.einsum("ndhwi,io->ndhwo", h, p["w3"])
    h = bn(h, p["bn3_g"], p["bn3_b"], p["bn3_m"], p["bn3_v"])
    out = jax.nn.relu(h + x)
    return jnp.transpose(out, (0, 4, 1, 2, 3))


# -----------------------------------------------------------------------------
if __name__ == "__main__":
    N, C, D, H, W = 4, 16, 4, 8, 8          # in_channels == channels; W*C = 128

    key = jax.random.PRNGKey(0)
    ks = jax.random.split(key, 16)

    def bn_params(k0, k1, k2, k3, c):
        return dict(
            g=jax.random.uniform(k0, (c,), jnp.float32, 0.5, 1.5),
            b=0.1 * jax.random.normal(k1, (c,), jnp.float32),
            m=0.1 * jax.random.normal(k2, (c,), jnp.float32),
            v=jax.random.uniform(k3, (c,), jnp.float32, 0.5, 1.5),
        )

    bn1 = bn_params(ks[3], ks[4], ks[5], ks[6], C)
    bn2 = bn_params(ks[7], ks[8], ks[9], ks[10], C)
    bn3 = bn_params(ks[11], ks[12], ks[13], ks[14], C)

    params = {
        # conv weights stored as (C_in, C_out) per spatial tap (matmul form)
        "w1": 0.1 * jax.random.normal(ks[0], (C, C), jnp.float32),
        "w2": 0.1 * jax.random.normal(ks[1], (3, 3, 3, C, C), jnp.float32),
        "w3": 0.1 * jax.random.normal(ks[2], (C, C), jnp.float32),
        "bn1_g": bn1["g"], "bn1_b": bn1["b"], "bn1_m": bn1["m"], "bn1_v": bn1["v"],
        "bn2_g": bn2["g"], "bn2_b": bn2["b"], "bn2_m": bn2["m"], "bn2_v": bn2["v"],
        "bn3_g": bn3["g"], "bn3_b": bn3["b"], "bn3_m": bn3["m"], "bn3_v": bn3["v"],
    }

    x = jax.random.normal(ks[15], (N, C, D, H, W), jnp.float32)   # NCDHW

    ref = reference_forward(x, params)

    # Default path: batch-blocked (Bn=2, 2 grid steps), K-stacked conv2 (v6e/v7x).
    out = jax.jit(basic_block_forward)(x, params)
    out = jax.block_until_ready(out)
    np.testing.assert_allclose(np.asarray(out), np.asarray(ref),
                               rtol=4e-2, atol=4e-2)

    # v5e-style path: nine K=128 conv2 matmuls (128x128 MXU already full).
    out5e = jax.jit(functools.partial(basic_block_forward,
                                      stack_conv2_k=False))(x, params)
    out5e = jax.block_until_ready(out5e)
    np.testing.assert_allclose(np.asarray(out5e), np.asarray(ref),
                               rtol=4e-2, atol=4e-2)

    print("KERNEL_OK")
</pallas_src>

<mosaic_0001>
module attributes {stable_mosaic.version = 11 : i64} {
  func.func @kernel(%arg0: i32, %arg1: memref<1x64x128xf32, #tpu.memory_space<vmem>>, %arg2: memref<128x128xbf16, #tpu.memory_space<vmem>>, %arg3: memref<1x128xf32, #tpu.memory_space<vmem>>, %arg4: memref<1152x128xbf16, #tpu.memory_space<vmem>>, %arg5: memref<1x128xf32, #tpu.memory_space<vmem>>, %arg6: memref<128x128xbf16, #tpu.memory_space<vmem>>, %arg7: memref<1x128xf32, #tpu.memory_space<vmem>>, %arg8: memref<1x64x128xf32, #tpu.memory_space<vmem>>, %arg9: memref<120x128xf32, #tpu.memory_space<vmem>>, %arg10: memref<64x1152xbf16, #tpu.memory_space<vmem>>) attributes {dimension_semantics = [#tpu.dimension_semantics<parallel>], iteration_bounds = array<i64: 2>, scalar_prefetch = 0 : i64, scratch_operands = 2 : i64, tpu.core_type = #tpu.core_type<tc>, window_params = [{transform_indices = @transform_0, window_bounds = array<i64: 1, 64, 128>}, {pipeline_mode = #tpu.pipeline_mode<synchronous>, transform_indices = @transform_1, window_bounds = array<i64: 128, 128>}, {pipeline_mode = #tpu.pipeline_mode<synchronous>, transform_indices = @transform_2, window_bounds = array<i64: 1, 128>}, {pipeline_mode = #tpu.pipeline_mode<synchronous>, transform_indices = @transform_3, window_bounds = array<i64: 1152, 128>}, {pipeline_mode = #tpu.pipeline_mode<synchronous>, transform_indices = @transform_4, window_bounds = array<i64: 1, 128>}, {pipeline_mode = #tpu.pipeline_mode<synchronous>, transform_indices = @transform_5, window_bounds = array<i64: 128, 128>}, {pipeline_mode = #tpu.pipeline_mode<synchronous>, transform_indices = @transform_6, window_bounds = array<i64: 1, 128>}, {transform_indices = @transform_7, window_bounds = array<i64: 1, 64, 128>}]} {
    %c0 = arith.constant 0 : index
    %c0_0 = arith.constant 0 : index
    %c0_1 = arith.constant 0 : index
    %0 = vector.load %arg1[%c0, %c0_0, %c0_1] : memref<1x64x128xf32, #tpu.memory_space<vmem>>, vector<1x64x128xf32>
    %1 = vector.shape_cast %0 : vector<1x64x128xf32> to vector<64x128xf32>
    %2 = arith.truncf %1 : vector<64x128xf32> to vector<64x128xbf16>
    %c0_2 = arith.constant 0 : index
    %c0_3 = arith.constant 0 : index
    %3 = vector.load %arg2[%c0_2, %c0_3] : memref<128x128xbf16, #tpu.memory_space<vmem>>, vector<128x128xbf16>
    %cst = arith.constant dense<0.000000e+00> : vector<64x128xf32>
    %4 = tpu.matmul %2, %3, %cst {dimension_numbers = #tpu.dot_dimension_numbers<[1], [0], [0], [1], [0, 0, 1, 1], [], []>} : vector<64x128xbf16>, vector<128x128xbf16>, vector<64x128xf32> -> vector<64x128xf32>
    %c0_4 = arith.constant 0 : index
    %c0_5 = arith.constant 0 : index
    %5 = vector.load %arg3[%c0_4, %c0_5] : memref<1x128xf32, #tpu.memory_space<vmem>>, vector<1x128xf32>
    %6 = vector.broadcast %5 : vector<1x128xf32> to vector<64x128xf32>
    %7 = arith.addf %4, %6 : vector<64x128xf32>
    %cst_6 = arith.constant 0.000000e+00 : f32
    %8 = vector.broadcast %cst_6 : f32 to vector<64x128xf32>
    %9 = arith.maximumf %7, %8 : vector<64x128xf32>
    %cst_7 = arith.constant 0.000000e+00 : f32
    %10 = vector.broadcast %cst_7 : f32 to vector<120x128xf32>
    %c0_8 = arith.constant 0 : index
    %c0_9 = arith.constant 0 : index
    %11 = vector.load %arg9[%c0_8, %c0_9] : memref<120x128xf32, #tpu.memory_space<vmem>>, vector<120x128xf32>
    tpu.vector_store %arg9[%c0_8, %c0_9], %10 {strides = array<i32>} : memref<120x128xf32, #tpu.memory_space<vmem>>, vector<120x128xf32>,
    %12 = vector.extract_strided_slice %9 {offsets = [0, 0], sizes = [8, 128], strides = [1, 1]} : vector<64x128xf32> to vector<8x128xf32>
    %c11 = arith.constant 11 : index
    %c0_10 = arith.constant 0 : index
    %13 = vector.load %arg9[%c11, %c0_10] : memref<120x128xf32, #tpu.memory_space<vmem>>, vector<8x128xf32>
    tpu.vector_store %arg9[%c11, %c0_10], %12 {strides = array<i32>} : memref<120x128xf32, #tpu.memory_space<vmem>>, vector<8x128xf32>,
    %14 = vector.extract_strided_slice %9 {offsets = [8, 0], sizes = [8, 128], strides = [1, 1]} : vector<64x128xf32> to vector<8x128xf32>
    %c21 = arith.constant 21 : index
    %c0_11 = arith.constant 0 : index
    %15 = vector.load %arg9[%c21, %c0_11] : memref<120x128xf32, #tpu.memory_space<vmem>>, vector<8x128xf32>
    tpu.vector_store %arg9[%c21, %c0_11], %14 {strides = array<i32>} : memref<120x128xf32, #tpu.memory_space<vmem>>, vector<8x128xf32>,
    %16 = vector.extract_strided_slice %9 {offsets = [16, 0], sizes = [8, 128], strides = [1, 1]} : vector<64x128xf32> to vector<8x128xf32>
    %c31 = arith.constant 31 : index
    %c0_12 = arith.constant 0 : index
    %17 = vector.load %arg9[%c31, %c0_12] : memref<120x128xf32, #tpu.memory_space<vmem>>, vector<8x128xf32>
    tpu.vector_store %arg9[%c31, %c0_12], %16 {strides = array<i32>} : memref<120x128xf32, #tpu.memory_space<vmem>>, vector<8x128xf32>,
    %18 = vector.extract_strided_slice %9 {offsets = [24, 0], sizes = [8, 128], strides = [1, 1]} : vector<64x128xf32> to vector<8x128xf32>
    %c41 = arith.constant 41 : index
    %c0_13 = arith.constant 0 : index
    %19 = vector.load %arg9[%c41, %c0_13] : memref<120x128xf32, #tpu.memory_space<vmem>>, vector<8x128xf32>
    tpu.vector_store %arg9[%c41, %c0_13], %18 {strides = array<i32>} : memref<120x128xf32, #tpu.memory_space<vmem>>, vector<8x128xf32>,
    %20 = vector.extract_strided_slice %9 {offsets = [32, 0], sizes = [8, 128], strides = [1, 1]} : vector<64x128xf32> to vector<8x128xf32>
    %c71 = arith.constant 71 : index
    %c0_14 = arith.constant 0 : index
    %21 = vector.load %arg9[%c71, %c0_14] : memref<120x128xf32, #tpu.memory_space<vmem>>, vector<8x128xf32>
    tpu.vector_store %arg9[%c71, %c0_14], %20 {strides = array<i32>} : memref<120x128xf32, #tpu.memory_space<vmem>>, vector<8x128xf32>,
    %22 = vector.extract_strided_slice %9 {offsets = [40, 0], sizes = [8, 128], strides = [1, 1]} : vector<64x128xf32> to vector<8x128xf32>
    %c81 = arith.constant 81 : index
    %c0_15 = arith.constant 0 : index
    %23 = vector.load %arg9[%c81, %c0_15] : memref<120x128xf32, #tpu.memory_space<vmem>>, vector<8x128xf32>
    tpu.vector_store %arg9[%c81, %c0_15], %22 {strides = array<i32>} : memref<120x128xf32, #tpu.memory_space<vmem>>, vector<8x128xf32>,
    %24 = vector.extract_strided_slice %9 {offsets = [48, 0], sizes = [8, 128], strides = [1, 1]} : vector<64x128xf32> to vector<8x128xf32>
    %c91 = arith.constant 91 : index
    %c0_16 = arith.constant 0 : index
    %25 = vector.load %arg9[%c91, %c0_16] : memref<120x128xf32, #tpu.memory_space<vmem>>, vector<8x128xf32>
    tpu.vector_store %arg9[%c91, %c0_16], %24 {strides = array<i32>} : memref<120x128xf32, #tpu.memory_space<vmem>>, vector<8x128xf32>,
    %26 = vector.extract_strided_slice %9 {offsets = [56, 0], sizes = [8, 128], strides = [1, 1]} : vector<64x128xf32> to vector<8x128xf32>
    %c101 = arith.constant 101 : index
    %c0_17 = arith.constant 0 : index
    %27 = vector.load %arg9[%c101, %c0_17] : memref<120x128xf32, #tpu.memory_space<vmem>>, vector<8x128xf32>
    tpu.vector_store %arg9[%c101, %c0_17], %26 {strides = array<i32>} : memref<120x128xf32, #tpu.memory_space<vmem>>, vector<8x128xf32>,
    %c0_18 = arith.constant 0 : index
    %c0_19 = arith.constant 0 : index
    %28 = vector.load %arg9[%c0_18, %c0_19] : memref<120x128xf32, #tpu.memory_space<vmem>>, vector<30x128xf32>
    %29 = arith.truncf %28 : vector<30x128xf32> to vector<30x128xbf16>
    %30 = vector.extract_strided_slice %29 {offsets = [0, 0], sizes = [8, 128], strides = [1, 1]} : vector<30x128xbf16> to vector<8x128xbf16>
    %c0_20 = arith.constant 0 : index
    %c0_21 = arith.constant 0 : index
    %31 = vector.load %arg10[%c0_20, %c0_21] : memref<64x1152xbf16, #tpu.memory_space<vmem>>, vector<8x128xbf16>
    tpu.vector_store %arg10[%c0_20, %c0_21], %30 {strides = array<i32>} : memref<64x1152xbf16, #tpu.memory_space<vmem>>, vector<8x128xbf16>,
    %32 = vector.extract_strided_slice %29 {offsets = [1, 0], sizes = [8, 128], strides = [1, 1]} : vector<30x128xbf16> to vector<8x128xbf16>
    %c0_22 = arith.constant 0 : index
    %c128 = arith.constant 128 : index
    %33 = vector.load %arg10[%c0_22, %c128] : memref<64x1152xbf16, #tpu.memory_space<vmem>>, vector<8x128xbf16>
    tpu.vector_store %arg10[%c0_22, %c128], %32 {strides = array<i32>} : memref<64x1152xbf16, #tpu.memory_space<vmem>>, vector<8x128xbf16>,
    %34 = vector.extract_strided_slice %29 {offsets = [2, 0], sizes = [8, 128], strides = [1, 1]} : vector<30x128xbf16> to vector<8x128xbf16>
    %c0_23 = arith.constant 0 : index
    %c256 = arith.constant 256 : index
    %35 = vector.load %arg10[%c0_23, %c256] : memref<64x1152xbf16, #tpu.memory_space<vmem>>, vector<8x128xbf16>
    tpu.vector_store %arg10[%c0_23, %c256], %34 {strides = array<i32>} : memref<64x1152xbf16, #tpu.memory_space<vmem>>, vector<8x128xbf16>,
    %36 = vector.extract_strided_slice %29 {offsets = [10, 0], sizes = [8, 128], strides = [1, 1]} : vector<30x128xbf16> to vector<8x128xbf16>
    %c0_24 = arith.constant 0 : index
    %c384 = arith.constant 384 : index
    %37 = vector.load %arg10[%c0_24, %c384] : memref<64x1152xbf16, #tpu.memory_space<vmem>>, vector<8x128xbf16>
    tpu.vector_store %arg10[%c0_24, %c384], %36 {strides = array<i32>} : memref<64x1152xbf16, #tpu.memory_space<vmem>>, vector<8x128xbf16>,
    %38 = vector.extract_strided_slice %29 {offsets = [11, 0], sizes = [8, 128], strides = [1, 1]} : vector<30x128xbf16> to vector<8x128xbf16>
    %c0_25 = arith.constant 0 : index
    %c512 = arith.constant 512 : index
    %39 = vector.load %arg10[%c0_25, %c512] : memref<64x1152xbf16, #tpu.memory_space<vmem>>, vector<8x128xbf16>
    tpu.vector_store %arg10[%c0_25, %c512], %38 {strides = array<i32>} : memref<64x1152xbf16, #tpu.memory_space<vmem>>, vector<8x128xbf16>,
    %40 = vector.extract_strided_slice %29 {offsets = [12, 0], sizes = [8, 128], strides = [1, 1]} : vector<30x128xbf16> to vector<8x128xbf16>
    %c0_26 = arith.constant 0 : index
    %c640 = arith.constant 640 : index
    %41 = vector.load %arg10[%c0_26, %c640] : memref<64x1152xbf16, #tpu.memory_space<vmem>>, vector<8x128xbf16>
    tpu.vector_store %arg10[%c0_26, %c640], %40 {strides = array<i32>} : memref<64x1152xbf16, #tpu.memory_space<vmem>>, vector<8x128xbf16>,
    %42 = vector.extract_strided_slice %29 {offsets = [20, 0], sizes = [8, 128], strides = [1, 1]} : vector<30x128xbf16> to vector<8x128xbf16>
    %c0_27 = arith.constant 0 : index
    %c768 = arith.constant 768 : index
    %43 = vector.load %arg10[%c0_27, %c768] : memref<64x1152xbf16, #tpu.memory_space<vmem>>, vector<8x128xbf16>
    tpu.vector_store %arg10[%c0_27, %c768], %42 {strides = array<i32>} : memref<64x1152xbf16, #tpu.memory_space<vmem>>, vector<8x128xbf16>,
    %44 = vector.extract_strided_slice %29 {offsets = [21, 0], sizes = [8, 128], strides = [1, 1]} : vector<30x128xbf16> to vector<8x128xbf16>
    %c0_28 = arith.constant 0 : index
    %c896 = arith.constant 896 : index
    %45 = vector.load %arg10[%c0_28, %c896] : memref<64x1152xbf16, #tpu.memory_space<vmem>>, vector<8x128xbf16>
    tpu.vector_store %arg10[%c0_28, %c896], %44 {strides = array<i32>} : memref<64x1152xbf16, #tpu.memory_space<vmem>>, vector<8x128xbf16>,
    %46 = vector.extract_strided_slice %29 {offsets = [22, 0], sizes = [8, 128], strides = [1, 1]} : vector<30x128xbf16> to vector<8x128xbf16>
    %c0_29 = arith.constant 0 : index
    %c1024 = arith.constant 1024 : index
    %47 = vector.load %arg10[%c0_29, %c1024] : memref<64x1152xbf16, #tpu.memory_space<vmem>>, vector<8x128xbf16>
    tpu.vector_store %arg10[%c0_29, %c1024], %46 {strides = array<i32>} : memref<64x1152xbf16, #tpu.memory_space<vmem>>, vector<8x128xbf16>,
    %c10 = arith.constant 10 : index
    %c0_30 = arith.constant 0 : index
    %48 = vector.load %arg9[%c10, %c0_30] : memref<120x128xf32, #tpu.memory_space<vmem>>, vector<30x128xf32>
    %49 = arith.truncf %48 : vector<30x128xf32> to vector<30x128xbf16>
    %50 = vector.extract_strided_slice %49 {offsets = [0, 0], sizes = [8, 128], strides = [1, 1]} : vector<30x128xbf16> to vector<8x128xbf16>
    %c8 = arith.constant 8 : index
    %c0_31 = arith.constant 0 : index
    %51 = vector.load %arg10[%c8, %c0_31] : memref<64x1152xbf16, #tpu.memory_space<vmem>>, vector<8x128xbf16>
    tpu.vector_store %arg10[%c8, %c0_31], %50 {strides = array<i32>} : memref<64x1152xbf16, #tpu.memory_space<vmem>>, vector<8x128xbf16>,
    %52 = vector.extract_strided_slice %49 {offsets = [1, 0], sizes = [8, 128], strides = [1, 1]} : vector<30x128xbf16> to vector<8x128xbf16>
    %c8_32 = arith.constant 8 : index
    %c128_33 = arith.constant 128 : index
    %53 = vector.load %arg10[%c8_32, %c128_33] : memref<64x1152xbf16, #tpu.memory_space<vmem>>, vector<8x128xbf16>
    tpu.vector_store %arg10[%c8_32, %c128_33], %52 {strides = array<i32>} : memref<64x1152xbf16, #tpu.memory_space<vmem>>, vector<8x128xbf16>,
    %54 = vector.extract_strided_slice %49 {offsets = [2, 0], sizes = [8, 128], strides = [1, 1]} : vector<30x128xbf16> to vector<8x128xbf16>
    %c8_34 = arith.constant 8 : index
    %c256_35 = arith.constant 256 : index
    %55 = vector.load %arg10[%c8_34, %c256_35] : memref<64x1152xbf16, #tpu.memory_space<vmem>>, vector<8x128xbf16>
    tpu.vector_store %arg10[%c8_34, %c256_35], %54 {strides = array<i32>} : memref<64x1152xbf16, #tpu.memory_space<vmem>>, vector<8x128xbf16>,
    %56 = vector.extract_strided_slice %49 {offsets = [10, 0], sizes = [8, 128], strides = [1, 1]} : vector<30x128xbf16> to vector<8x128xbf16>
    %c8_36 = arith.constant 8 : index
    %c384_37 = arith.constant 384 : index
    %57 = vector.load %arg10[%c8_36, %c384_37] : memref<64x1152xbf16, #tpu.memory_space<vmem>>, vector<8x128xbf16>
    tpu.vector_store %arg10[%c8_36, %c384_37], %56 {strides = array<i32>} : memref<64x1152xbf16, #tpu.memory_space<vmem>>, vector<8x128xbf16>,
    %58 = vector.extract_strided_slice %49 {offsets = [11, 0], sizes = [8, 128], strides = [1, 1]} : vector<30x128xbf16> to vector<8x128xbf16>
    %c8_38 = arith.constant 8 : index
    %c512_39 = arith.constant 512 : index
    %59 = vector.load %arg10[%c8_38, %c512_39] : memref<64x1152xbf16, #tpu.memory_space<vmem>>, vector<8x128xbf16>
    tpu.vector_store %arg10[%c8_38, %c512_39], %58 {strides = array<i32>} : memref<64x1152xbf16, #tpu.memory_space<vmem>>, vector<8x128xbf16>,
    %60 = vector.extract_strided_slice %49 {offsets = [12, 0], sizes = [8, 128], strides = [1, 1]} : vector<30x128xbf16> to vector<8x128xbf16>
    %c8_40 = arith.constant 8 : index
    %c640_41 = arith.constant 640 : index
    %61 = vector.load %arg10[%c8_40, %c640_41] : memref<64x1152xbf16, #tpu.memory_space<vmem>>, vector<8x128xbf16>
    tpu.vector_store %arg10[%c8_40, %c640_41], %60 {strides = array<i32>} : memref<64x1152xbf16, #tpu.memory_space<vmem>>, vector<8x128xbf16>,
    %62 = vector.extract_strided_slice %49 {offsets = [20, 0], sizes = [8, 128], strides = [1, 1]} : vector<30x128xbf16> to vector<8x128xbf16>
    %c8_42 = arith.constant 8 : index
    %c768_43 = arith.constant 768 : index
    %63 = vector.load %arg10[%c8_42, %c768_43] : memref<64x1152xbf16, #tpu.memory_space<vmem>>, vector<8x128xbf16>
    tpu.vector_store %arg10[%c8_42, %c768_43], %62 {strides = array<i32>} : memref<64x1152xbf16, #tpu.memory_space<vmem>>, vector<8x128xbf16>,
    %64 = vector.extract_strided_slice %49 {offsets = [21, 0], sizes = [8, 128], strides = [1, 1]} : vector<30x128xbf16> to vector<8x128xbf16>
    %c8_44 = arith.constant 8 : index
    %c896_45 = arith.constant 896 : index
    %65 = vector.load %arg10[%c8_44, %c896_45] : memref<64x1152xbf16, #tpu.memory_space<vmem>>, vector<8x128xbf16>
    tpu.vector_store %arg10[%c8_44, %c896_45], %64 {strides = array<i32>} : memref<64x1152xbf16, #tpu.memory_space<vmem>>, vector<8x128xbf16>,
    %66 = vector.extract_strided_slice %49 {offsets = [22, 0], sizes = [8, 128], strides = [1, 1]} : vector<30x128xbf16> to vector<8x128xbf16>
    %c8_46 = arith.constant 8 : index
    %c1024_47 = arith.constant 1024 : index
    %67 = vector.load %arg10[%c8_46, %c1024_47] : memref<64x1152xbf16, #tpu.memory_space<vmem>>, vector<8x128xbf16>
    tpu.vector_store %arg10[%c8_46, %c1024_47], %66 {strides = array<i32>} : memref<64x1152xbf16, #tpu.memory_space<vmem>>, vector<8x128xbf16>,
    %c20 = arith.constant 20 : index
    %c0_48 = arith.constant 0 : index
    %68 = vector.load %arg9[%c20, %c0_48] : memref<120x128xf32, #tpu.memory_space<vmem>>, vector<30x128xf32>
    %69 = arith.truncf %68 : vector<30x128xf32> to vector<30x128xbf16>
    %70 = vector.extract_strided_slice %69 {offsets = [0, 0], sizes = [8, 128], strides = [1, 1]} : vector<30x128xbf16> to vector<8x128xbf16>
    %c16 = arith.constant 16 : index
    %c0_49 = arith.constant 0 : index
    %71 = vector.load %arg10[%c16, %c0_49] : memref<64x1152xbf16, #tpu.memory_space<vmem>>, vector<8x128xbf16>
    tpu.vector_store %arg10[%c16, %c0_49], %70 {strides = array<i32>} : memref<64x1152xbf16, #tpu.memory_space<vmem>>, vector<8x128xbf16>,
    %72 = vector.extract_strided_slice %69 {offsets = [1, 0], sizes = [8, 128], strides = [1, 1]} : vector<30x128xbf16> to vector<8x128xbf16>
    %c16_50 = arith.constant 16 : index
    %c128_51 = arith.constant 128 : index
    %73 = vector.load %arg10[%c16_50, %c128_51] : memref<64x1152xbf16, #tpu.memory_space<vmem>>, vector<8x128xbf16>
    tpu.vector_store %arg10[%c16_50, %c128_51], %72 {strides = array<i32>} : memref<64x1152xbf16, #tpu.memory_space<vmem>>, vector<8x128xbf16>,
    %74 = vector.extract_strided_slice %69 {offsets = [2, 0], sizes = [8, 128], strides = [1, 1]} : vector<30x128xbf16> to vector<8x128xbf16>
    %c16_52 = arith.constant 16 : index
    %c256_53 = arith.constant 256 : index
    %75 = vector.load %arg10[%c16_52, %c256_53] : memref<64x1152xbf16, #tpu.memory_space<vmem>>, vector<8x128xbf16>
    tpu.vector_store %arg10[%c16_52, %c256_53], %74 {strides = array<i32>} : memref<64x1152xbf16, #tpu.memory_space<vmem>>, vector<8x128xbf16>,
    %76 = vector.extract_strided_slice %69 {offsets = [10, 0], sizes = [8, 128], strides = [1, 1]} : vector<30x128xbf16> to vector<8x128xbf16>
    %c16_54 = arith.constant 16 : index
    %c384_55 = arith.constant 384 : index
    %77 = vector.load %arg10[%c16_54, %c384_55] : memref<64x1152xbf16, #tpu.memory_space<vmem>>, vector<8x128xbf16>
    tpu.vector_store %arg10[%c16_54, %c384_55], %76 {strides = array<i32>} : memref<64x1152xbf16, #tpu.memory_space<vmem>>, vector<8x128xbf16>,
    %78 = vector.extract_strided_slice %69 {offsets = [11, 0], sizes = [8, 128], strides = [1, 1]} : vector<30x128xbf16> to vector<8x128xbf16>
    %c16_56 = arith.constant 16 : index
    %c512_57 = arith.constant 512 : index
    %79 = vector.load %arg10[%c16_56, %c512_57] : memref<64x1152xbf16, #tpu.memory_space<vmem>>, vector<8x128xbf16>
    tpu.vector_store %arg10[%c16_56, %c512_57], %78 {strides = array<i32>} : memref<64x1152xbf16, #tpu.memory_space<vmem>>, vector<8x128xbf16>,
    %80 = vector.extract_strided_slice %69 {offsets = [12, 0], sizes = [8, 128], strides = [1, 1]} : vector<30x128xbf16> to vector<8x128xbf16>
    %c16_58 = arith.constant 16 : index
    %c640_59 = arith.constant 640 : index
    %81 = vector.load %arg10[%c16_58, %c640_59] : memref<64x1152xbf16, #tpu.memory_space<vmem>>, vector<8x128xbf16>
    tpu.vector_store %arg10[%c16_58, %c640_59], %80 {strides = array<i32>} : memref<64x1152xbf16, #tpu.memory_space<vmem>>, vector<8x128xbf16>,
    %82 = vector.extract_strided_slice %69 {offsets = [20, 0], sizes = [8, 128], strides = [1, 1]} : vector<30x128xbf16> to vector<8x128xbf16>
    %c16_60 = arith.constant 16 : index
    %c768_61 = arith.constant 768 : index
    %83 = vector.load %arg10[%c16_60, %c768_61] : memref<64x1152xbf16, #tpu.memory_space<vmem>>, vector<8x128xbf16>
    tpu.vector_store %arg10[%c16_60, %c768_61], %82 {strides = array<i32>} : memref<64x1152xbf16, #tpu.memory_space<vmem>>, vector<8x128xbf16>,
    %84 = vector.extract_strided_slice %69 {offsets = [21, 0], sizes = [8, 128], strides = [1, 1]} : vector<30x128xbf16> to vector<8x128xbf16>
    %c16_62 = arith.constant 16 : index
    %c896_63 = arith.constant 896 : index
    %85 = vector.load %arg10[%c16_62, %c896_63] : memref<64x1152xbf16, #tpu.memory_space<vmem>>, vector<8x128xbf16>
    tpu.vector_store %arg10[%c16_62, %c896_63], %84 {strides = array<i32>} : memref<64x1152xbf16, #tpu.memory_space<vmem>>, vector<8x128xbf16>,
    %86 = vector.extract_strided_slice %69 {offsets = [22, 0], sizes = [8, 128], strides = [1, 1]} : vector<30x128xbf16> to vector<8x128xbf16>
    %c16_64 = arith.constant 16 : index
    %c1024_65 = arith.constant 1024 : index
    %87 = vector.load %arg10[%c16_64, %c1024_65] : memref<64x1152xbf16, #tpu.memory_space<vmem>>, vector<8x128xbf16>
    tpu.vector_store %arg10[%c16_64, %c1024_65], %86 {strides = array<i32>} : memref<64x1152xbf16, #tpu.memory_space<vmem>>, vector<8x128xbf16>,
    %c30 = arith.constant 30 : index
    %c0_66 = arith.constant 0 : index
    %88 = vector.load %arg9[%c30, %c0_66] : memref<120x128xf32, #tpu.memory_space<vmem>>, vector<30x128xf32>
    %89 = arith.truncf %88 : vector<30x128xf32> to vector<30x128xbf16>
    %90 = vector.extract_strided_slice %89 {offsets = [0, 0], sizes = [8, 128], strides = [1, 1]} : vector<30x128xbf16> to vector<8x128xbf16>
    %c24 = arith.constant 24 : index
    %c0_67 = arith.constant 0 : index
    %91 = vector.load %arg10[%c24, %c0_67] : memref<64x1152xbf16, #tpu.memory_space<vmem>>, vector<8x128xbf16>
    tpu.vector_store %arg10[%c24, %c0_67], %90 {strides = array<i32>} : memref<64x1152xbf16, #tpu.memory_space<vmem>>, vector<8x128xbf16>,
    %92 = vector.extract_strided_slice %89 {offsets = [1, 0], sizes = [8, 128], strides = [1, 1]} : vector<30x128xbf16> to vector<8x128xbf16>
    %c24_68 = arith.constant 24 : index
    %c128_69 = arith.constant 128 : index
    %93 = vector.load %arg10[%c24_68, %c128_69] : memref<64x1152xbf16, #tpu.memory_space<vmem>>, vector<8x128xbf16>
    tpu.vector_store %arg10[%c24_68, %c128_69], %92 {strides = array<i32>} : memref<64x1152xbf16, #tpu.memory_space<vmem>>, vector<8x128xbf16>,
    %94 = vector.extract_strided_slice %89 {offsets = [2, 0], sizes = [8, 128], strides = [1, 1]} : vector<30x128xbf16> to vector<8x128xbf16>
    %c24_70 = arith.constant 24 : index
    %c256_71 = arith.constant 256 : index
    %95 = vector.load %arg10[%c24_70, %c256_71] : memref<64x1152xbf16, #tpu.memory_space<vmem>>, vector<8x128xbf16>
    tpu.vector_store %arg10[%c24_70, %c256_71], %94 {strides = array<i32>} : memref<64x1152xbf16, #tpu.memory_space<vmem>>, vector<8x128xbf16>,
    %96 = vector.extract_strided_slice %89 {offsets = [10, 0], sizes = [8, 128], strides = [1, 1]} : vector<30x128xbf16> to vector<8x128xbf16>
    %c24_72 = arith.constant 24 : index
    %c384_73 = arith.constant 384 : index
    %97 = vector.load %arg10[%c24_72, %c384_73] : memref<64x1152xbf16, #tpu.memory_space<vmem>>, vector<8x128xbf16>
    tpu.vector_store %arg10[%c24_72, %c384_73], %96 {strides = array<i32>} : memref<64x1152xbf16, #tpu.memory_space<vmem>>, vector<8x128xbf16>,
    %98 = vector.extract_strided_slice %89 {offsets = [11, 0], sizes = [8, 128], strides = [1, 1]} : vector<30x128xbf16> to vector<8x128xbf16>
    %c24_74 = arith.constant 24 : index
    %c512_75 = arith.constant 512 : index
    %99 = vector.load %arg10[%c24_74, %c512_75] : memref<64x1152xbf16, #tpu.memory_space<vmem>>, vector<8x128xbf16>
    tpu.vector_store %arg10[%c24_74, %c512_75], %98 {strides = array<i32>} : memref<64x1152xbf16, #tpu.memory_space<vmem>>, vector<8x128xbf16>,
    %100 = vector.extract_strided_slice %89 {offsets = [12, 0], sizes = [8, 128], strides = [1, 1]} : vector<30x128xbf16> to vector<8x128xbf16>
    %c24_76 = arith.constant 24 : index
    %c640_77 = arith.constant 640 : index
    %101 = vector.load %arg10[%c24_76, %c640_77] : memref<64x1152xbf16, #tpu.memory_space<vmem>>, vector<8x128xbf16>
    tpu.vector_store %arg10[%c24_76, %c640_77], %100 {strides = array<i32>} : memref<64x1152xbf16, #tpu.memory_space<vmem>>, vector<8x128xbf16>,
    %102 = vector.extract_strided_slice %89 {offsets = [20, 0], sizes = [8, 128], strides = [1, 1]} : vector<30x128xbf16> to vector<8x128xbf16>
    %c24_78 = arith.constant 24 : index
    %c768_79 = arith.constant 768 : index
    %103 = vector.load %arg10[%c24_78, %c768_79] : memref<64x1152xbf16, #tpu.memory_space<vmem>>, vector<8x128xbf16>
    tpu.vector_store %arg10[%c24_78, %c768_79], %102 {strides = array<i32>} : memref<64x1152xbf16, #tpu.memory_space<vmem>>, vector<8x128xbf16>,
    %104 = vector.extract_strided_slice %89 {offsets = [21, 0], sizes = [8, 128], strides = [1, 1]} : vector<30x128xbf16> to vector<8x128xbf16>
    %c24_80 = arith.constant 24 : index
    %c896_81 = arith.constant 896 : index
    %105 = vector.load %arg10[%c24_80, %c896_81] : memref<64x1152xbf16, #tpu.memory_space<vmem>>, vector<8x128xbf16>
    tpu.vector_store %arg10[%c24_80, %c896_81], %104 {strides = array<i32>} : memref<64x1152xbf16, #tpu.memory_space<vmem>>, vector<8x128xbf16>,
    %106 = vector.extract_strided_slice %89 {offsets = [22, 0], sizes = [8, 128], strides = [1, 1]} : vector<30x128xbf16> to vector<8x128xbf16>
    %c24_82 = arith.constant 24 : index
    %c1024_83 = arith.constant 1024 : index
    %107 = vector.load %arg10[%c24_82, %c1024_83] : memref<64x1152xbf16, #tpu.memory_space<vmem>>, vector<8x128xbf16>
    tpu.vector_store %arg10[%c24_82, %c1024_83], %106 {strides = array<i32>} : memref<64x1152xbf16, #tpu.memory_space<vmem>>, vector<8x128xbf16>,
    %c60 = arith.constant 60 : index
    %c0_84 = arith.constant 0 : index
    %108 = vector.load %arg9[%c60, %c0_84] : memref<120x128xf32, #tpu.memory_space<vmem>>, vector<30x128xf32>
    %109 = arith.truncf %108 : vector<30x128xf32> to vector<30x128xbf16>
    %110 = vector.extract_strided_slice %109 {offsets = [0, 0], sizes = [8, 128], strides = [1, 1]} : vector<30x128xbf16> to vector<8x128xbf16>
    %c32 = arith.constant 32 : index
    %c0_85 = arith.constant 0 : index
    %111 = vector.load %arg10[%c32, %c0_85] : memref<64x1152xbf16, #tpu.memory_space<vmem>>, vector<8x128xbf16>
    tpu.vector_store %arg10[%c32, %c0_85], %110 {strides = array<i32>} : memref<64x1152xbf16, #tpu.memory_space<vmem>>, vector<8x128xbf16>,
    %112 = vector.extract_strided_slice %109 {offsets = [1, 0], sizes = [8, 128], strides = [1, 1]} : vector<30x128xbf16> to vector<8x128xbf16>
    %c32_86 = arith.constant 32 : index
    %c128_87 = arith.constant 128 : index
    %113 = vector.load %arg10[%c32_86, %c128_87] : memref<64x1152xbf16, #tpu.memory_space<vmem>>, vector<8x128xbf16>
    tpu.vector_store %arg10[%c32_86, %c128_87], %112 {strides = array<i32>} : memref<64x1152xbf16, #tpu.memory_space<vmem>>, vector<8x128xbf16>,
    %114 = vector.extract_strided_slice %109 {offsets = [2, 0], sizes = [8, 128], strides = [1, 1]} : vector<30x128xbf16> to vector<8x128xbf16>
    %c32_88 = arith.constant 32 : index
    %c256_89 = arith.constant 256 : index
    %115 = vector.load %arg10[%c32_88, %c256_89] : memref<64x1152xbf16, #tpu.memory_space<vmem>>, vector<8x128xbf16>
    tpu.vector_store %arg10[%c32_88, %c256_89], %114 {strides = array<i32>} : memref<64x1152xbf16, #tpu.memory_space<vmem>>, vector<8x128xbf16>,
    %116 = vector.extract_strided_slice %109 {offsets = [10, 0], sizes = [8, 128], strides = [1, 1]} : vector<30x128xbf16> to vector<8x128xbf16>
    %c32_90 = arith.constant 32 : index
    %c384_91 = arith.constant 384 : index
    %117 = vector.load %arg10[%c32_90, %c384_91] : memref<64x1152xbf16, #tpu.memory_space<vmem>>, vector<8x128xbf16>
    tpu.vector_store %arg10[%c32_90, %c384_91], %116 {strides = array<i32>} : memref<64x1152xbf16, #tpu.memory_space<vmem>>, vector<8x128xbf16>,
    %118 = vector.extract_strided_slice %109 {offsets = [11, 0], sizes = [8, 128], strides = [1, 1]} : vector<30x128xbf16> to vector<8x128xbf16>
    %c32_92 = arith.constant 32 : index
    %c512_93 = arith.constant 512 : index
    %119 = vector.load %arg10[%c32_92, %c512_93] : memref<64x1152xbf16, #tpu.memory_space<vmem>>, vector<8x128xbf16>
    tpu.vector_store %arg10[%c32_92, %c512_93], %118 {strides = array<i32>} : memref<64x1152xbf16, #tpu.memory_space<vmem>>, vector<8x128xbf16>,
    %120 = vector.extract_strided_slice %109 {offsets = [12, 0], sizes = [8, 128], strides = [1, 1]} : vector<30x128xbf16> to vector<8x128xbf16>
    %c32_94 = arith.constant 32 : index
    %c640_95 = arith.constant 640 : index
    %121 = vector.load %arg10[%c32_94, %c640_95] : memref<64x1152xbf16, #tpu.memory_space<vmem>>, vector<8x128xbf16>
    tpu.vector_store %arg10[%c32_94, %c640_95], %120 {strides = array<i32>} : memref<64x1152xbf16, #tpu.memory_space<vmem>>, vector<8x128xbf16>,
    %122 = vector.extract_strided_slice %109 {offsets = [20, 0], sizes = [8, 128], strides = [1, 1]} : vector<30x128xbf16> to vector<8x128xbf16>
    %c32_96 = arith.constant 32 : index
    %c768_97 = arith.constant 768 : index
    %123 = vector.load %arg10[%c32_96, %c768_97] : memref<64x1152xbf16, #tpu.memory_space<vmem>>, vector<8x128xbf16>
    tpu.vector_store %arg10[%c32_96, %c768_97], %122 {strides = array<i32>} : memref<64x1152xbf16, #tpu.memory_space<vmem>>, vector<8x128xbf16>,
    %124 = vector.extract_strided_slice %109 {offsets = [21, 0], sizes = [8, 128], strides = [1, 1]} : vector<30x128xbf16> to vector<8x128xbf16>
    %c32_98 = arith.constant 32 : index
    %c896_99 = arith.constant 896 : index
    %125 = vector.load %arg10[%c32_98, %c896_99] : memref<64x1152xbf16, #tpu.memory_space<vmem>>, vector<8x128xbf16>
    tpu.vector_store %arg10[%c32_98, %c896_99], %124 {strides = array<i32>} : memref<64x1152xbf16, #tpu.memory_space<vmem>>, vector<8x128xbf16>,
    %126 = vector.extract_strided_slice %109 {offsets = [22, 0], sizes = [8, 128], strides = [1, 1]} : vector<30x128xbf16> to vector<8x128xbf16>
    %c32_100 = arith.constant 32 : index
    %c1024_101 = arith.constant 1024 : index
    %127 = vector.load %arg10[%c32_100, %c1024_101] : memref<64x1152xbf16, #tpu.memory_space<vmem>>, vector<8x128xbf16>
    tpu.vector_store %arg10[%c32_100, %c1024_101], %126 {strides = array<i32>} : memref<64x1152xbf16, #tpu.memory_space<vmem>>, vector<8x128xbf16>,
    %c70 = arith.constant 70 : index
    %c0_102 = arith.constant 0 : index
    %128 = vector.load %arg9[%c70, %c0_102] : memref<120x128xf32, #tpu.memory_space<vmem>>, vector<30x128xf32>
    %129 = arith.truncf %128 : vector<30x128xf32> to vector<30x128xbf16>
    %130 = vector.extract_strided_slice %129 {offsets = [0, 0], sizes = [8, 128], strides = [1, 1]} : vector<30x128xbf16> to vector<8x128xbf16>
    %c40 = arith.constant 40 : index
    %c0_103 = arith.constant 0 : index
    %131 = vector.load %arg10[%c40, %c0_103] : memref<64x1152xbf16, #tpu.memory_space<vmem>>, vector<8x128xbf16>
    tpu.vector_store %arg10[%c40, %c0_103], %130 {strides = array<i32>} : memref<64x1152xbf16, #tpu.memory_space<vmem>>, vector<8x128xbf16>,
    %132 = vector.extract_strided_slice %129 {offsets = [1, 0], sizes = [8, 128], strides = [1, 1]} : vector<30x128xbf16> to vector<8x128xbf16>
    %c40_104 = arith.constant 40 : index
    %c128_105 = arith.constant 128 : index
    %133 = vector.load %arg10[%c40_104, %c128_105] : memref<64x1152xbf16, #tpu.memory_space<vmem>>, vector<8x128xbf16>
    tpu.vector_store %arg10[%c40_104, %c128_105], %132 {strides = array<i32>} : memref<64x1152xbf16, #tpu.memory_space<vmem>>, vector<8x128xbf16>,
    %134 = vector.extract_strided_slice %129 {offsets = [2, 0], sizes = [8, 128], strides = [1, 1]} : vector<30x128xbf16> to vector<8x128xbf16>
    %c40_106 = arith.constant 40 : index
    %c256_107 = arith.constant 256 : index
    %135 = vector.load %arg10[%c40_106, %c256_107] : memref<64x1152xbf16, #tpu.memory_space<vmem>>, vector<8x128xbf16>
    tpu.vector_store %arg10[%c40_106, %c256_107], %134 {strides = array<i32>} : memref<64x1152xbf16, #tpu.memory_space<vmem>>, vector<8x128xbf16>,
    %136 = vector.extract_strided_slice %129 {offsets = [10, 0], sizes = [8, 128], strides = [1, 1]} : vector<30x128xbf16> to vector<8x128xbf16>
    %c40_108 = arith.constant 40 : index
    %c384_109 = arith.constant 384 : index
    %137 = vector.load %arg10[%c40_108, %c384_109] : memref<64x1152xbf16, #tpu.memory_space<vmem>>, vector<8x128xbf16>
    tpu.vector_store %arg10[%c40_108, %c384_109], %136 {strides = array<i32>} : memref<64x1152xbf16, #tpu.memory_space<vmem>>, vector<8x128xbf16>,
    %138 = vector.extract_strided_slice %129 {offsets = [11, 0], sizes = [8, 128], strides = [1, 1]} : vector<30x128xbf16> to vector<8x128xbf16>
    %c40_110 = arith.constant 40 : index
    %c512_111 = arith.constant 512 : index
    %139 = vector.load %arg10[%c40_110, %c512_111] : memref<64x1152xbf16, #tpu.memory_space<vmem>>, vector<8x128xbf16>
    tpu.vector_store %arg10[%c40_110, %c512_111], %138 {strides = array<i32>} : memref<64x1152xbf16, #tpu.memory_space<vmem>>, vector<8x128xbf16>,
    %140 = vector.extract_strided_slice %129 {offsets = [12, 0], sizes = [8, 128], strides = [1, 1]} : vector<30x128xbf16> to vector<8x128xbf16>
    %c40_112 = arith.constant 40 : index
    %c640_113 = arith.constant 640 : index
    %141 = vector.load %arg10[%c40_112, %c640_113] : memref<64x1152xbf16, #tpu.memory_space<vmem>>, vector<8x128xbf16>
    tpu.vector_store %arg10[%c40_112, %c640_113], %140 {strides = array<i32>} : memref<64x1152xbf16, #tpu.memory_space<vmem>>, vector<8x128xbf16>,
    %142 = vector.extract_strided_slice %129 {offsets = [20, 0], sizes = [8, 128], strides = [1, 1]} : vector<30x128xbf16> to vector<8x128xbf16>
    %c40_114 = arith.constant 40 : index
    %c768_115 = arith.constant 768 : index
    %143 = vector.load %arg10[%c40_114, %c768_115] : memref<64x1152xbf16, #tpu.memory_space<vmem>>, vector<8x128xbf16>
    tpu.vector_store %arg10[%c40_114, %c768_115], %142 {strides = array<i32>} : memref<64x1152xbf16, #tpu.memory_space<vmem>>, vector<8x128xbf16>,
    %144 = vector.extract_strided_slice %129 {offsets = [21, 0], sizes = [8, 128], strides = [1, 1]} : vector<30x128xbf16> to vector<8x128xbf16>
    %c40_116 = arith.constant 40 : index
    %c896_117 = arith.constant 896 : index
    %145 = vector.load %arg10[%c40_116, %c896_117] : memref<64x1152xbf16, #tpu.memory_space<vmem>>, vector<8x128xbf16>
    tpu.vector_store %arg10[%c40_116, %c896_117], %144 {strides = array<i32>} : memref<64x1152xbf16, #tpu.memory_space<vmem>>, vector<8x128xbf16>,
    %146 = vector.extract_strided_slice %129 {offsets = [22, 0], sizes = [8, 128], strides = [1, 1]} : vector<30x128xbf16> to vector<8x128xbf16>
    %c40_118 = arith.constant 40 : index
    %c1024_119 = arith.constant 1024 : index
    %147 = vector.load %arg10[%c40_118, %c1024_119] : memref<64x1152xbf16, #tpu.memory_space<vmem>>, vector<8x128xbf16>
    tpu.vector_store %arg10[%c40_118, %c1024_119], %146 {strides = array<i32>} : memref<64x1152xbf16, #tpu.memory_space<vmem>>, vector<8x128xbf16>,
    %c80 = arith.constant 80 : index
    %c0_120 = arith.constant 0 : index
    %148 = vector.load %arg9[%c80, %c0_120] : memref<120x128xf32, #tpu.memory_space<vmem>>, vector<30x128xf32>
    %149 = arith.truncf %148 : vector<30x128xf32> to vector<30x128xbf16>
    %150 = vector.extract_strided_slice %149 {offsets = [0, 0], sizes = [8, 128], strides = [1, 1]} : vector<30x128xbf16> to vector<8x128xbf16>
    %c48 = arith.constant 48 : index
    %c0_121 = arith.constant 0 : index
    %151 = vector.load %arg10[%c48, %c0_121] : memref<64x1152xbf16, #tpu.memory_space<vmem>>, vector<8x128xbf16>
    tpu.vector_store %arg10[%c48, %c0_121], %150 {strides = array<i32>} : memref<64x1152xbf16, #tpu.memory_space<vmem>>, vector<8x128xbf16>,
    %152 = vector.extract_strided_slice %149 {offsets = [1, 0], sizes = [8, 128], strides = [1, 1]} : vector<30x128xbf16> to vector<8x128xbf16>
    %c48_122 = arith.constant 48 : index
    %c128_123 = arith.constant 128 : index
    %153 = vector.load %arg10[%c48_122, %c128_123] : memref<64x1152xbf16, #tpu.memory_space<vmem>>, vector<8x128xbf16>
    tpu.vector_store %arg10[%c48_122, %c128_123], %152 {strides = array<i32>} : memref<64x1152xbf16, #tpu.memory_space<vmem>>, vector<8x128xbf16>,
    %154 = vector.extract_strided_slice %149 {offsets = [2, 0], sizes = [8, 128], strides = [1, 1]} : vector<30x128xbf16> to vector<8x128xbf16>
    %c48_124 = arith.constant 48 : index
    %c256_125 = arith.constant 256 : index
    %155 = vector.load %arg10[%c48_124, %c256_125] : memref<64x1152xbf16, #tpu.memory_space<vmem>>, vector<8x128xbf16>
    tpu.vector_store %arg10[%c48_124, %c256_125], %154 {strides = array<i32>} : memref<64x1152xbf16, #tpu.memory_space<vmem>>, vector<8x128xbf16>,
    %156 = vector.extract_strided_slice %149 {offsets = [10, 0], sizes = [8, 128], strides = [1, 1]} : vector<30x128xbf16> to vector<8x128xbf16>
    %c48_126 = arith.constant 48 : index
    %c384_127 = arith.constant 384 : index
    %157 = vector.load %arg10[%c48_126, %c384_127] : memref<64x1152xbf16, #tpu.memory_space<vmem>>, vector<8x128xbf16>
    tpu.vector_store %arg10[%c48_126, %c384_127], %156 {strides = array<i32>} : memref<64x1152xbf16, #tpu.memory_space<vmem>>, vector<8x128xbf16>,
    %158 = vector.extract_strided_slice %149 {offsets = [11, 0], sizes = [8, 128], strides = [1, 1]} : vector<30x128xbf16> to vector<8x128xbf16>
    %c48_128 = arith.constant 48 : index
    %c512_129 = arith.constant 512 : index
    %159 = vector.load %arg10[%c48_128, %c512_129] : memref<64x1152xbf16, #tpu.memory_space<vmem>>, vector<8x128xbf16>
    tpu.vector_store %arg10[%c48_128, %c512_129], %158 {strides = array<i32>} : memref<64x1152xbf16, #tpu.memory_space<vmem>>, vector<8x128xbf16>,
    %160 = vector.extract_strided_slice %149 {offsets = [12, 0], sizes = [8, 128], strides = [1, 1]} : vector<30x128xbf16> to vector<8x128xbf16>
    %c48_130 = arith.constant 48 : index
    %c640_131 = arith.constant 640 : index
    %161 = vector.load %arg10[%c48_130, %c640_131] : memref<64x1152xbf16, #tpu.memory_space<vmem>>, vector<8x128xbf16>
    tpu.vector_store %arg10[%c48_130, %c640_131], %160 {strides = array<i32>} : memref<64x1152xbf16, #tpu.memory_space<vmem>>, vector<8x128xbf16>,
    %162 = vector.extract_strided_slice %149 {offsets = [20, 0], sizes = [8, 128], strides = [1, 1]} : vector<30x128xbf16> to vector<8x128xbf16>
    %c48_132 = arith.constant 48 : index
    %c768_133 = arith.constant 768 : index
    %163 = vector.load %arg10[%c48_132, %c768_133] : memref<64x1152xbf16, #tpu.memory_space<vmem>>, vector<8x128xbf16>
    tpu.vector_store %arg10[%c48_132, %c768_133], %162 {strides = array<i32>} : memref<64x1152xbf16, #tpu.memory_space<vmem>>, vector<8x128xbf16>,
    %164 = vector.extract_strided_slice %149 {offsets = [21, 0], sizes = [8, 128], strides = [1, 1]} : vector<30x128xbf16> to vector<8x128xbf16>
    %c48_134 = arith.constant 48 : index
    %c896_135 = arith.constant 896 : index
    %165 = vector.load %arg10[%c48_134, %c896_135] : memref<64x1152xbf16, #tpu.memory_space<vmem>>, vector<8x128xbf16>
    tpu.vector_store %arg10[%c48_134, %c896_135], %164 {strides = array<i32>} : memref<64x1152xbf16, #tpu.memory_space<vmem>>, vector<8x128xbf16>,
    %166 = vector.extract_strided_slice %149 {offsets = [22, 0], sizes = [8, 128], strides = [1, 1]} : vector<30x128xbf16> to vector<8x128xbf16>
    %c48_136 = arith.constant 48 : index
    %c1024_137 = arith.constant 1024 : index
    %167 = vector.load %arg10[%c48_136, %c1024_137] : memref<64x1152xbf16, #tpu.memory_space<vmem>>, vector<8x128xbf16>
    tpu.vector_store %arg10[%c48_136, %c1024_137], %166 {strides = array<i32>} : memref<64x1152xbf16, #tpu.memory_space<vmem>>, vector<8x128xbf16>,
    %c90 = arith.constant 90 : index
    %c0_138 = arith.constant 0 : index
    %168 = vector.load %arg9[%c90, %c0_138] : memref<120x128xf32, #tpu.memory_space<vmem>>, vector<30x128xf32>
    %169 = arith.truncf %168 : vector<30x128xf32> to vector<30x128xbf16>
    %170 = vector.extract_strided_slice %169 {offsets = [0, 0], sizes = [8, 128], strides = [1, 1]} : vector<30x128xbf16> to vector<8x128xbf16>
    %c56 = arith.constant 56 : index
    %c0_139 = arith.constant 0 : index
    %171 = vector.load %arg10[%c56, %c0_139] : memref<64x1152xbf16, #tpu.memory_space<vmem>>, vector<8x128xbf16>
    tpu.vector_store %arg10[%c56, %c0_139], %170 {strides = array<i32>} : memref<64x1152xbf16, #tpu.memory_space<vmem>>, vector<8x128xbf16>,
    %172 = vector.extract_strided_slice %169 {offsets = [1, 0], sizes = [8, 128], strides = [1, 1]} : vector<30x128xbf16> to vector<8x128xbf16>
    %c56_140 = arith.constant 56 : index
    %c128_141 = arith.constant 128 : index
    %173 = vector.load %arg10[%c56_140, %c128_141] : memref<64x1152xbf16, #tpu.memory_space<vmem>>, vector<8x128xbf16>
    tpu.vector_store %arg10[%c56_140, %c128_141], %172 {strides = array<i32>} : memref<64x1152xbf16, #tpu.memory_space<vmem>>, vector<8x128xbf16>,
    %174 = vector.extract_strided_slice %169 {offsets = [2, 0], sizes = [8, 128], strides = [1, 1]} : vector<30x128xbf16> to vector<8x128xbf16>
    %c56_142 = arith.constant 56 : index
    %c256_143 = arith.constant 256 : index
    %175 = vector.load %arg10[%c56_142, %c256_143] : memref<64x1152xbf16, #tpu.memory_space<vmem>>, vector<8x128xbf16>
    tpu.vector_store %arg10[%c56_142, %c256_143], %174 {strides = array<i32>} : memref<64x1152xbf16, #tpu.memory_space<vmem>>, vector<8x128xbf16>,
    %176 = vector.extract_strided_slice %169 {offsets = [10, 0], sizes = [8, 128], strides = [1, 1]} : vector<30x128xbf16> to vector<8x128xbf16>
    %c56_144 = arith.constant 56 : index
    %c384_145 = arith.constant 384 : index
    %177 = vector.load %arg10[%c56_144, %c384_145] : memref<64x1152xbf16, #tpu.memory_space<vmem>>, vector<8x128xbf16>
    tpu.vector_store %arg10[%c56_144, %c384_145], %176 {strides = array<i32>} : memref<64x1152xbf16, #tpu.memory_space<vmem>>, vector<8x128xbf16>,
    %178 = vector.extract_strided_slice %169 {offsets = [11, 0], sizes = [8, 128], strides = [1, 1]} : vector<30x128xbf16> to vector<8x128xbf16>
    %c56_146 = arith.constant 56 : index
    %c512_147 = arith.constant 512 : index
    %179 = vector.load %arg10[%c56_146, %c512_147] : memref<64x1152xbf16, #tpu.memory_space<vmem>>, vector<8x128xbf16>
    tpu.vector_store %arg10[%c56_146, %c512_147], %178 {strides = array<i32>} : memref<64x1152xbf16, #tpu.memory_space<vmem>>, vector<8x128xbf16>,
    %180 = vector.extract_strided_slice %169 {offsets = [12, 0], sizes = [8, 128], strides = [1, 1]} : vector<30x128xbf16> to vector<8x128xbf16>
    %c56_148 = arith.constant 56 : index
    %c640_149 = arith.constant 640 : index
    %181 = vector.load %arg10[%c56_148, %c640_149] : memref<64x1152xbf16, #tpu.memory_space<vmem>>, vector<8x128xbf16>
    tpu.vector_store %arg10[%c56_148, %c640_149], %180 {strides = array<i32>} : memref<64x1152xbf16, #tpu.memory_space<vmem>>, vector<8x128xbf16>,
    %182 = vector.extract_strided_slice %169 {offsets = [20, 0], sizes = [8, 128], strides = [1, 1]} : vector<30x128xbf16> to vector<8x128xbf16>
    %c56_150 = arith.constant 56 : index
    %c768_151 = arith.constant 768 : index
    %183 = vector.load %arg10[%c56_150, %c768_151] : memref<64x1152xbf16, #tpu.memory_space<vmem>>, vector<8x128xbf16>
    tpu.vector_store %arg10[%c56_150, %c768_151], %182 {strides = array<i32>} : memref<64x1152xbf16, #tpu.memory_space<vmem>>, vector<8x128xbf16>,
    %184 = vector.extract_strided_slice %169 {offsets = [21, 0], sizes = [8, 128], strides = [1, 1]} : vector<30x128xbf16> to vector<8x128xbf16>
    %c56_152 = arith.constant 56 : index
    %c896_153 = arith.constant 896 : index
    %185 = vector.load %arg10[%c56_152, %c896_153] : memref<64x1152xbf16, #tpu.memory_space<vmem>>, vector<8x128xbf16>
    tpu.vector_store %arg10[%c56_152, %c896_153], %184 {strides = array<i32>} : memref<64x1152xbf16, #tpu.memory_space<vmem>>, vector<8x128xbf16>,
    %186 = vector.extract_strided_slice %169 {offsets = [22, 0], sizes = [8, 128], strides = [1, 1]} : vector<30x128xbf16> to vector<8x128xbf16>
    %c56_154 = arith.constant 56 : index
    %c1024_155 = arith.constant 1024 : index
    %187 = vector.load %arg10[%c56_154, %c1024_155] : memref<64x1152xbf16, #tpu.memory_space<vmem>>, vector<8x128xbf16>
    tpu.vector_store %arg10[%c56_154, %c1024_155], %186 {strides = array<i32>} : memref<64x1152xbf16, #tpu.memory_space<vmem>>, vector<8x128xbf16>,
    %c0_156 = arith.constant 0 : index
    %c0_157 = arith.constant 0 : index
    %188 = vector.load %arg10[%c0_156, %c0_157] : memref<64x1152xbf16, #tpu.memory_space<vmem>>, vector<64x1152xbf16>
    %c0_158 = arith.constant 0 : index
    %c0_159 = arith.constant 0 : index
    %189 = vector.load %arg4[%c0_158, %c0_159] : memref<1152x128xbf16, #tpu.memory_space<vmem>>, vector<1152x128xbf16>
    %cst_160 = arith.constant dense<0.000000e+00> : vector<64x128xf32>
    %190 = tpu.matmul %188, %189, %cst_160 {dimension_numbers = #tpu.dot_dimension_numbers<[1], [0], [0], [1], [0, 0, 1, 1], [], []>} : vector<64x1152xbf16>, vector<1152x128xbf16>, vector<64x128xf32> -> vector<64x128xf32>
    %c0_161 = arith.constant 0 : index
    %c0_162 = arith.constant 0 : index
    %191 = vector.load %arg5[%c0_161, %c0_162] : memref<1x128xf32, #tpu.memory_space<vmem>>, vector<1x128xf32>
    %192 = vector.broadcast %191 : vector<1x128xf32> to vector<64x128xf32>
    %193 = arith.addf %190, %192 : vector<64x128xf32>
    %cst_163 = arith.constant 0.000000e+00 : f32
    %194 = vector.broadcast %cst_163 : f32 to vector<64x128xf32>
    %195 = arith.maximumf %193, %194 : vector<64x128xf32>
    %196 = arith.truncf %195 : vector<64x128xf32> to vector<64x128xbf16>
    %c0_164 = arith.constant 0 : index
    %c0_165 = arith.constant 0 : index
    %197 = vector.load %arg6[%c0_164, %c0_165] : memref<128x128xbf16, #tpu.memory_space<vmem>>, vector<128x128xbf16>
    %cst_166 = arith.constant dense<0.000000e+00> : vector<64x128xf32>
    %198 = tpu.matmul %196, %197, %cst_166 {dimension_numbers = #tpu.dot_dimension_numbers<[1], [0], [0], [1], [0, 0, 1, 1], [], []>} : vector<64x128xbf16>, vector<128x128xbf16>, vector<64x128xf32> -> vector<64x128xf32>
    %c0_167 = arith.constant 0 : index
    %c0_168 = arith.constant 0 : index
    %199 = vector.load %arg7[%c0_167, %c0_168] : memref<1x128xf32, #tpu.memory_space<vmem>>, vector<1x128xf32>
    %200 = vector.broadcast %199 : vector<1x128xf32> to vector<64x128xf32>
    %201 = arith.addf %198, %200 : vector<64x128xf32>
    %c0_169 = arith.constant 0 : index
    %c0_170 = arith.constant 0 : index
    %c0_171 = arith.constant 0 : index
    %202 = vector.load %arg1[%c0_169, %c0_170, %c0_171] : memref<1x64x128xf32, #tpu.memory_space<vmem>>, vector<1x64x128xf32>
    %203 = vector.shape_cast %202 : vector<1x64x128xf32> to vector<64x128xf32>
    %204 = arith.addf %201, %203 : vector<64x128xf32>
    %cst_172 = arith.constant 0.000000e+00 : f32
    %205 = vector.broadcast %cst_172 : f32 to vector<64x128xf32>
    %206 = arith.maximumf %204, %205 : vector<64x128xf32>
    %c0_173 = arith.constant 0 : index
    %c0_174 = arith.constant 0 : index
    %c0_175 = arith.constant 0 : index
    %207 = vector.load %arg8[%c0_173, %c0_174, %c0_175] : memref<1x64x128xf32, #tpu.memory_space<vmem>>, vector<1x64x128xf32>
    %208 = vector.shape_cast %207 : vector<1x64x128xf32> to vector<64x128xf32>
    %209 = vector.shape_cast %206 : vector<64x128xf32> to vector<1x64x128xf32>
    tpu.vector_store %arg8[%c0_173, %c0_174, %c0_175], %209 {strides = array<i32>} : memref<1x64x128xf32, #tpu.memory_space<vmem>>, vector<1x64x128xf32>,
    return
  }
  func.func @transform_0(%arg0: i32) -> (i32, i32, i32) {
    %c0_i32 = arith.constant 0 : i32
    %c0_i32_0 = arith.constant 0 : i32
    %c0_i32_1 = arith.constant 0 : i32
    return %arg0, %c0_i32, %c0_i32_0 : i32, i32, i32
  }
  func.func @transform_1(%arg0: i32) -> (i32, i32) {
    %c0_i32 = arith.constant 0 : i32
    %c0_i32_0 = arith.constant 0 : i32
    %c0_i32_1 = arith.constant 0 : i32
    return %c0_i32, %c0_i32_0 : i32, i32
  }
  func.func @transform_2(%arg0: i32) -> (i32, i32) {
    %c0_i32 = arith.constant 0 : i32
    %c0_i32_0 = arith.constant 0 : i32
    %c0_i32_1 = arith.constant 0 : i32
    return %c0_i32, %c0_i32_0 : i32, i32
  }
  func.func @transform_3(%arg0: i32) -> (i32, i32) {
    %c0_i32 = arith.constant 0 : i32
    %c0_i32_0 = arith.constant 0 : i32
    %c0_i32_1 = arith.constant 0 : i32
    return %c0_i32, %c0_i32_0 : i32, i32
  }
  func.func @transform_4(%arg0: i32) -> (i32, i32) {
    %c0_i32 = arith.constant 0 : i32
    %c0_i32_0 = arith.constant 0 : i32
    %c0_i32_1 = arith.constant 0 : i32
    return %c0_i32, %c0_i32_0 : i32, i32
  }
  func.func @transform_5(%arg0: i32) -> (i32, i32) {
    %c0_i32 = arith.constant 0 : i32
    %c0_i32_0 = arith.constant 0 : i32
    %c0_i32_1 = arith.constant 0 : i32
    return %c0_i32, %c0_i32_0 : i32, i32
  }
  func.func @transform_6(%arg0: i32) -> (i32, i32) {
    %c0_i32 = arith.constant 0 : i32
    %c0_i32_0 = arith.constant 0 : i32
    %c0_i32_1 = arith.constant 0 : i32
    return %c0_i32, %c0_i32_0 : i32, i32
  }
  func.func @transform_7(%arg0: i32) -> (i32, i32, i32) {
    %c0_i32 = arith.constant 0 : i32
    %c0_i32_0 = arith.constant 0 : i32
    %c0_i32_1 = arith.constant 0 : i32
    return %arg0, %c0_i32, %c0_i32_0 : i32, i32, i32
  }
}

</mosaic_0001>

<llo_original>
// kernel: tile.28
$region0: #{tile.28}
  #allocation0 [shape = 's32[1]{0}', space=sflag, size = 0x4, scoped, tag = 'scoped memory for tile.28']
  %s0 = inlined_call_operand.vmem [shape: f32[16], index: 0, kind: input, shape index: {}]
  %s1 = inlined_call_operand.vmem [shape: f32[8,16], index: 1, kind: output, shape index: {}]
  // Predicated region
  $region2: #{tile.28} parent=0 // pred_check
    _
  $region3: #{tile.28} parent=0 // pred_check_branch
    %3 = sbr.rel (0) target = $region5
  $region4: #{tile.28} parent=0 // pred_region
    _
  $region5: #{tile.28} parent=0 // pred_fallthru
    _
  %v4 = vld [vmem:[%s0] ss:$0 sm:$0xff]
  %5 = vst [vmem:[%s1] sm:$0xff] %v4

// kernel: tile.29
$region0: #{tile.29}
  %s0 = inlined_call_operand.vmem [shape: f32[8,16], index: 0, kind: input, shape index: {}]
  %s1 = inlined_call_operand.vmem [shape: f32[1,128], index: 1, kind: output, shape index: {}]
  $region1: #{tile.29} parent=0
    #allocation0 [shape = 'u8[4096]{0}', space=vmem, size = 0x1000, scoped, tag = 'scoped mem for output reshape']
    %v2 = vld [vmem:[%s0] sm:$0x1]
    %vm3 = vcmask 130048
    %4 = vst.msk [vmem:[#allocation0] sm:$0x1] %vm3, %v2
    %s5 = scalar_lea.vmem %s0, 7
    %v6 = vld [vmem:[%s5] sm:$0x1]
    %7 = vrot.lane.b32.xlu0 %v6, 112
    %v8 = vpop.permute.xlu0 %7
    %vm9 = vcmask 1048448
    %10 = vst.msk [vmem:[#allocation0] sm:$0x1] %vm9, %v8
    %s11 = scalar_lea.vmem %s0, 6
    %v12 = vld [vmem:[%s11] sm:$0x1]
    %13 = vrot.lane.b32.xlu0 %v12, 96
    %v14 = vpop.permute.xlu0 %13
    %vm15 = vcmask 917248
    %16 = vst.msk [vmem:[#allocation0] sm:$0x1] %vm15, %v14
    %s17 = scalar_lea.vmem %s0, 5
    %v18 = vld [vmem:[%s17] sm:$0x1]
    %19 = vrot.lane.b32.xlu0 %v18, 80
    %v20 = vpop.permute.xlu0 %19
    %vm21 = vcmask 786048
    %22 = vst.msk [vmem:[#allocation0] sm:$0x1] %vm21, %v20
    %s23 = scalar_lea.vmem %s0, 4
    %v24 = vld [vmem:[%s23] sm:$0x1]
    %25 = vrot.lane.b32.xlu0 %v24, 64
    %v26 = vpop.permute.xlu0 %25
    %vm27 = vcmask 654848
    %28 = vst.msk [vmem:[#allocation0] sm:$0x1] %vm27, %v26
    %s29 = scalar_lea.vmem %s0, 3
    %v30 = vld [vmem:[%s29] sm:$0x1]
    %31 = vrot.lane.b32.xlu0 %v30, 48
    %v32 = vpop.permute.xlu0 %31
    %vm33 = vcmask 523648
    %34 = vst.msk [vmem:[#allocation0] sm:$0x1] %vm33, %v32
    %s35 = scalar_lea.vmem %s0, 2
    %v36 = vld [vmem:[%s35] sm:$0x1]
    %37 = vrot.lane.b32.xlu0 %v36, 32
    %v38 = vpop.permute.xlu0 %37
    %vm39 = vcmask 392448
    %40 = vst.msk [vmem:[#allocation0] sm:$0x1] %vm39, %v38
    %s41 = scalar_lea.vmem %s0, 1
    %v42 = vld [vmem:[%s41] sm:$0x1]
    %43 = vrot.lane.b32.xlu0 %v42, 16
    %v44 = vpop.permute.xlu0 %43
    %vm45 = vcmask 261248
    %46 = vst.msk [vmem:[#allocation0] sm:$0x1] %vm45, %v44
    %s48 = sshll.u32 1, 1
    %s49 = ssub.s32 %s48, 1
    %v51 = vld [vmem:[#allocation0] sm:%s49]
    %s52 = sshll.u32 1, 1
    %s53 = ssub.s32 %s52, 1
    %54 = vst [vmem:[%s1] sm:%s53] %v51

// kernel: basic_block_forward.1
$region0: #{basic_block_forward.1}
  #allocation0 [shape = 'u32[]', space=smem, size = 0x4, offset = 0x4, fixed_abs, tag = 'smem constant byte address 0x4 - core index']
  #allocation1 [shape = 'u32[144,128]{1,0:T(1,128)}', space=vmem, size = 0x12000, scoped, tag = 'internal scratch']
  #allocation2 [shape = 'f32[120,128]{1,0:T(8,128)}', space=vmem, size = 0xf000, scoped, tag = 'scratch operand']
  #allocation3 [shape = 'bf16[64,1152]{1,0:T(8,128)(2,1)}', space=vmem, size = 0x24000, scoped, tag = 'scratch operand']
  %s0 = inlined_call_operand.vmem [shape: f32[2,64,128], index: 0, kind: input, shape index: {}]
  %s1 = inlined_call_operand.vmem [shape: bf16[128,128], index: 1, kind: input, shape index: {}]
  %s2 = inlined_call_operand.vmem [shape: f32[1,128], index: 2, kind: input, shape index: {}]
  %s3 = inlined_call_operand.vmem [shape: bf16[1152,128], index: 3, kind: input, shape index: {}]
  %s4 = inlined_call_operand.vmem [shape: f32[1,128], index: 4, kind: input, shape index: {}]
  %s5 = inlined_call_operand.vmem [shape: bf16[128,128], index: 5, kind: input, shape index: {}]
  %s6 = inlined_call_operand.vmem [shape: f32[1,128], index: 6, kind: input, shape index: {}]
  %s7 = inlined_call_operand.vmem [shape: f32[2,64,128], index: 7, kind: output, shape index: {}]
  %s8 = sld [smem:[#allocation0]]
  $region61: #{basic_block_forward.1} parent=0
    _
  %s10 = ssub.s32 1, %s8
  %s11 = scalar_select 0, %s10, %s8
  loop: start=0, step=1, limit=4
  $region2: #{basic_block_forward.1} parent=0 // loop_pre_header
    _
  $region3: #{basic_block_forward.1} parent=0 // loop_header
    %s13 = sphi 0, %s17
    %p14 = scmp.ge.s32.totalorder %s13, 4
    %s23 = sphi 0, %s25
    %s26 = sphi 0, %s23
    %s27 = sphi 0, %s26
    %s43 = sphi 0, %s27
    %s47 = sphi 0, %s47
    %s49 = sphi 0, %s47
    %s50 = sphi 0, %s49
    %s64 = sphi 0, %s50
    %s68 = sphi 0, %s68
    %s70 = sphi 0, %s68
    %s71 = sphi 0, %s70
    %s85 = sphi 0, %s71
    %s89 = sphi 0, %s89
    %s91 = sphi 0, %s89
    %s92 = sphi 0, %s91
    %s106 = sphi 0, %s92
    %s110 = sphi 0, %s110
    %s112 = sphi 0, %s110
    %s113 = sphi 0, %s112
    %s127 = sphi 0, %s113
    %s131 = sphi 0, %s131
    %s133 = sphi 0, %s131
    %s134 = sphi 0, %s133
    %s148 = sphi 0, %s134
    %s152 = sphi 0, %s152
    %s154 = sphi 0, %s152
    %s155 = sphi 0, %s154
    %s169 = sphi 0, %s155
    %s175 = sphi 0, %s177
    %s178 = sphi 0, %s175
    %s179 = sphi 0, %s178
    %s195 = sphi 0, %s179
  $region4: #{basic_block_forward.1} parent=0 // loop_header_branch
    %16 = sbr.rel (%p14) target = $region8
  $region5: #{basic_block_forward.1} parent=0 // loop_body
    %s18 = ssub.s32 %s13, 1
    %s19 = ssub.s32 %s13, 2
    %s20 = sadd.s32 %s13, 1
    %s21 = ssub.s32 %s13, %s20
    %p22 = scmp.eq.s32.totalorder %s21, 0
    %s24 = sadd.s32 %s23, 1
    %s25 = scalar_select %p22, %s23, %s24
    %p28 = pneg %p22
    %p29 = scmp.eq.s32.totalorder %s13, 1
    %p30 = por %p28, %p29
    %p31 = scmp.ne.s32.totalorder %s23, %s26
    %p32 = scmp.eq.s32.totalorder %s13, 0
    %p33 = por %p31, %p32
    %p34 = scmp.ne.s32.totalorder %s23, %s26
    %p35 = scmp.eq.s32.totalorder %s18, 1
    %p36 = por %p34, %p35
    %p37 = scmp.ne.s32.totalorder %s26, %s27
    %p38 = scmp.eq.s32.totalorder %s18, 0
    %p39 = por %p37, %p38
    %p40 = scmp.ne.s32.totalorder %s26, %s27
    %p41 = scmp.eq.s32.totalorder %s19, 1
    %p42 = por %p40, %p41
    %p44 = scmp.ne.s32.totalorder %s27, %s43
    %p45 = scmp.eq.s32.totalorder %s19, 0
    %p46 = por %p44, %p45
    %s48 = sadd.s32 %s47, 1
    %p51 = scmp.eq.s32.totalorder %s13, 1
    %p52 = scmp.ne.s32.totalorder %s47, %s49
    %p53 = scmp.eq.s32.totalorder %s13, 0
    %p54 = por %p52, %p53
    %p55 = scmp.ne.s32.totalorder %s47, %s49
    %p56 = scmp.eq.s32.totalorder %s18, 1
    %p57 = por %p55, %p56
    %p58 = scmp.ne.s32.totalorder %s49, %s50
    %p59 = scmp.eq.s32.totalorder %s18, 0
    %p60 = por %p58, %p59
    %p61 = scmp.ne.s32.totalorder %s49, %s50
    %p62 = scmp.eq.s32.totalorder %s19, 1
    %p63 = por %p61, %p62
    %p65 = scmp.ne.s32.totalorder %s50, %s64
    %p66 = scmp.eq.s32.totalorder %s19, 0
    %p67 = por %p65, %p66
    %s69 = sadd.s32 %s68, 1
    %p72 = scmp.eq.s32.totalorder %s13, 1
    %p73 = scmp.ne.s32.totalorder %s68, %s70
    %p74 = scmp.eq.s32.totalorder %s13, 0
    %p75 = por %p73, %p74
    %p76 = scmp.ne.s32.totalorder %s68, %s70
    %p77 = scmp.eq.s32.totalorder %s18, 1
    %p78 = por %p76, %p77
    %p79 = scmp.ne.s32.totalorder %s70, %s71
    %p80 = scmp.eq.s32.totalorder %s18, 0
    %p81 = por %p79, %p80
    %p82 = scmp.ne.s32.totalorder %s70, %s71
    %p83 = scmp.eq.s32.totalorder %s19, 1
    %p84 = por %p82, %p83
    %p86 = scmp.ne.s32.totalorder %s71, %s85
    %p87 = scmp.eq.s32.totalorder %s19, 0
    %p88 = por %p86, %p87
    %s90 = sadd.s32 %s89, 1
    %p93 = scmp.eq.s32.totalorder %s13, 1
    %p94 = scmp.ne.s32.totalorder %s89, %s91
    %p95 = scmp.eq.s32.totalorder %s13, 0
    %p96 = por %p94, %p95
    %p97 = scmp.ne.s32.totalorder %s89, %s91
    %p98 = scmp.eq.s32.totalorder %s18, 1
    %p99 = por %p97, %p98
    %p100 = scmp.ne.s32.totalorder %s91, %s92
    %p101 = scmp.eq.s32.totalorder %s18, 0
    %p102 = por %p100, %p101
    %p103 = scmp.ne.s32.totalorder %s91, %s92
    %p104 = scmp.eq.s32.totalorder %s19, 1
    %p105 = por %p103, %p104
    %p107 = scmp.ne.s32.totalorder %s92, %s106
    %p108 = scmp.eq.s32.totalorder %s19, 0
    %p109 = por %p107, %p108
    %s111 = sadd.s32 %s110, 1
    %p114 = scmp.eq.s32.totalorder %s13, 1
    %p115 = scmp.ne.s32.totalorder %s110, %s112
    %p116 = scmp.eq.s32.totalorder %s13, 0
    %p117 = por %p115, %p116
    %p118 = scmp.ne.s32.totalorder %s110, %s112
    %p119 = scmp.eq.s32.totalorder %s18, 1
    %p120 = por %p118, %p119
    %p121 = scmp.ne.s32.totalorder %s112, %s113
    %p122 = scmp.eq.s32.totalorder %s18, 0
    %p123 = por %p121, %p122
    %p124 = scmp.ne.s32.totalorder %s112, %s113
    %p125 = scmp.eq.s32.totalorder %s19, 1
    %p126 = por %p124, %p125
    %p128 = scmp.ne.s32.totalorder %s113, %s127
    %p129 = scmp.eq.s32.totalorder %s19, 0
    %p130 = por %p128, %p129
    %s132 = sadd.s32 %s131, 1
    %p135 = scmp.eq.s32.totalorder %s13, 1
    %p136 = scmp.ne.s32.totalorder %s131, %s133
    %p137 = scmp.eq.s32.totalorder %s13, 0
    %p138 = por %p136, %p137
    %p139 = scmp.ne.s32.totalorder %s131, %s133
    %p140 = scmp.eq.s32.totalorder %s18, 1
    %p141 = por %p139, %p140
    %p142 = scmp.ne.s32.totalorder %s133, %s134
    %p143 = scmp.eq.s32.totalorder %s18, 0
    %p144 = por %p142, %p143
    %p145 = scmp.ne.s32.totalorder %s133, %s134
    %p146 = scmp.eq.s32.totalorder %s19, 1
    %p147 = por %p145, %p146
    %p149 = scmp.ne.s32.totalorder %s134, %s148
    %p150 = scmp.eq.s32.totalorder %s19, 0
    %p151 = por %p149, %p150
    %s153 = sadd.s32 %s152, 1
    %p156 = scmp.eq.s32.totalorder %s13, 1
    %p157 = scmp.ne.s32.totalorder %s152, %s154
    %p158 = scmp.eq.s32.totalorder %s13, 0
    %p159 = por %p157, %p158
    %p160 = scmp.ne.s32.totalorder %s152, %s154
    %p161 = scmp.eq.s32.totalorder %s18, 1
    %p162 = por %p160, %p161
    %p163 = scmp.ne.s32.totalorder %s154, %s155
    %p164 = scmp.eq.s32.totalorder %s18, 0
    %p165 = por %p163, %p164
    %p166 = scmp.ne.s32.totalorder %s154, %s155
    %p167 = scmp.eq.s32.totalorder %s19, 1
    %p168 = por %p166, %p167
    %p170 = scmp.ne.s32.totalorder %s155, %s169
    %p171 = scmp.eq.s32.totalorder %s19, 0
    %p172 = por %p170, %p171
    %s173 = ssub.s32 %s13, %s20
    %p174 = scmp.eq.s32.totalorder %s173, 0
    %s176 = sadd.s32 %s175, 1
    %s177 = scalar_select %p174, %s175, %s176
    %p180 = pneg %p174
    %p181 = scmp.eq.s32.totalorder %s13, 1
    %p182 = por %p180, %p181
    %p183 = scmp.ne.s32.totalorder %s175, %s178
    %p184 = scmp.eq.s32.totalorder %s13, 0
    %p185 = por %p183, %p184
    %p186 = scmp.ne.s32.totalorder %s175, %s178
    %p187 = scmp.eq.s32.totalorder %s18, 1
    %p188 = por %p186, %p187
    %p189 = scmp.ne.s32.totalorder %s178, %s179
    %p190 = scmp.eq.s32.totalorder %s18, 0
    %p191 = por %p189, %p190
    %p192 = scmp.ne.s32.totalorder %s178, %s179
    %p193 = scmp.eq.s32.totalorder %s19, 1
    %p194 = por %p192, %p193
    %p196 = scmp.ne.s32.totalorder %s179, %s195
    %p197 = scmp.eq.s32.totalorder %s19, 0
    %p198 = por %p196, %p197
    %p199 = scmp.le.s32.totalorder 1, %s13
    %p200 = scmp.lt.s32.totalorder %s13, 3
    %p201 = pnand %p199, %p200
    %p202 = pneg %p201
    // Predicated region
    $region9: #{basic_block_forward.1} parent=5 // pred_check
      _
    $region10: #{basic_block_forward.1} parent=5 // pred_check_branch
      %204 = sbr.rel (%p201) target = $region12
    $region11: #{basic_block_forward.1} parent=5 // pred_region
      %s205 = ssub.s32 %s13, 1
      // Predicated region
      $region13: #{basic_block_forward.1} parent=11 // pred_check
        %p206 = pneg %p60
      $region14: #{basic_block_forward.1} parent=11 // pred_check_branch
        %208 = sbr.rel (%p206) target = $region16
      $region15: #{basic_block_forward.1} parent=11 // pred_region
        _
      $region16: #{basic_block_forward.1} parent=11 // pred_fallthru
        _
      // Predicated region
      $region17: #{basic_block_forward.1} parent=11 // pred_check
        %p209 = pneg %p81
      $region18: #{basic_block_forward.1} parent=11 // pred_check_branch
        %211 = sbr.rel (%p209) target = $region20
      $region19: #{basic_block_forward.1} parent=11 // pred_region
        _
      $region20: #{basic_block_forward.1} parent=11 // pred_fallthru
        _
      // Predicated region
      $region21: #{basic_block_forward.1} parent=11 // pred_check
        %p212 = pneg %p102
      $region22: #{basic_block_forward.1} parent=11 // pred_check_branch
        %214 = sbr.rel (%p212) target = $region24
      $region23: #{basic_block_forward.1} parent=11 // pred_region
        _
      $region24: #{basic_block_forward.1} parent=11 // pred_fallthru
        _
      // Predicated region
      $region25: #{basic_block_forward.1} parent=11 // pred_check
        %p215 = pneg %p123
      $region26: #{basic_block_forward.1} parent=11 // pred_check_branch
        %217 = sbr.rel (%p215) target = $region28
      $region27: #{basic_block_forward.1} parent=11 // pred_region
        _
      $region28: #{basic_block_forward.1} parent=11 // pred_fallthru
        _
      // Predicated region
      $region29: #{basic_block_forward.1} parent=11 // pred_check
        %p218 = pneg %p144
      $region30: #{basic_block_forward.1} parent=11 // pred_check_branch
        %220 = sbr.rel (%p218) target = $region32
      $region31: #{basic_block_forward.1} parent=11 // pred_region
        _
      $region32: #{basic_block_forward.1} parent=11 // pred_fallthru
        _
      // Predicated region
      $region33: #{basic_block_forward.1} parent=11 // pred_check
        %p221 = pneg %p165
      $region34: #{basic_block_forward.1} parent=11 // pred_check_branch
        %223 = sbr.rel (%p221) target = $region36
      $region35: #{basic_block_forward.1} parent=11 // pred_region
        _
      $region36: #{basic_block_forward.1} parent=11 // pred_fallthru
        _
    $region12: #{basic_block_forward.1} parent=5 // pred_fallthru
      _
    %p224 = scmp.lt.s32.totalorder %s13, 2
    // Predicated region
    $region37: #{basic_block_forward.1} parent=5 // pred_check
      %p225 = pneg %p224
    $region38: #{basic_block_forward.1} parent=5 // pred_check_branch
      %227 = sbr.rel (%p225) target = $region40
    $region39: #{basic_block_forward.1} parent=5 // pred_region
      // Predicated region
      $region41: #{basic_block_forward.1} parent=39 // pred_check
        %p228 = pneg %p33
      $region42: #{basic_block_forward.1} parent=39 // pred_check_branch
        %230 = sbr.rel (%p228) target = $region44
      $region43: #{basic_block_forward.1} parent=39 // pred_region
        %p231 = scmp.lt.s32.totalorder %s13, 1
        %s232 = scalar_select %p231, %s13, 1
        %s233 = smul.addr %s232, 8
        %s234 = smul.addr %s233, 8
        %s235 = scalar_lea.vmem %s0, %s234
      $region44: #{basic_block_forward.1} parent=39 // pred_fallthru
        _
    $region40: #{basic_block_forward.1} parent=5 // pred_fallthru
      _
    %p236 = scmp.le.s32.totalorder 1, %s13
    %p237 = scmp.lt.s32.totalorder %s13, 3
    %p238 = pnand %p236, %p237
    %p239 = pneg %p238
    // Predicated region
    $region45: #{basic_block_forward.1} parent=5 // pred_check
      _
    $region46: #{basic_block_forward.1} parent=5 // pred_check_branch
      %241 = sbr.rel (%p238) target = $region48
    $region47: #{basic_block_forward.1} parent=5 // pred_region
      %s242 = ssub.s32 %s13, 1
      %p243 = scmp.lt.s32.totalorder %s18, 1
      %s244 = scalar_select %p243, %s18, 1
      %s245 = smul.addr %s244, 8
      %s246 = smul.addr %s245, 8
      %s247 = scalar_lea.vmem %s0, %s246
      %p248 = pneg %p39
      %p249 = pneg %p36
      %p250 = pneg %p60
      %p251 = pneg %p57
      %p252 = pneg %p81
      %p253 = pneg %p78
      %p254 = pneg %p102
      %p255 = pneg %p99
      %p256 = pneg %p123
      %p257 = pneg %p120
      %p258 = pneg %p144
      %p259 = pneg %p141
      %p260 = pneg %p165
      %p261 = pneg %p162
      %p262 = pneg %p191
      %p263 = pneg %p188
      %p264 = scmp.lt.s32.totalorder %s18, 1
      %s265 = scalar_select %p264, %s18, 1
      %s266 = smul.addr %s265, 8
      %s267 = smul.addr %s266, 8
      %s268 = scalar_lea.vmem %s7, %s267
      %p269 = scmp.lt.s32.totalorder %s18, 1
      %s270 = scalar_select %p269, %s18, 1
      %s271 = smul.addr %s270, 8
      %s272 = smul.addr %s271, 8
      %s273 = scalar_lea.vmem %s0, %s272
      %p274 = scmp.lt.s32.totalorder %s18, 1
      %s275 = scalar_select %p274, %s18, 1
      %s276 = smul.addr %s275, 8
      %s277 = smul.addr %s276, 8
      %s278 = scalar_lea.vmem %s7, %s277
      %v280 = vld [vmem:[%s273] sm:$0xff]
      %v281 = vld [vmem:[%s273 + $0x8] sm:$0xff]
      %v282 = vld [vmem:[%s273 + $0x10] sm:$0xff]
      %v283 = vld [vmem:[%s273 + $0x18] sm:$0xff]
      %v284 = vld [vmem:[%s273 + $0x20] sm:$0xff]
      %v285 = vld [vmem:[%s273 + $0x28] sm:$0xff]
      %v286 = vld [vmem:[%s273 + $0x30] sm:$0xff]
      %v287 = vld [vmem:[%s273 + $0x38] sm:$0xff]
      %v288 = vpack.c.bf16 %v281, %v280
      %v289 = vpack.c.bf16 %v283, %v282
      %v290 = vpack.c.bf16 %v285, %v284
      %v291 = vpack.c.bf16 %v287, %v286
      %v292 = vld [vmem:[%s1] sm:$0xf]
      %v293 = vld [vmem:[%s1 + $0x4] sm:$0xf]
      %v294 = vld [vmem:[%s1 + $0x8] sm:$0xf]
      %v295 = vld [vmem:[%s1 + $0xc] sm:$0xf]
      %v296 = vld [vmem:[%s1 + $0x10] sm:$0xf]
      %v297 = vld [vmem:[%s1 + $0x14] sm:$0xf]
      %v298 = vld [vmem:[%s1 + $0x18] sm:$0xf]
      %v299 = vld [vmem:[%s1 + $0x1c] sm:$0xf]
      %v300 = vld [vmem:[%s1 + $0x20] sm:$0xf]
      %v301 = vld [vmem:[%s1 + $0x24] sm:$0xf]
      %v302 = vld [vmem:[%s1 + $0x28] sm:$0xf]
      %v303 = vld [vmem:[%s1 + $0x2c] sm:$0xf]
      %v304 = vld [vmem:[%s1 + $0x30] sm:$0xf]
      %v305 = vld [vmem:[%s1 + $0x34] sm:$0xf]
      %v306 = vld [vmem:[%s1 + $0x38] sm:$0xf]
      %v307 = vld [vmem:[%s1 + $0x3c] sm:$0xf]
      %v308 = vld [vmem:[%s2] sm:$0x1]
      %v310 = vlaneseq
      %v311 = vshrl.u32 %v310, 7
      %v312 = vsub.s32 0, %v311
      %v313 = vrot.slane %v308, %v312
      %v331 = vunpack.c.l.b16 %v292
      %v332 = vunpack.c.l.b16 %v293
      %v333 = vunpack.c.l.b16 %v294
      %v334 = vunpack.c.l.b16 %v295
      %v335 = vunpack.c.l.b16 %v296
      %v336 = vunpack.c.l.b16 %v297
      %v337 = vunpack.c.l.b16 %v298
      %v338 = vunpack.c.l.b16 %v299
      %v339 = vunpack.c.l.b16 %v300
      %v340 = vunpack.c.l.b16 %v301
      %v341 = vunpack.c.l.b16 %v302
      %v342 = vunpack.c.l.b16 %v303
      %v343 = vunpack.c.l.b16 %v304
      %v344 = vunpack.c.l.b16 %v305
      %v345 = vunpack.c.l.b16 %v306
      %v346 = vunpack.c.l.b16 %v307
      %v347 = vpack.c.b16 %v332, %v331
      %v348 = vpack.c.b16 %v334, %v333
      %v349 = vpack.c.b16 %v336, %v335
      %v350 = vpack.c.b16 %v338, %v337
      %v351 = vpack.c.b16 %v340, %v339
      %v352 = vpack.c.b16 %v342, %v341
      %v353 = vpack.c.b16 %v344, %v343
      %v354 = vpack.c.b16 %v346, %v345
      %363 = vmatprep.subr.bf16.mxu0 0
      %364 = vmatpush1.bf16.msra.mxu0 %v354
      %365 = vmatprep.subr.bf16.mxu0 0
      %366 = vmatpush1.bf16.msra.mxu0 %v353
      %367 = vmatprep.subr.bf16.mxu0 0
      %368 = vmatpush1.bf16.msra.mxu0 %v352
      %369 = vmatprep.subr.bf16.mxu0 0
      %370 = vmatpush1.bf16.msra.mxu0 %v351
      %371 = vmatprep.subr.bf16.mxu0 0
      %372 = vmatpush1.bf16.msra.mxu0 %v350
      %373 = vmatprep.subr.bf16.mxu0 0
      %374 = vmatpush1.bf16.msra.mxu0 %v349
      %375 = vmatprep.subr.bf16.mxu0 0
      %376 = vmatpush1.bf16.msra.mxu0 %v348
      %377 = vmatprep.subr.bf16.mxu0 0
      %378 = vmatpush1.bf16.msra.mxu0 %v347
      %379 = vmatprep.subr.bf16.mxu0 0
      %380 = vmatpush2.bf16.msra.mxu0 0
      %381 = vmatprep.subr.bf16.mxu0 0
      %382 = vmatpush2.bf16.msra.mxu0 0
      %383 = vmatprep.subr.bf16.mxu0 0
      %384 = vmatpush2.bf16.msra.mxu0 0
      %385 = vmatprep.subr.bf16.mxu0 0
      %386 = vmatpush2.bf16.msra.mxu0 0
      %387 = vmatprep.subr.bf16.mxu0 0
      %388 = vmatpush2.bf16.msra.mxu0 0
      %389 = vmatprep.subr.bf16.mxu0 0
      %390 = vmatpush2.bf16.msra.mxu0 0
      %391 = vmatprep.subr.bf16.mxu0 0
      %392 = vmatpush2.bf16.msra.mxu0 0
      %393 = vmatprep.subr.bf16.mxu0 0
      %394 = vmatpush2.bf16.msra.mxu0 0
      %395 = vmatprep.mubr.bf16.mxu0 0
      %396 = vmatmul.mubr.bf16.gmra.mxu0 %v288
      %v397 = vpop.f32.mrf.mxu0
      %v398 = vadd.f32 %v313, %v397
      %v399 = vpop.f32.mrf.mxu0
      %v400 = vpop.f32.mrf.mxu0
      %v401 = vadd.f32 %v313, %v400
      %v402 = vpop.f32.mrf.mxu0
      %403 = vmatprep.mubr.bf16.mxu0 0
      %404 = vmatmul.mubr.bf16.gmra.mxu0 %v289
      %v405 = vpop.f32.mrf.mxu0
      %v406 = vadd.f32 %v313, %v405
      %v407 = vpop.f32.mrf.mxu0
      %v408 = vpop.f32.mrf.mxu0
      %v409 = vadd.f32 %v313, %v408
      %v410 = vpop.f32.mrf.mxu0
      %411 = vmatprep.mubr.bf16.mxu0 0
      %412 = vmatmul.mubr.bf16.gmra.mxu0 %v290
      %v413 = vpop.f32.mrf.mxu0
      %v414 = vadd.f32 %v313, %v413
      %v415 = vpop.f32.mrf.mxu0
      %v416 = vpop.f32.mrf.mxu0
      %v417 = vadd.f32 %v313, %v416
      %v418 = vpop.f32.mrf.mxu0
      %419 = vmatprep.mubr.bf16.mxu0 0
      %420 = vmatmul.mubr.bf16.gmra.mxu0 %v291
      %v421 = vpop.f32.mrf.mxu0
      %v422 = vadd.f32 %v313, %v421
      %v423 = vpop.f32.mrf.mxu0
      %v424 = vpop.f32.mrf.mxu0
      %v425 = vadd.f32 %v313, %v424
      %v426 = vpop.f32.mrf.mxu0
      %427 = vdwg.mxu0
      %v428 = vmax.f32 %v398, 0.0
      %v429 = vmax.f32 %v401, 0.0
      %v430 = vmax.f32 %v406, 0.0
      %v431 = vmax.f32 %v409, 0.0
      %v432 = vmax.f32 %v414, 0.0
      %v433 = vmax.f32 %v417, 0.0
      %v434 = vmax.f32 %v422, 0.0
      %v435 = vmax.f32 %v425, 0.0
      %436 = vst [vmem:[#allocation2] sm:$0xff] 0.0
      %437 = vst [vmem:[#allocation2 + $0x8] sm:$0xff] 0.0
      %438 = vst [vmem:[#allocation2 + $0x10] sm:$0xff] 0.0
      %439 = vst [vmem:[#allocation2 + $0x18] sm:$0xff] 0.0
      %440 = vst [vmem:[#allocation2 + $0x20] sm:$0xff] 0.0
      %441 = vst [vmem:[#allocation2 + $0x28] sm:$0xff] 0.0
      %442 = vst [vmem:[#allocation2 + $0x30] sm:$0xff] 0.0
      %443 = vst [vmem:[#allocation2 + $0x38] sm:$0xff] 0.0
      %444 = vst [vmem:[#allocation2 + $0x40] sm:$0xff] 0.0
      %445 = vst [vmem:[#allocation2 + $0x48] sm:$0xff] 0.0
      %446 = vst [vmem:[#allocation2 + $0x50] sm:$0xff] 0.0
      %447 = vst [vmem:[#allocation2 + $0x58] sm:$0xff] 0.0
      %448 = vst [vmem:[#allocation2 + $0x60] sm:$0xff] 0.0
      %449 = vst [vmem:[#allocation2 + $0x68] sm:$0xff] 0.0
      %450 = vst [vmem:[#allocation2 + $0x70] sm:$0xff] 0.0
      %451 = vst [vmem:[#allocation2 + $0xb] sm:$0xff] %v428
      %452 = vst [vmem:[#allocation2 + $0x15] sm:$0xff] %v429
      %453 = vst [vmem:[#allocation2 + $0x1f] sm:$0xff] %v430
      %454 = vst [vmem:[#allocation2 + $0x29] sm:$0xff] %v431
      %455 = vst [vmem:[#allocation2 + $0x47] sm:$0xff] %v432
      %456 = vst [vmem:[#allocation2 + $0x51] sm:$0xff] %v433
      %457 = vst [vmem:[#allocation2 + $0x5b] sm:$0xff] %v434
      %458 = vst [vmem:[#allocation2 + $0x65] sm:$0xff] %v435
      %v459 = vld [vmem:[#allocation2] sm:$0xff]
      %v460 = vld [vmem:[#allocation2 + $0x8] sm:$0xff]
      %v461 = vld [vmem:[#allocation2 + $0x10] sm:$0xff]
      %v462 = vld [vmem:[#allocation2 + $0x18] sm:$0x3f]
      %v463 = vpack.c.bf16 %v460, %v459
      %v464 = vpack.c.bf16 %v462, %v461
      %465 = vst [vmem:[#allocation3] sm:$0xf] %v463
      %v467 = vunpack.c.l.b16 %v463
      %v468 = vunpack.c.h.b16 %v463
      %v469 = vpack.c.b16 %v467, %v467
      %v470 = vpack.c.b16 %v468, %v468
      %vm471 = vsmask.f32 3328
      %vm472 = vsmask.f32 7440
      %vm473 = vmor %vm471, %vm472
      %v475 = vshrl.u32 %v469, 16
      %v477 = vrot.slane %v475, 4
      %v478 = vshll.u32 %v469, 16
      %v480 = vrot.slane %v478, 5
      %v481 = vor.u32 %v477, %v480
      %v482 = vrot.slane %v481, 4
      %v484 = vshll.u32 %v470, 16
      %v486 = vrot.slane %v484, 5
      %v487 = vsel %vm473, %v482, %v486
      %489 = vst [vmem:[#allocation3 + $0x4] sm:$0xf] %v487
      %vm490 = vcmask 1042432
      %vm491 = vcmask 1046532
      %vm492 = vmor %vm490, %vm491
      %v493 = vrot.slane %v469, 5
      %v494 = vrot.slane %v493, 4
      %v495 = vrot.slane %v470, 5
      %v496 = vsel %vm492, %v494, %v495
      %498 = vst [vmem:[#allocation3 + $0x8] sm:$0xf] %v496
      %v500 = vunpack.c.l.b16 %v464
      %v501 = vpack.c.b16 %v500, %v500
      %v502 = vrot.slane %v495, 4
      %v503 = vrot.slane %v501, 5
      %v504 = vsel %vm492, %v502, %v503
      %506 = vst [vmem:[#allocation3 + $0xc] sm:$0xf] %v504
      %vm507 = vsmask.f32 2304
      %vm508 = vsmask.f32 6416
      %vm509 = vmor %vm507, %vm508
      %v510 = vshrl.u32 %v470, 16
      %v512 = vrot.slane %v510, 5
      %v513 = vrot.slane %v484, 6
      %v514 = vor.u32 %v512, %v513
      %v515 = vrot.slane %v514, 4
      %v517 = vshrl.u32 %v501, 16
      %v519 = vrot.slane %v517, 5
      %v520 = vshll.u32 %v501, 16
      %v522 = vrot.slane %v520, 6
      %v523 = vor.u32 %v519, %v522
      %v524 = vsel %vm509, %v515, %v523
      %526 = vst [vmem:[#allocation3 + $0x10] sm:$0xf] %v524
      %vm527 = vcmask 1041408
      %vm528 = vcmask 1045508
      %vm529 = vmor %vm527, %vm528
      %v530 = vrot.slane %v470, 6
      %v531 = vrot.slane %v530, 4
      %v532 = vrot.slane %v501, 6
      %v533 = vsel %vm529, %v531, %v532
      %535 = vst [vmem:[#allocation3 + $0x14] sm:$0xf] %v533
      %v536 = vunpack.c.h.b16 %v464
      %v537 = vpack.c.b16 %v536, %v536
      %v538 = vrot.slane %v532, 4
      %v539 = vrot.slane %v537, 6
      %v540 = vsel %vm529, %v538, %v539
      %542 = vst [vmem:[#allocation3 + $0x18] sm:$0xf] %v540
      %vm543 = vsmask.f32 1280
      %vm544 = vsmask.f32 5392
      %vm545 = vmor %vm543, %vm544
      %v546 = vrot.slane %v517, 6
      %v547 = vrot.slane %v520, 7
      %v548 = vor.u32 %v546, %v547
      %v549 = vrot.slane %v548, 4
      %v551 = vshrl.u32 %v537, 16
      %v553 = vrot.slane %v551, 6
      %v554 = vshll.u32 %v537, 16
      %v556 = vrot.slane %v554, 7
      %v557 = vor.u32 %v553, %v556
      %v558 = vsel %vm545, %v549, %v557
      %560 = vst [vmem:[#allocation3 + $0x1c] sm:$0xf] %v558
      %vm561 = vcmask 1040384
      %vm562 = vcmask 1044484
      %vm563 = vmor %vm561, %vm562
      %v564 = vrot.slane %v501, 7
      %v565 = vrot.slane %v564, 4
      %v566 = vrot.slane %v537, 7
      %v567 = vsel %vm563, %v565, %v566
      %569 = vst [vmem:[#allocation3 + $0x20] sm:$0xf] %v567
      %v570 = vld [vmem:[#allocation2 + $0xa] sm:$0xff]
      %v571 = vld [vmem:[#allocation2 + $0x12] sm:$0xff]
      %v572 = vld [vmem:[#allocation2 + $0x1a] sm:$0xff]
      %v573 = vld [vmem:[#allocation2 + $0x22] sm:$0x3f]
      %v574 = vpack.c.bf16 %v571, %v570
      %v575 = vpack.c.bf16 %v573, %v572
      %576 = vst [vmem:[#allocation3 + $0x24] sm:$0xf] %v574
      %v578 = vunpack.c.l.b16 %v574
      %v579 = vunpack.c.h.b16 %v574
      %v580 = vpack.c.b16 %v578, %v578
      %v581 = vpack.c.b16 %v579, %v579
      %v583 = vshrl.u32 %v580, 16
      %v585 = vrot.slane %v583, 4
      %v586 = vshll.u32 %v580, 16
      %v588 = vrot.slane %v586, 5
      %v589 = vor.u32 %v585, %v588
      %v590 = vrot.slane %v589, 4
      %v592 = vshll.u32 %v581, 16
      %v594 = vrot.slane %v592, 5
      %v595 = vsel %vm473, %v590, %v594
      %597 = vst [vmem:[#allocation3 + $0x28] sm:$0xf] %v595
      %v598 = vrot.slane %v580, 5
      %v599 = vrot.slane %v598, 4
      %v600 = vrot.slane %v581, 5
      %v601 = vsel %vm492, %v599, %v600
      %603 = vst [vmem:[#allocation3 + $0x2c] sm:$0xf] %v601
      %v605 = vunpack.c.l.b16 %v575
      %v606 = vpack.c.b16 %v605, %v605
      %v607 = vrot.slane %v600, 4
      %v608 = vrot.slane %v606, 5
      %v609 = vsel %vm492, %v607, %v608
      %611 = vst [vmem:[#allocation3 + $0x30] sm:$0xf] %v609
      %v612 = vshrl.u32 %v581, 16
      %v614 = vrot.slane %v612, 5
      %v615 = vrot.slane %v592, 6
      %v616 = vor.u32 %v614, %v615
      %v617 = vrot.slane %v616, 4
      %v619 = vshrl.u32 %v606, 16
      %v621 = vrot.slane %v619, 5
      %v622 = vshll.u32 %v606, 16
      %v624 = vrot.slane %v622, 6
      %v625 = vor.u32 %v621, %v624
      %v626 = vsel %vm509, %v617, %v625
      %628 = vst [vmem:[#allocation3 + $0x34] sm:$0xf] %v626
      %v629 = vrot.slane %v581, 6
      %v630 = vrot.slane %v629, 4
      %v631 = vrot.slane %v606, 6
      %v632 = vsel %vm529, %v630, %v631
      %634 = vst [vmem:[#allocation3 + $0x38] sm:$0xf] %v632
      %v635 = vunpack.c.h.b16 %v575
      %v636 = vpack.c.b16 %v635, %v635
      %v637 = vrot.slane %v631, 4
      %v638 = vrot.slane %v636, 6
      %v639 = vsel %vm529, %v637, %v638
      %641 = vst [vmem:[#allocation3 + $0x3c] sm:$0xf] %v639
      %v642 = vrot.slane %v619, 6
      %v643 = vrot.slane %v622, 7
      %v644 = vor.u32 %v642, %v643
      %v645 = vrot.slane %v644, 4
      %v647 = vshrl.u32 %v636, 16
      %v649 = vrot.slane %v647, 6
      %v650 = vshll.u32 %v636, 16
      %v652 = vrot.slane %v650, 7
      %v653 = vor.u32 %v649, %v652
      %v654 = vsel %vm545, %v645, %v653
      %656 = vst [vmem:[#allocation3 + $0x40] sm:$0xf] %v654
      %v657 = vrot.slane %v606, 7
      %v658 = vrot.slane %v657, 4
      %v659 = vrot.slane %v636, 7
      %v660 = vsel %vm563, %v658, %v659
      %662 = vst [vmem:[#allocation3 + $0x44] sm:$0xf] %v660
      %v663 = vld [vmem:[#allocation2 + $0x14] sm:$0xff]
      %v664 = vld [vmem:[#allocation2 + $0x1c] sm:$0xff]
      %v665 = vld [vmem:[#allocation2 + $0x24] sm:$0xff]
      %v666 = vld [vmem:[#allocation2 + $0x2c] sm:$0x3f]
      %v667 = vpack.c.bf16 %v664, %v663
      %v668 = vpack.c.bf16 %v666, %v665
      %669 = vst [vmem:[#allocation3 + $0x48] sm:$0xf] %v667
      %v671 = vunpack.c.l.b16 %v667
      %v672 = vunpack.c.h.b16 %v667
      %v673 = vpack.c.b16 %v671, %v671
      %v674 = vpack.c.b16 %v672, %v672
      %v676 = vshrl.u32 %v673, 16
      %v678 = vrot.slane %v676, 4
      %v679 = vshll.u32 %v673, 16
      %v681 = vrot.slane %v679, 5
      %v682 = vor.u32 %v678, %v681
      %v683 = vrot.slane %v682, 4
      %v685 = vshll.u32 %v674, 16
      %v687 = vrot.slane %v685, 5
      %v688 = vsel %vm473, %v683, %v687
      %690 = vst [vmem:[#allocation3 + $0x4c] sm:$0xf] %v688
      %v691 = vrot.slane %v673, 5
      %v692 = vrot.slane %v691, 4
      %v693 = vrot.slane %v674, 5
      %v694 = vsel %vm492, %v692, %v693
      %696 = vst [vmem:[#allocation3 + $0x50] sm:$0xf] %v694
      %v698 = vunpack.c.l.b16 %v668
      %v699 = vpack.c.b16 %v698, %v698
      %v700 = vrot.slane %v693, 4
      %v701 = vrot.slane %v699, 5
      %v702 = vsel %vm492, %v700, %v701
      %704 = vst [vmem:[#allocation3 + $0x54] sm:$0xf] %v702
      %v705 = vshrl.u32 %v674, 16
      %v707 = vrot.slane %v705, 5
      %v708 = vrot.slane %v685, 6
      %v709 = vor.u32 %v707, %v708
      %v710 = vrot.slane %v709, 4
      %v712 = vshrl.u32 %v699, 16
      %v714 = vrot.slane %v712, 5
      %v715 = vshll.u32 %v699, 16
      %v717 = vrot.slane %v715, 6
      %v718 = vor.u32 %v714, %v717
      %v719 = vsel %vm509, %v710, %v718
      %721 = vst [vmem:[#allocation3 + $0x58] sm:$0xf] %v719
      %v722 = vrot.slane %v674, 6
      %v723 = vrot.slane %v722, 4
      %v724 = vrot.slane %v699, 6
      %v725 = vsel %vm529, %v723, %v724
      %727 = vst [vmem:[#allocation3 + $0x5c] sm:$0xf] %v725
      %v728 = vunpack.c.h.b16 %v668
      %v729 = vpack.c.b16 %v728, %v728
      %v730 = vrot.slane %v724, 4
      %v731 = vrot.slane %v729, 6
      %v732 = vsel %vm529, %v730, %v731
      %734 = vst [vmem:[#allocation3 + $0x60] sm:$0xf] %v732
      %v735 = vrot.slane %v712, 6
      %v736 = vrot.slane %v715, 7
      %v737 = vor.u32 %v735, %v736
      %v738 = vrot.slane %v737, 4
      %v740 = vshrl.u32 %v729, 16
      %v742 = vrot.slane %v740, 6
      %v743 = vshll.u32 %v729, 16
      %v745 = vrot.slane %v743, 7
      %v746 = vor.u32 %v742, %v745
      %v747 = vsel %vm545, %v738, %v746
      %749 = vst [vmem:[#allocation3 + $0x64] sm:$0xf] %v747
      %v750 = vrot.slane %v699, 7
      %v751 = vrot.slane %v750, 4
      %v752 = vrot.slane %v729, 7
      %v753 = vsel %vm563, %v751, %v752
      %755 = vst [vmem:[#allocation3 + $0x68] sm:$0xf] %v753
      %v756 = vld [vmem:[#allocation2 + $0x1e] sm:$0xff]
      %v757 = vld [vmem:[#allocation2 + $0x26] sm:$0xff]
      %v758 = vld [vmem:[#allocation2 + $0x2e] sm:$0xff]
      %v759 = vld [vmem:[#allocation2 + $0x36] sm:$0x3f]
      %v760 = vpack.c.bf16 %v757, %v756
      %v761 = vpack.c.bf16 %v759, %v758
      %762 = vst [vmem:[#allocation3 + $0x6c] sm:$0xf] %v760
      %v764 = vunpack.c.l.b16 %v760
      %v765 = vunpack.c.h.b16 %v760
      %v766 = vpack.c.b16 %v764, %v764
      %v767 = vpack.c.b16 %v765, %v765
      %v769 = vshrl.u32 %v766, 16
      %v771 = vrot.slane %v769, 4
      %v772 = vshll.u32 %v766, 16
      %v774 = vrot.slane %v772, 5
      %v775 = vor.u32 %v771, %v774
      %v776 = vrot.slane %v775, 4
      %v778 = vshll.u32 %v767, 16
      %v780 = vrot.slane %v778, 5
      %v781 = vsel %vm473, %v776, %v780
      %783 = vst [vmem:[#allocation3 + $0x70] sm:$0xf] %v781
      %v784 = vrot.slane %v766, 5
      %v785 = vrot.slane %v784, 4
      %v786 = vrot.slane %v767, 5
      %v787 = vsel %vm492, %v785, %v786
      %789 = vst [vmem:[#allocation3 + $0x74] sm:$0xf] %v787
      %v791 = vunpack.c.l.b16 %v761
      %v792 = vpack.c.b16 %v791, %v791
      %v793 = vrot.slane %v786, 4
      %v794 = vrot.slane %v792, 5
      %v795 = vsel %vm492, %v793, %v794
      %797 = vst [vmem:[#allocation3 + $0x78] sm:$0xf] %v795
      %v798 = vshrl.u32 %v767, 16
      %v800 = vrot.slane %v798, 5
      %v801 = vrot.slane %v778, 6
      %v802 = vor.u32 %v800, %v801
      %v803 = vrot.slane %v802, 4
      %v805 = vshrl.u32 %v792, 16
      %v807 = vrot.slane %v805, 5
      %v808 = vshll.u32 %v792, 16
      %v810 = vrot.slane %v808, 6
      %v811 = vor.u32 %v807, %v810
      %v812 = vsel %vm509, %v803, %v811
      %814 = vst [vmem:[#allocation3 + $0x7c] sm:$0xf] %v812
      %v815 = vrot.slane %v767, 6
      %v816 = vrot.slane %v815, 4
      %v817 = vrot.slane %v792, 6
      %v818 = vsel %vm529, %v816, %v817
      %820 = vst [vmem:[#allocation3 + $0x80] sm:$0xf] %v818
      %v821 = vunpack.c.h.b16 %v761
      %v822 = vpack.c.b16 %v821, %v821
      %v823 = vrot.slane %v817, 4
      %v824 = vrot.slane %v822, 6
      %v825 = vsel %vm529, %v823, %v824
      %827 = vst [vmem:[#allocation3 + $0x84] sm:$0xf] %v825
      %v828 = vrot.slane %v805, 6
      %v829 = vrot.slane %v808, 7
      %v830 = vor.u32 %v828, %v829
      %v831 = vrot.slane %v830, 4
      %v833 = vshrl.u32 %v822, 16
      %v835 = vrot.slane %v833, 6
      %v836 = vshll.u32 %v822, 16
      %v838 = vrot.slane %v836, 7
      %v839 = vor.u32 %v835, %v838
      %v840 = vsel %vm545, %v831, %v839
      %842 = vst [vmem:[#allocation3 + $0x88] sm:$0xf] %v840
      %v843 = vrot.slane %v792, 7
      %v844 = vrot.slane %v843, 4
      %v845 = vrot.slane %v822, 7
      %v846 = vsel %vm563, %v844, %v845
      %848 = vst [vmem:[#allocation3 + $0x8c] sm:$0xf] %v846
      %v849 = vld [vmem:[#allocation2 + $0x3c] sm:$0xff]
      %v850 = vld [vmem:[#allocation2 + $0x44] sm:$0xff]
      %v851 = vld [vmem:[#allocation2 + $0x4c] sm:$0xff]
      %v852 = vld [vmem:[#allocation2 + $0x54] sm:$0x3f]
      %v853 = vpack.c.bf16 %v850, %v849
      %v854 = vpack.c.bf16 %v852, %v851
      %855 = vst [vmem:[#allocation3 + $0x90] sm:$0xf] %v853
      %v857 = vunpack.c.l.b16 %v853
      %v858 = vunpack.c.h.b16 %v853
      %v859 = vpack.c.b16 %v857, %v857
      %v860 = vpack.c.b16 %v858, %v858
      %v862 = vshrl.u32 %v859, 16
      %v864 = vrot.slane %v862, 4
      %v865 = vshll.u32 %v859, 16
      %v867 = vrot.slane %v865, 5
      %v868 = vor.u32 %v864, %v867
      %v869 = vrot.slane %v868, 4
      %v871 = vshll.u32 %v860, 16
      %v873 = vrot.slane %v871, 5
      %v874 = vsel %vm473, %v869, %v873
      %876 = vst [vmem:[#allocation3 + $0x94] sm:$0xf] %v874
      %v877 = vrot.slane %v859, 5
      %v878 = vrot.slane %v877, 4
      %v879 = vrot.slane %v860, 5
      %v880 = vsel %vm492, %v878, %v879
      %882 = vst [vmem:[#allocation3 + $0x98] sm:$0xf] %v880
      %v884 = vunpack.c.l.b16 %v854
      %v885 = vpack.c.b16 %v884, %v884
      %v886 = vrot.slane %v879, 4
      %v887 = vrot.slane %v885, 5
      %v888 = vsel %vm492, %v886, %v887
      %890 = vst [vmem:[#allocation3 + $0x9c] sm:$0xf] %v888
      %v891 = vshrl.u32 %v860, 16
      %v893 = vrot.slane %v891, 5
      %v894 = vrot.slane %v871, 6
      %v895 = vor.u32 %v893, %v894
      %v896 = vrot.slane %v895, 4
      %v898 = vshrl.u32 %v885, 16
      %v900 = vrot.slane %v898, 5
      %v901 = vshll.u32 %v885, 16
      %v903 = vrot.slane %v901, 6
      %v904 = vor.u32 %v900, %v903
      %v905 = vsel %vm509, %v896, %v904
      %907 = vst [vmem:[#allocation3 + $0xa0] sm:$0xf] %v905
      %v908 = vrot.slane %v860, 6
      %v909 = vrot.slane %v908, 4
      %v910 = vrot.slane %v885, 6
      %v911 = vsel %vm529, %v909, %v910
      %913 = vst [vmem:[#allocation3 + $0xa4] sm:$0xf] %v911
      %v914 = vunpack.c.h.b16 %v854
      %v915 = vpack.c.b16 %v914, %v914
      %v916 = vrot.slane %v910, 4
      %v917 = vrot.slane %v915, 6
      %v918 = vsel %vm529, %v916, %v917
      %920 = vst [vmem:[#allocation3 + $0xa8] sm:$0xf] %v918
      %v921 = vrot.slane %v898, 6
      %v922 = vrot.slane %v901, 7
      %v923 = vor.u32 %v921, %v922
      %v924 = vrot.slane %v923, 4
      %v926 = vshrl.u32 %v915, 16
      %v928 = vrot.slane %v926, 6
      %v929 = vshll.u32 %v915, 16
      %v931 = vrot.slane %v929, 7
      %v932 = vor.u32 %v928, %v931
      %v933 = vsel %vm545, %v924, %v932
      %935 = vst [vmem:[#allocation3 + $0xac] sm:$0xf] %v933
      %v936 = vrot.slane %v885, 7
      %v937 = vrot.slane %v936, 4
      %v938 = vrot.slane %v915, 7
      %v939 = vsel %vm563, %v937, %v938
      %941 = vst [vmem:[#allocation3 + $0xb0] sm:$0xf] %v939
      %v942 = vld [vmem:[#allocation2 + $0x46] sm:$0xff]
      %v943 = vld [vmem:[#allocation2 + $0x4e] sm:$0xff]
      %v944 = vld [vmem:[#allocation2 + $0x56] sm:$0xff]
      %v945 = vld [vmem:[#allocation2 + $0x5e] sm:$0x3f]
      %v946 = vpack.c.bf16 %v943, %v942
      %v947 = vpack.c.bf16 %v945, %v944
      %948 = vst [vmem:[#allocation3 + $0xb4] sm:$0xf] %v946
      %v950 = vunpack.c.l.b16 %v946
      %v951 = vunpack.c.h.b16 %v946
      %v952 = vpack.c.b16 %v950, %v950
      %v953 = vpack.c.b16 %v951, %v951
      %v955 = vshrl.u32 %v952, 16
      %v957 = vrot.slane %v955, 4
      %v958 = vshll.u32 %v952, 16
      %v960 = vrot.slane %v958, 5
      %v961 = vor.u32 %v957, %v960
      %v962 = vrot.slane %v961, 4
      %v964 = vshll.u32 %v953, 16
      %v966 = vrot.slane %v964, 5
      %v967 = vsel %vm473, %v962, %v966
      %969 = vst [vmem:[#allocation3 + $0xb8] sm:$0xf] %v967
      %v970 = vrot.slane %v952, 5
      %v971 = vrot.slane %v970, 4
      %v972 = vrot.slane %v953, 5
      %v973 = vsel %vm492, %v971, %v972
      %975 = vst [vmem:[#allocation3 + $0xbc] sm:$0xf] %v973
      %v977 = vunpack.c.l.b16 %v947
      %v978 = vpack.c.b16 %v977, %v977
      %v979 = vrot.slane %v972, 4
      %v980 = vrot.slane %v978, 5
      %v981 = vsel %vm492, %v979, %v980
      %983 = vst [vmem:[#allocation3 + $0xc0] sm:$0xf] %v981
      %v984 = vshrl.u32 %v953, 16
      %v986 = vrot.slane %v984, 5
      %v987 = vrot.slane %v964, 6
      %v988 = vor.u32 %v986, %v987
      %v989 = vrot.slane %v988, 4
      %v991 = vshrl.u32 %v978, 16
      %v993 = vrot.slane %v991, 5
      %v994 = vshll.u32 %v978, 16
      %v996 = vrot.slane %v994, 6
      %v997 = vor.u32 %v993, %v996
      %v998 = vsel %vm509, %v989, %v997
      %1000 = vst [vmem:[#allocation3 + $0xc4] sm:$0xf] %v998
      %v1001 = vrot.slane %v953, 6
      %v1002 = vrot.slane %v1001, 4
      %v1003 = vrot.slane %v978, 6
      %v1004 = vsel %vm529, %v1002, %v1003
      %1006 = vst [vmem:[#allocation3 + $0xc8] sm:$0xf] %v1004
      %v1007 = vunpack.c.h.b16 %v947
      %v1008 = vpack.c.b16 %v1007, %v1007
      %v1009 = vrot.slane %v1003, 4
      %v1010 = vrot.slane %v1008, 6
      %v1011 = vsel %vm529, %v1009, %v1010
      %1013 = vst [vmem:[#allocation3 + $0xcc] sm:$0xf] %v1011
      %v1014 = vrot.slane %v991, 6
      %v1015 = vrot.slane %v994, 7
      %v1016 = vor.u32 %v1014, %v1015
      %v1017 = vrot.slane %v1016, 4
      %v1019 = vshrl.u32 %v1008, 16
      %v1021 = vrot.slane %v1019, 6
      %v1022 = vshll.u32 %v1008, 16
      %v1024 = vrot.slane %v1022, 7
      %v1025 = vor.u32 %v1021, %v1024
      %v1026 = vsel %vm545, %v1017, %v1025
      %1028 = vst [vmem:[#allocation3 + $0xd0] sm:$0xf] %v1026
      %v1029 = vrot.slane %v978, 7
      %v1030 = vrot.slane %v1029, 4
      %v1031 = vrot.slane %v1008, 7
      %v1032 = vsel %vm563, %v1030, %v1031
      %1034 = vst [vmem:[#allocation3 + $0xd4] sm:$0xf] %v1032
      %v1035 = vld [vmem:[#allocation2 + $0x50] sm:$0xff]
      %v1036 = vld [vmem:[#allocation2 + $0x58] sm:$0xff]
      %v1037 = vld [vmem:[#allocation2 + $0x60] sm:$0xff]
      %v1038 = vld [vmem:[#allocation2 + $0x68] sm:$0x3f]
      %v1039 = vpack.c.bf16 %v1036, %v1035
      %v1040 = vpack.c.bf16 %v1038, %v1037
      %1041 = vst [vmem:[#allocation3 + $0xd8] sm:$0xf] %v1039
      %v1043 = vunpack.c.l.b16 %v1039
      %v1044 = vunpack.c.h.b16 %v1039
      %v1045 = vpack.c.b16 %v1043, %v1043
      %v1046 = vpack.c.b16 %v1044, %v1044
      %v1048 = vshrl.u32 %v1045, 16
      %v1050 = vrot.slane %v1048, 4
      %v1051 = vshll.u32 %v1045, 16
      %v1053 = vrot.slane %v1051, 5
      %v1054 = vor.u32 %v1050, %v1053
      %v1055 = vrot.slane %v1054, 4
      %v1057 = vshll.u32 %v1046, 16
      %v1059 = vrot.slane %v1057, 5
      %v1060 = vsel %vm473, %v1055, %v1059
      %1062 = vst [vmem:[#allocation3 + $0xdc] sm:$0xf] %v1060
      %v1063 = vrot.slane %v1045, 5
      %v1064 = vrot.slane %v1063, 4
      %v1065 = vrot.slane %v1046, 5
      %v1066 = vsel %vm492, %v1064, %v1065
      %1068 = vst [vmem:[#allocation3 + $0xe0] sm:$0xf] %v1066
      %v1070 = vunpack.c.l.b16 %v1040
      %v1071 = vpack.c.b16 %v1070, %v1070
      %v1072 = vrot.slane %v1065, 4
      %v1073 = vrot.slane %v1071, 5
      %v1074 = vsel %vm492, %v1072, %v1073
      %1076 = vst [vmem:[#allocation3 + $0xe4] sm:$0xf] %v1074
      %v1077 = vshrl.u32 %v1046, 16
      %v1079 = vrot.slane %v1077, 5
      %v1080 = vrot.slane %v1057, 6
      %v1081 = vor.u32 %v1079, %v1080
      %v1082 = vrot.slane %v1081, 4
      %v1084 = vshrl.u32 %v1071, 16
      %v1086 = vrot.slane %v1084, 5
      %v1087 = vshll.u32 %v1071, 16
      %v1089 = vrot.slane %v1087, 6
      %v1090 = vor.u32 %v1086, %v1089
      %v1091 = vsel %vm509, %v1082, %v1090
      %1093 = vst [vmem:[#allocation3 + $0xe8] sm:$0xf] %v1091
      %v1094 = vrot.slane %v1046, 6
      %v1095 = vrot.slane %v1094, 4
      %v1096 = vrot.slane %v1071, 6
      %v1097 = vsel %vm529, %v1095, %v1096
      %1099 = vst [vmem:[#allocation3 + $0xec] sm:$0xf] %v1097
      %v1100 = vunpack.c.h.b16 %v1040
      %v1101 = vpack.c.b16 %v1100, %v1100
      %v1102 = vrot.slane %v1096, 4
      %v1103 = vrot.slane %v1101, 6
      %v1104 = vsel %vm529, %v1102, %v1103
      %1106 = vst [vmem:[#allocation3 + $0xf0] sm:$0xf] %v1104
      %v1107 = vrot.slane %v1084, 6
      %v1108 = vrot.slane %v1087, 7
      %v1109 = vor.u32 %v1107, %v1108
      %v1110 = vrot.slane %v1109, 4
      %v1112 = vshrl.u32 %v1101, 16
      %v1114 = vrot.slane %v1112, 6
      %v1115 = vshll.u32 %v1101, 16
      %v1117 = vrot.slane %v1115, 7
      %v1118 = vor.u32 %v1114, %v1117
      %v1119 = vsel %vm545, %v1110, %v1118
      %1121 = vst [vmem:[#allocation3 + $0xf4] sm:$0xf] %v1119
      %v1122 = vrot.slane %v1071, 7
      %v1123 = vrot.slane %v1122, 4
      %v1124 = vrot.slane %v1101, 7
      %v1125 = vsel %vm563, %v1123, %v1124
      %1127 = vst [vmem:[#allocation3 + $0xf8] sm:$0xf] %v1125
      %v1128 = vld [vmem:[#allocation2 + $0x5a] sm:$0xff]
      %v1129 = vld [vmem:[#allocation2 + $0x62] sm:$0xff]
      %v1130 = vld [vmem:[#allocation2 + $0x6a] sm:$0xff]
      %v1131 = vld [vmem:[#allocation2 + $0x72] sm:$0x3f]
      %v1132 = vpack.c.bf16 %v1129, %v1128
      %v1133 = vpack.c.bf16 %v1131, %v1130
      %1134 = vst [vmem:[#allocation3 + $0xfc] sm:$0xf] %v1132
      %v1136 = vunpack.c.l.b16 %v1132
      %v1137 = vunpack.c.h.b16 %v1132
      %v1138 = vpack.c.b16 %v1136, %v1136
      %v1139 = vpack.c.b16 %v1137, %v1137
      %v1141 = vshrl.u32 %v1138, 16
      %v1143 = vrot.slane %v1141, 4
      %v1144 = vshll.u32 %v1138, 16
      %v1146 = vrot.slane %v1144, 5
      %v1147 = vor.u32 %v1143, %v1146
      %v1148 = vrot.slane %v1147, 4
      %v1150 = vshll.u32 %v1139, 16
      %v1152 = vrot.slane %v1150, 5
      %v1153 = vsel %vm473, %v1148, %v1152
      %1155 = vst [vmem:[#allocation3 + $0x100] sm:$0xf] %v1153
      %v1156 = vrot.slane %v1138, 5
      %v1157 = vrot.slane %v1156, 4
      %v1158 = vrot.slane %v1139, 5
      %v1159 = vsel %vm492, %v1157, %v1158
      %1161 = vst [vmem:[#allocation3 + $0x104] sm:$0xf] %v1159
      %v1163 = vunpack.c.l.b16 %v1133
      %v1164 = vpack.c.b16 %v1163, %v1163
      %v1165 = vrot.slane %v1158, 4
      %v1166 = vrot.slane %v1164, 5
      %v1167 = vsel %vm492, %v1165, %v1166
      %1169 = vst [vmem:[#allocation3 + $0x108] sm:$0xf] %v1167
      %v1170 = vshrl.u32 %v1139, 16
      %v1172 = vrot.slane %v1170, 5
      %v1173 = vrot.slane %v1150, 6
      %v1174 = vor.u32 %v1172, %v1173
      %v1175 = vrot.slane %v1174, 4
      %v1177 = vshrl.u32 %v1164, 16
      %v1179 = vrot.slane %v1177, 5
      %v1180 = vshll.u32 %v1164, 16
      %v1182 = vrot.slane %v1180, 6
      %v1183 = vor.u32 %v1179, %v1182
      %v1184 = vsel %vm509, %v1175, %v1183
      %1186 = vst [vmem:[#allocation3 + $0x10c] sm:$0xf] %v1184
      %v1187 = vrot.slane %v1139, 6
      %v1188 = vrot.slane %v1187, 4
      %v1189 = vrot.slane %v1164, 6
      %v1190 = vsel %vm529, %v1188, %v1189
      %1192 = vst [vmem:[#allocation3 + $0x110] sm:$0xf] %v1190
      %v1193 = vunpack.c.h.b16 %v1133
      %v1194 = vpack.c.b16 %v1193, %v1193
      %v1195 = vrot.slane %v1189, 4
      %v1196 = vrot.slane %v1194, 6
      %v1197 = vsel %vm529, %v1195, %v1196
      %1199 = vst [vmem:[#allocation3 + $0x114] sm:$0xf] %v1197
      %v1200 = vrot.slane %v1177, 6
      %v1201 = vrot.slane %v1180, 7
      %v1202 = vor.u32 %v1200, %v1201
      %v1203 = vrot.slane %v1202, 4
      %v1205 = vshrl.u32 %v1194, 16
      %v1207 = vrot.slane %v1205, 6
      %v1208 = vshll.u32 %v1194, 16
      %v1210 = vrot.slane %v1208, 7
      %v1211 = vor.u32 %v1207, %v1210
      %v1212 = vsel %vm545, %v1203, %v1211
      %1214 = vst [vmem:[#allocation3 + $0x118] sm:$0xf] %v1212
      %v1215 = vrot.slane %v1164, 7
      %v1216 = vrot.slane %v1215, 4
      %v1217 = vrot.slane %v1194, 7
      %v1218 = vsel %vm563, %v1216, %v1217
      %1220 = vst [vmem:[#allocation3 + $0x11c] sm:$0xf] %v1218
      %v1221 = vld [vmem:[#allocation3] sm:$0xff]
      %v1222 = vld [vmem:[#allocation3 + $0x8] sm:$0xff]
      %v1223 = vld [vmem:[#allocation3 + $0x10] sm:$0xff]
      %v1224 = vld [vmem:[#allocation3 + $0x18] sm:$0xff]
      %v1225 = vld [vmem:[#allocation3 + $0x20] sm:$0xf]
      %v1226 = vld [vmem:[#allocation3 + $0x24] sm:$0xff]
      %v1227 = vld [vmem:[#allocation3 + $0x2c] sm:$0xff]
      %v1228 = vld [vmem:[#allocation3 + $0x34] sm:$0xff]
      %v1229 = vld [vmem:[#allocation3 + $0x3c] sm:$0xff]
      %v1230 = vld [vmem:[#allocation3 + $0x44] sm:$0xf]
      %v1231 = vld [vmem:[#allocation3 + $0x48] sm:$0xff]
      %v1232 = vld [vmem:[#allocation3 + $0x50] sm:$0xff]
      %v1233 = vld [vmem:[#allocation3 + $0x58] sm:$0xff]
      %v1234 = vld [vmem:[#allocation3 + $0x60] sm:$0xff]
      %v1235 = vld [vmem:[#allocation3 + $0x68] sm:$0xf]
      %v1236 = vld [vmem:[#allocation3 + $0x6c] sm:$0xff]
      %v1237 = vld [vmem:[#allocation3 + $0x74] sm:$0xff]
      %v1238 = vld [vmem:[#allocation3 + $0x7c] sm:$0xff]
      %v1239 = vld [vmem:[#allocation3 + $0x84] sm:$0xff]
      %v1240 = vld [vmem:[#allocation3 + $0x8c] sm:$0xf]
      %v1241 = vld [vmem:[#allocation3 + $0x90] sm:$0xff]
      %v1242 = vld [vmem:[#allocation3 + $0x98] sm:$0xff]
      %v1243 = vld [vmem:[#allocation3 + $0xa0] sm:$0xff]
      %v1244 = vld [vmem:[#allocation3 + $0xa8] sm:$0xff]
      %v1245 = vld [vmem:[#allocation3 + $0xb0] sm:$0xf]
      %v1246 = vld [vmem:[#allocation3 + $0xb4] sm:$0xff]
      %v1247 = vld [vmem:[#allocation3 + $0xbc] sm:$0xff]
      %v1248 = vld [vmem:[#allocation3 + $0xc4] sm:$0xff]
      %v1249 = vld [vmem:[#allocation3 + $0xcc] sm:$0xff]
      %v1250 = vld [vmem:[#allocation3 + $0xd4] sm:$0xf]
      %v1251 = vld [vmem:[#allocation3 + $0xd8] sm:$0xff]
      %v1252 = vld [vmem:[#allocation3 + $0xe0] sm:$0xff]
      %v1253 = vld [vmem:[#allocation3 + $0xe8] sm:$0xff]
      %v1254 = vld [vmem:[#allocation3 + $0xf0] sm:$0xff]
      %v1255 = vld [vmem:[#allocation3 + $0xf8] sm:$0xf]
      %v1256 = vld [vmem:[#allocation3 + $0xfc] sm:$0xff]
      %v1257 = vld [vmem:[#allocation3 + $0x104] sm:$0xff]
      %v1258 = vld [vmem:[#allocation3 + $0x10c] sm:$0xff]
      %v1259 = vld [vmem:[#allocation3 + $0x114] sm:$0xff]
      %v1260 = vld [vmem:[#allocation3 + $0x11c] sm:$0xf]
      %v1261 = vld [vmem:[%s3] sm:$0xf]
      %v1262 = vld [vmem:[%s3 + $0x4] sm:$0xf]
      %v1263 = vld [vmem:[%s3 + $0x8] sm:$0xf]
      %v1264 = vld [vmem:[%s3 + $0xc] sm:$0xf]
      %v1265 = vld [vmem:[%s3 + $0x10] sm:$0xf]
      %v1266 = vld [vmem:[%s3 + $0x14] sm:$0xf]
      %v1267 = vld [vmem:[%s3 + $0x18] sm:$0xf]
      %v1268 = vld [vmem:[%s3 + $0x1c] sm:$0xf]
      %v1269 = vld [vmem:[%s3 + $0x20] sm:$0xf]
      %v1270 = vld [vmem:[%s3 + $0x24] sm:$0xf]
      %v1271 = vld [vmem:[%s3 + $0x28] sm:$0xf]
      %v1272 = vld [vmem:[%s3 + $0x2c] sm:$0xf]
      %v1273 = vld [vmem:[%s3 + $0x30] sm:$0xf]
      %v1274 = vld [vmem:[%s3 + $0x34] sm:$0xf]
      %v1275 = vld [vmem:[%s3 + $0x38] sm:$0xf]
      %v1276 = vld [vmem:[%s3 + $0x3c] sm:$0xf]
      %v1277 = vld [vmem:[%s3 + $0x40] sm:$0xf]
      %v1278 = vld [vmem:[%s3 + $0x44] sm:$0xf]
      %v1279 = vld [vmem:[%s3 + $0x48] sm:$0xf]
      %v1280 = vld [vmem:[%s3 + $0x4c] sm:$0xf]
      %v1281 = vld [vmem:[%s3 + $0x50] sm:$0xf]
      %v1282 = vld [vmem:[%s3 + $0x54] sm:$0xf]
      %v1283 = vld [vmem:[%s3 + $0x58] sm:$0xf]
      %v1284 = vld [vmem:[%s3 + $0x5c] sm:$0xf]
      %v1285 = vld [vmem:[%s3 + $0x60] sm:$0xf]
      %v1286 = vld [vmem:[%s3 + $0x64] sm:$0xf]
      %v1287 = vld [vmem:[%s3 + $0x68] sm:$0xf]
      %v1288 = vld [vmem:[%s3 + $0x6c] sm:$0xf]
      %v1289 = vld [vmem:[%s3 + $0x70] sm:$0xf]
      %v1290 = vld [vmem:[%s3 + $0x74] sm:$0xf]
      %v1291 = vld [vmem:[%s3 + $0x78] sm:$0xf]
      %v1292 = vld [vmem:[%s3 + $0x7c] sm:$0xf]
      %v1293 = vld [vmem:[%s3 + $0x80] sm:$0xf]
      %v1294 = vld [vmem:[%s3 + $0x84] sm:$0xf]
      %v1295 = vld [vmem:[%s3 + $0x88] sm:$0xf]
      %v1296 = vld [vmem:[%s3 + $0x8c] sm:$0xf]
      %v1297 = vld [vmem:[%s3 + $0x90] sm:$0xf]
      %v1298 = vld [vmem:[%s3 + $0x94] sm:$0xf]
      %v1299 = vld [vmem:[%s3 + $0x98] sm:$0xf]
      %v1300 = vld [vmem:[%s3 + $0x9c] sm:$0xf]
      %v1301 = vld [vmem:[%s3 + $0xa0] sm:$0xf]
      %v1302 = vld [vmem:[%s3 + $0xa4] sm:$0xf]
      %v1303 = vld [vmem:[%s3 + $0xa8] sm:$0xf]
      %v1304 = vld [vmem:[%s3 + $0xac] sm:$0xf]
      %v1305 = vld [vmem:[%s3 + $0xb0] sm:$0xf]
      %v1306 = vld [vmem:[%s3 + $0xb4] sm:$0xf]
      %v1307 = vld [vmem:[%s3 + $0xb8] sm:$0xf]
      %v1308 = vld [vmem:[%s3 + $0xbc] sm:$0xf]
      %v1309 = vld [vmem:[%s3 + $0xc0] sm:$0xf]
      %v1310 = vld [vmem:[%s3 + $0xc4] sm:$0xf]
      %v1311 = vld [vmem:[%s3 + $0xc8] sm:$0xf]
      %v1312 = vld [vmem:[%s3 + $0xcc] sm:$0xf]
      %v1313 = vld [vmem:[%s3 + $0xd0] sm:$0xf]
      %v1314 = vld [vmem:[%s3 + $0xd4] sm:$0xf]
      %v1315 = vld [vmem:[%s3 + $0xd8] sm:$0xf]
      %v1316 = vld [vmem:[%s3 + $0xdc] sm:$0xf]
      %v1317 = vld [vmem:[%s3 + $0xe0] sm:$0xf]
      %v1318 = vld [vmem:[%s3 + $0xe4] sm:$0xf]
      %v1319 = vld [vmem:[%s3 + $0xe8] sm:$0xf]
      %v1320 = vld [vmem:[%s3 + $0xec] sm:$0xf]
      %v1321 = vld [vmem:[%s3 + $0xf0] sm:$0xf]
      %v1322 = vld [vmem:[%s3 + $0xf4] sm:$0xf]
      %v1323 = vld [vmem:[%s3 + $0xf8] sm:$0xf]
      %v1324 = vld [vmem:[%s3 + $0xfc] sm:$0xf]
      %v1325 = vld [vmem:[%s3 + $0x100] sm:$0xf]
      %v1326 = vld [vmem:[%s3 + $0x104] sm:$0xf]
      %v1327 = vld [vmem:[%s3 + $0x108] sm:$0xf]
      %v1328 = vld [vmem:[%s3 + $0x10c] sm:$0xf]
      %v1329 = vld [vmem:[%s3 + $0x110] sm:$0xf]
      %v1330 = vld [vmem:[%s3 + $0x114] sm:$0xf]
      %v1331 = vld [vmem:[%s3 + $0x118] sm:$0xf]
      %v1332 = vld [vmem:[%s3 + $0x11c] sm:$0xf]
      %v1333 = vld [vmem:[%s3 + $0x120] sm:$0xf]
      %v1334 = vld [vmem:[%s3 + $0x124] sm:$0xf]
      %v1335 = vld [vmem:[%s3 + $0x128] sm:$0xf]
      %v1336 = vld [vmem:[%s3 + $0x12c] sm:$0xf]
      %v1337 = vld [vmem:[%s3 + $0x130] sm:$0xf]
      %v1338 = vld [vmem:[%s3 + $0x134] sm:$0xf]
      %v1339 = vld [vmem:[%s3 + $0x138] sm:$0xf]
      %v1340 = vld [vmem:[%s3 + $0x13c] sm:$0xf]
      %v1341 = vld [vmem:[%s3 + $0x140] sm:$0xf]
      %v1342 = vld [vmem:[%s3 + $0x144] sm:$0xf]
      %v1343 = vld [vmem:[%s3 + $0x148] sm:$0xf]
      %v1344 = vld [vmem:[%s3 + $0x14c] sm:$0xf]
      %v1345 = vld [vmem:[%s3 + $0x150] sm:$0xf]
      %v1346 = vld [vmem:[%s3 + $0x154] sm:$0xf]
      %v1347 = vld [vmem:[%s3 + $0x158] sm:$0xf]
      %v1348 = vld [vmem:[%s3 + $0x15c] sm:$0xf]
      %v1349 = vld [vmem:[%s3 + $0x160] sm:$0xf]
      %v1350 = vld [vmem:[%s3 + $0x164] sm:$0xf]
      %v1351 = vld [vmem:[%s3 + $0x168] sm:$0xf]
      %v1352 = vld [vmem:[%s3 + $0x16c] sm:$0xf]
      %v1353 = vld [vmem:[%s3 + $0x170] sm:$0xf]
      %v1354 = vld [vmem:[%s3 + $0x174] sm:$0xf]
      %v1355 = vld [vmem:[%s3 + $0x178] sm:$0xf]
      %v1356 = vld [vmem:[%s3 + $0x17c] sm:$0xf]
      %v1357 = vld [vmem:[%s3 + $0x180] sm:$0xf]
      %v1358 = vld [vmem:[%s3 + $0x184] sm:$0xf]
      %v1359 = vld [vmem:[%s3 + $0x188] sm:$0xf]
      %v1360 = vld [vmem:[%s3 + $0x18c] sm:$0xf]
      %v1361 = vld [vmem:[%s3 + $0x190] sm:$0xf]
      %v1362 = vld [vmem:[%s3 + $0x194] sm:$0xf]
      %v1363 = vld [vmem:[%s3 + $0x198] sm:$0xf]
      %v1364 = vld [vmem:[%s3 + $0x19c] sm:$0xf]
      %v1365 = vld [vmem:[%s3 + $0x1a0] sm:$0xf]
      %v1366 = vld [vmem:[%s3 + $0x1a4] sm:$0xf]
      %v1367 = vld [vmem:[%s3 + $0x1a8] sm:$0xf]
      %v1368 = vld [vmem:[%s3 + $0x1ac] sm:$0xf]
      %v1369 = vld [vmem:[%s3 + $0x1b0] sm:$0xf]
      %v1370 = vld [vmem:[%s3 + $0x1b4] sm:$0xf]
      %v1371 = vld [vmem:[%s3 + $0x1b8] sm:$0xf]
      %v1372 = vld [vmem:[%s3 + $0x1bc] sm:$0xf]
      %v1373 = vld [vmem:[%s3 + $0x1c0] sm:$0xf]
      %v1374 = vld [vmem:[%s3 + $0x1c4] sm:$0xf]
      %v1375 = vld [vmem:[%s3 + $0x1c8] sm:$0xf]
      %v1376 = vld [vmem:[%s3 + $0x1cc] sm:$0xf]
      %v1377 = vld [vmem:[%s3 + $0x1d0] sm:$0xf]
      %v1378 = vld [vmem:[%s3 + $0x1d4] sm:$0xf]
      %v1379 = vld [vmem:[%s3 + $0x1d8] sm:$0xf]
      %v1380 = vld [vmem:[%s3 + $0x1dc] sm:$0xf]
      %v1381 = vld [vmem:[%s3 + $0x1e0] sm:$0xf]
      %v1382 = vld [vmem:[%s3 + $0x1e4] sm:$0xf]
      %v1383 = vld [vmem:[%s3 + $0x1e8] sm:$0xf]
      %v1384 = vld [vmem:[%s3 + $0x1ec] sm:$0xf]
      %v1385 = vld [vmem:[%s3 + $0x1f0] sm:$0xf]
      %v1386 = vld [vmem:[%s3 + $0x1f4] sm:$0xf]
      %v1387 = vld [vmem:[%s3 + $0x1f8] sm:$0xf]
      %v1388 = vld [vmem:[%s3 + $0x1fc] sm:$0xf]
      %v1389 = vld [vmem:[%s3 + $0x200] sm:$0xf]
      %v1390 = vld [vmem:[%s3 + $0x204] sm:$0xf]
      %v1391 = vld [vmem:[%s3 + $0x208] sm:$0xf]
      %v1392 = vld [vmem:[%s3 + $0x20c] sm:$0xf]
      %v1393 = vld [vmem:[%s3 + $0x210] sm:$0xf]
      %v1394 = vld [vmem:[%s3 + $0x214] sm:$0xf]
      %v1395 = vld [vmem:[%s3 + $0x218] sm:$0xf]
      %v1396 = vld [vmem:[%s3 + $0x21c] sm:$0xf]
      %v1397 = vld [vmem:[%s3 + $0x220] sm:$0xf]
      %v1398 = vld [vmem:[%s3 + $0x224] sm:$0xf]
      %v1399 = vld [vmem:[%s3 + $0x228] sm:$0xf]
      %v1400 = vld [vmem:[%s3 + $0x22c] sm:$0xf]
      %v1401 = vld [vmem:[%s3 + $0x230] sm:$0xf]
      %v1402 = vld [vmem:[%s3 + $0x234] sm:$0xf]
      %v1403 = vld [vmem:[%s3 + $0x238] sm:$0xf]
      %v1404 = vld [vmem:[%s3 + $0x23c] sm:$0xf]
      %v1405 = vld [vmem:[%s4] sm:$0x1]
      %v1407 = vlaneseq
      %v1408 = vshrl.u32 %v1407, 7
      %v1409 = vsub.s32 0, %v1408
      %v1410 = vrot.slane %v1405, %v1409
      %v1452 = vunpack.c.l.b16 %v1221
      %v1453 = vunpack.c.h.b16 %v1221
      %v1454 = vunpack.c.l.b16 %v1222
      %v1455 = vunpack.c.h.b16 %v1222
      %v1456 = vunpack.c.l.b16 %v1223
      %v1457 = vunpack.c.h.b16 %v1223
      %v1458 = vunpack.c.l.b16 %v1224
      %v1459 = vunpack.c.h.b16 %v1224
      %v1460 = vunpack.c.l.b16 %v1225
      %v1461 = vunpack.c.l.b16 %v1226
      %v1462 = vunpack.c.h.b16 %v1226
      %v1463 = vunpack.c.l.b16 %v1227
      %v1464 = vunpack.c.h.b16 %v1227
      %v1465 = vunpack.c.l.b16 %v1228
      %v1466 = vunpack.c.h.b16 %v1228
      %v1467 = vunpack.c.l.b16 %v1229
      %v1468 = vunpack.c.h.b16 %v1229
      %v1469 = vunpack.c.l.b16 %v1230
      %v1470 = vunpack.c.l.b16 %v1231
      %v1471 = vunpack.c.h.b16 %v1231
      %v1472 = vunpack.c.l.b16 %v1232
      %v1473 = vunpack.c.h.b16 %v1232
      %v1474 = vunpack.c.l.b16 %v1233
      %v1475 = vunpack.c.h.b16 %v1233
      %v1476 = vunpack.c.l.b16 %v1234
      %v1477 = vunpack.c.h.b16 %v1234
      %v1478 = vunpack.c.l.b16 %v1235
      %v1479 = vunpack.c.l.b16 %v1236
      %v1480 = vunpack.c.h.b16 %v1236
      %v1481 = vunpack.c.l.b16 %v1237
      %v1482 = vunpack.c.h.b16 %v1237
      %v1483 = vunpack.c.l.b16 %v1238
      %v1484 = vunpack.c.h.b16 %v1238
      %v1485 = vunpack.c.l.b16 %v1239
      %v1486 = vunpack.c.h.b16 %v1239
      %v1487 = vunpack.c.l.b16 %v1240
      %v1488 = vunpack.c.l.b16 %v1241
      %v1489 = vunpack.c.h.b16 %v1241
      %v1490 = vunpack.c.l.b16 %v1242
      %v1491 = vunpack.c.h.b16 %v1242
      %v1492 = vunpack.c.l.b16 %v1243
      %v1493 = vunpack.c.h.b16 %v1243
      %v1494 = vunpack.c.l.b16 %v1244
      %v1495 = vunpack.c.h.b16 %v1244
      %v1496 = vunpack.c.l.b16 %v1245
      %v1497 = vunpack.c.l.b16 %v1246
      %v1498 = vunpack.c.h.b16 %v1246
      %v1499 = vunpack.c.l.b16 %v1247
      %v1500 = vunpack.c.h.b16 %v1247
      %v1501 = vunpack.c.l.b16 %v1248
      %v1502 = vunpack.c.h.b16 %v1248
      %v1503 = vunpack.c.l.b16 %v1249
      %v1504 = vunpack.c.h.b16 %v1249
      %v1505 = vunpack.c.l.b16 %v1250
      %v1506 = vunpack.c.l.b16 %v1251
      %v1507 = vunpack.c.h.b16 %v1251
      %v1508 = vunpack.c.l.b16 %v1252
      %v1509 = vunpack.c.h.b16 %v1252
      %v1510 = vunpack.c.l.b16 %v1253
      %v1511 = vunpack.c.h.b16 %v1253
      %v1512 = vunpack.c.l.b16 %v1254
      %v1513 = vunpack.c.h.b16 %v1254
      %v1514 = vunpack.c.l.b16 %v1255
      %v1515 = vunpack.c.l.b16 %v1256
      %v1516 = vunpack.c.h.b16 %v1256
      %v1517 = vunpack.c.l.b16 %v1257
      %v1518 = vunpack.c.h.b16 %v1257
      %v1519 = vunpack.c.l.b16 %v1258
      %v1520 = vunpack.c.h.b16 %v1258
      %v1521 = vunpack.c.l.b16 %v1259
      %v1522 = vunpack.c.h.b16 %v1259
      %v1523 = vunpack.c.l.b16 %v1260
      %v1524 = vpack.c.b16 %v1461, %v1452
      %v1525 = vpack.c.b16 %v1462, %v1453
      %v1526 = vpack.c.b16 %v1463, %v1454
      %v1527 = vpack.c.b16 %v1464, %v1455
      %v1528 = vpack.c.b16 %v1465, %v1456
      %v1529 = vpack.c.b16 %v1466, %v1457
      %v1530 = vpack.c.b16 %v1467, %v1458
      %v1531 = vpack.c.b16 %v1468, %v1459
      %v1532 = vpack.c.b16 %v1469, %v1460
      %v1533 = vpack.c.b16 %v1479, %v1470
      %v1534 = vpack.c.b16 %v1480, %v1471
      %v1535 = vpack.c.b16 %v1481, %v1472
      %v1536 = vpack.c.b16 %v1482, %v1473
      %v1537 = vpack.c.b16 %v1483, %v1474
      %v1538 = vpack.c.b16 %v1484, %v1475
      %v1539 = vpack.c.b16 %v1485, %v1476
      %v1540 = vpack.c.b16 %v1486, %v1477
      %v1541 = vpack.c.b16 %v1487, %v1478
      %v1542 = vpack.c.b16 %v1497, %v1488
      %v1543 = vpack.c.b16 %v1498, %v1489
      %v1544 = vpack.c.b16 %v1499, %v1490
      %v1545 = vpack.c.b16 %v1500, %v1491
      %v1546 = vpack.c.b16 %v1501, %v1492
      %v1547 = vpack.c.b16 %v1502, %v1493
      %v1548 = vpack.c.b16 %v1503, %v1494
      %v1549 = vpack.c.b16 %v1504, %v1495
      %v1550 = vpack.c.b16 %v1505, %v1496
      %v1551 = vpack.c.b16 %v1515, %v1506
      %v1552 = vpack.c.b16 %v1516, %v1507
      %v1553 = vpack.c.b16 %v1517, %v1508
      %v1554 = vpack.c.b16 %v1518, %v1509
      %v1555 = vpack.c.b16 %v1519, %v1510
      %v1556 = vpack.c.b16 %v1520, %v1511
      %v1557 = vpack.c.b16 %v1521, %v1512
      %v1558 = vpack.c.b16 %v1522, %v1513
      %v1559 = vpack.c.b16 %v1523, %v1514
      %v1740 = vunpack.c.l.b16 %v1261
      %v1741 = vunpack.c.l.b16 %v1262
      %v1742 = vunpack.c.l.b16 %v1263
      %v1743 = vunpack.c.l.b16 %v1264
      %v1744 = vunpack.c.l.b16 %v1265
      %v1745 = vunpack.c.l.b16 %v1266
      %v1746 = vunpack.c.l.b16 %v1267
      %v1747 = vunpack.c.l.b16 %v1268
      %v1748 = vunpack.c.l.b16 %v1269
      %v1749 = vunpack.c.l.b16 %v1270
      %v1750 = vunpack.c.l.b16 %v1271
      %v1751 = vunpack.c.l.b16 %v1272
      %v1752 = vunpack.c.l.b16 %v1273
      %v1753 = vunpack.c.l.b16 %v1274
      %v1754 = vunpack.c.l.b16 %v1275
      %v1755 = vunpack.c.l.b16 %v1276
      %v1756 = vunpack.c.l.b16 %v1277
      %v1757 = vunpack.c.l.b16 %v1278
      %v1758 = vunpack.c.l.b16 %v1279
      %v1759 = vunpack.c.l.b16 %v1280
      %v1760 = vunpack.c.l.b16 %v1281
      %v1761 = vunpack.c.l.b16 %v1282
      %v1762 = vunpack.c.l.b16 %v1283
      %v1763 = vunpack.c.l.b16 %v1284
      %v1764 = vunpack.c.l.b16 %v1285
      %v1765 = vunpack.c.l.b16 %v1286
      %v1766 = vunpack.c.l.b16 %v1287
      %v1767 = vunpack.c.l.b16 %v1288
      %v1768 = vunpack.c.l.b16 %v1289
      %v1769 = vunpack.c.l.b16 %v1290
      %v1770 = vunpack.c.l.b16 %v1291
      %v1771 = vunpack.c.l.b16 %v1292
      %v1772 = vunpack.c.l.b16 %v1293
      %v1773 = vunpack.c.l.b16 %v1294
      %v1774 = vunpack.c.l.b16 %v1295
      %v1775 = vunpack.c.l.b16 %v1296
      %v1776 = vunpack.c.l.b16 %v1297
      %v1777 = vunpack.c.l.b16 %v1298
      %v1778 = vunpack.c.l.b16 %v1299
      %v1779 = vunpack.c.l.b16 %v1300
      %v1780 = vunpack.c.l.b16 %v1301
      %v1781 = vunpack.c.l.b16 %v1302
      %v1782 = vunpack.c.l.b16 %v1303
      %v1783 = vunpack.c.l.b16 %v1304
      %v1784 = vunpack.c.l.b16 %v1305
      %v1785 = vunpack.c.l.b16 %v1306
      %v1786 = vunpack.c.l.b16 %v1307
      %v1787 = vunpack.c.l.b16 %v1308
      %v1788 = vunpack.c.l.b16 %v1309
      %v1789 = vunpack.c.l.b16 %v1310
      %v1790 = vunpack.c.l.b16 %v1311
      %v1791 = vunpack.c.l.b16 %v1312
      %v1792 = vunpack.c.l.b16 %v1313
      %v1793 = vunpack.c.l.b16 %v1314
      %v1794 = vunpack.c.l.b16 %v1315
      %v1795 = vunpack.c.l.b16 %v1316
      %v1796 = vunpack.c.l.b16 %v1317
      %v1797 = vunpack.c.l.b16 %v1318
      %v1798 = vunpack.c.l.b16 %v1319
      %v1799 = vunpack.c.l.b16 %v1320
      %v1800 = vunpack.c.l.b16 %v1321
      %v1801 = vunpack.c.l.b16 %v1322
      %v1802 = vunpack.c.l.b16 %v1323
      %v1803 = vunpack.c.l.b16 %v1324
      %v1804 = vunpack.c.l.b16 %v1325
      %v1805 = vunpack.c.l.b16 %v1326
      %v1806 = vunpack.c.l.b16 %v1327
      %v1807 = vunpack.c.l.b16 %v1328
      %v1808 = vunpack.c.l.b16 %v1329
      %v1809 = vunpack.c.l.b16 %v1330
      %v1810 = vunpack.c.l.b16 %v1331
      %v1811 = vunpack.c.l.b16 %v1332
      %v1812 = vunpack.c.l.b16 %v1333
      %v1813 = vunpack.c.l.b16 %v1334
      %v1814 = vunpack.c.l.b16 %v1335
      %v1815 = vunpack.c.l.b16 %v1336
      %v1816 = vunpack.c.l.b16 %v1337
      %v1817 = vunpack.c.l.b16 %v1338
      %v1818 = vunpack.c.l.b16 %v1339
      %v1819 = vunpack.c.l.b16 %v1340
      %v1820 = vunpack.c.l.b16 %v1341
      %v1821 = vunpack.c.l.b16 %v1342
      %v1822 = vunpack.c.l.b16 %v1343
      %v1823 = vunpack.c.l.b16 %v1344
      %v1824 = vunpack.c.l.b16 %v1345
      %v1825 = vunpack.c.l.b16 %v1346
      %v1826 = vunpack.c.l.b16 %v1347
      %v1827 = vunpack.c.l.b16 %v1348
      %v1828 = vunpack.c.l.b16 %v1349
      %v1829 = vunpack.c.l.b16 %v1350
      %v1830 = vunpack.c.l.b16 %v1351
      %v1831 = vunpack.c.l.b16 %v1352
      %v1832 = vunpack.c.l.b16 %v1353
      %v1833 = vunpack.c.l.b16 %v1354
      %v1834 = vunpack.c.l.b16 %v1355
      %v1835 = vunpack.c.l.b16 %v1356
      %v1836 = vunpack.c.l.b16 %v1357
      %v1837 = vunpack.c.l.b16 %v1358
      %v1838 = vunpack.c.l.b16 %v1359
      %v1839 = vunpack.c.l.b16 %v1360
      %v1840 = vunpack.c.l.b16 %v1361
      %v1841 = vunpack.c.l.b16 %v1362
      %v1842 = vunpack.c.l.b16 %v1363
      %v1843 = vunpack.c.l.b16 %v1364
      %v1844 = vunpack.c.l.b16 %v1365
      %v1845 = vunpack.c.l.b16 %v1366
      %v1846 = vunpack.c.l.b16 %v1367
      %v1847 = vunpack.c.l.b16 %v1368
      %v1848 = vunpack.c.l.b16 %v1369
      %v1849 = vunpack.c.l.b16 %v1370
      %v1850 = vunpack.c.l.b16 %v1371
      %v1851 = vunpack.c.l.b16 %v1372
      %v1852 = vunpack.c.l.b16 %v1373
      %v1853 = vunpack.c.l.b16 %v1374
      %v1854 = vunpack.c.l.b16 %v1375
      %v1855 = vunpack.c.l.b16 %v1376
      %v1856 = vunpack.c.l.b16 %v1377
      %v1857 = vunpack.c.l.b16 %v1378
      %v1858 = vunpack.c.l.b16 %v1379
      %v1859 = vunpack.c.l.b16 %v1380
      %v1860 = vunpack.c.l.b16 %v1381
      %v1861 = vunpack.c.l.b16 %v1382
      %v1862 = vunpack.c.l.b16 %v1383
      %v1863 = vunpack.c.l.b16 %v1384
      %v1864 = vunpack.c.l.b16 %v1385
      %v1865 = vunpack.c.l.b16 %v1386
      %v1866 = vunpack.c.l.b16 %v1387
      %v1867 = vunpack.c.l.b16 %v1388
      %v1868 = vunpack.c.l.b16 %v1389
      %v1869 = vunpack.c.l.b16 %v1390
      %v1870 = vunpack.c.l.b16 %v1391
      %v1871 = vunpack.c.l.b16 %v1392
      %v1872 = vunpack.c.l.b16 %v1393
      %v1873 = vunpack.c.l.b16 %v1394
      %v1874 = vunpack.c.l.b16 %v1395
      %v1875 = vunpack.c.l.b16 %v1396
      %v1876 = vunpack.c.l.b16 %v1397
      %v1877 = vunpack.c.l.b16 %v1398
      %v1878 = vunpack.c.l.b16 %v1399
      %v1879 = vunpack.c.l.b16 %v1400
      %v1880 = vunpack.c.l.b16 %v1401
      %v1881 = vunpack.c.l.b16 %v1402
      %v1882 = vunpack.c.l.b16 %v1403
      %v1883 = vunpack.c.l.b16 %v1404
      %v1884 = vpack.c.b16 %v1741, %v1740
      %v1885 = vpack.c.b16 %v1743, %v1742
      %v1886 = vpack.c.b16 %v1745, %v1744
      %v1887 = vpack.c.b16 %v1747, %v1746
      %v1888 = vpack.c.b16 %v1749, %v1748
      %v1889 = vpack.c.b16 %v1751, %v1750
      %v1890 = vpack.c.b16 %v1753, %v1752
      %v1891 = vpack.c.b16 %v1755, %v1754
      %v1892 = vpack.c.b16 %v1757, %v1756
      %v1893 = vpack.c.b16 %v1759, %v1758
      %v1894 = vpack.c.b16 %v1761, %v1760
      %v1895 = vpack.c.b16 %v1763, %v1762
      %v1896 = vpack.c.b16 %v1765, %v1764
      %v1897 = vpack.c.b16 %v1767, %v1766
      %v1898 = vpack.c.b16 %v1769, %v1768
      %v1899 = vpack.c.b16 %v1771, %v1770
      %v1900 = vpack.c.b16 %v1773, %v1772
      %v1901 = vpack.c.b16 %v1775, %v1774
      %v1902 = vpack.c.b16 %v1777, %v1776
      %v1903 = vpack.c.b16 %v1779, %v1778
      %v1904 = vpack.c.b16 %v1781, %v1780
      %v1905 = vpack.c.b16 %v1783, %v1782
      %v1906 = vpack.c.b16 %v1785, %v1784
      %v1907 = vpack.c.b16 %v1787, %v1786
      %v1908 = vpack.c.b16 %v1789, %v1788
      %v1909 = vpack.c.b16 %v1791, %v1790
      %v1910 = vpack.c.b16 %v1793, %v1792
      %v1911 = vpack.c.b16 %v1795, %v1794
      %v1912 = vpack.c.b16 %v1797, %v1796
      %v1913 = vpack.c.b16 %v1799, %v1798
      %v1914 = vpack.c.b16 %v1801, %v1800
      %v1915 = vpack.c.b16 %v1803, %v1802
      %v1916 = vpack.c.b16 %v1805, %v1804
      %v1917 = vpack.c.b16 %v1807, %v1806
      %v1918 = vpack.c.b16 %v1809, %v1808
      %v1919 = vpack.c.b16 %v1811, %v1810
      %v1920 = vpack.c.b16 %v1813, %v1812
      %v1921 = vpack.c.b16 %v1815, %v1814
      %v1922 = vpack.c.b16 %v1817, %v1816
      %v1923 = vpack.c.b16 %v1819, %v1818
      %v1924 = vpack.c.b16 %v1821, %v1820
      %v1925 = vpack.c.b16 %v1823, %v1822
      %v1926 = vpack.c.b16 %v1825, %v1824
      %v1927 = vpack.c.b16 %v1827, %v1826
      %v1928 = vpack.c.b16 %v1829, %v1828
      %v1929 = vpack.c.b16 %v1831, %v1830
      %v1930 = vpack.c.b16 %v1833, %v1832
      %v1931 = vpack.c.b16 %v1835, %v1834
      %v1932 = vpack.c.b16 %v1837, %v1836
      %v1933 = vpack.c.b16 %v1839, %v1838
      %v1934 = vpack.c.b16 %v1841, %v1840
      %v1935 = vpack.c.b16 %v1843, %v1842
      %v1936 = vpack.c.b16 %v1845, %v1844
      %v1937 = vpack.c.b16 %v1847, %v1846
      %v1938 = vpack.c.b16 %v1849, %v1848
      %v1939 = vpack.c.b16 %v1851, %v1850
      %v1940 = vpack.c.b16 %v1853, %v1852
      %v1941 = vpack.c.b16 %v1855, %v1854
      %v1942 = vpack.c.b16 %v1857, %v1856
      %v1943 = vpack.c.b16 %v1859, %v1858
      %v1944 = vpack.c.b16 %v1861, %v1860
      %v1945 = vpack.c.b16 %v1863, %v1862
      %v1946 = vpack.c.b16 %v1865, %v1864
      %v1947 = vpack.c.b16 %v1867, %v1866
      %v1948 = vpack.c.b16 %v1869, %v1868
      %v1949 = vpack.c.b16 %v1871, %v1870
      %v1950 = vpack.c.b16 %v1873, %v1872
      %v1951 = vpack.c.b16 %v1875, %v1874
      %v1952 = vpack.c.b16 %v1877, %v1876
      %v1953 = vpack.c.b16 %v1879, %v1878
      %v1954 = vpack.c.b16 %v1881, %v1880
      %v1955 = vpack.c.b16 %v1883, %v1882
      %2028 = vmatprep.subr.bf16.mxu0 0
      %2029 = vmatpush1.bf16.msra.mxu0 %v1891
      %2030 = vmatprep.subr.bf16.mxu0 0
      %2031 = vmatpush1.bf16.msra.mxu0 %v1890
      %2032 = vmatprep.subr.bf16.mxu0 0
      %2033 = vmatpush1.bf16.msra.mxu0 %v1889
      %2034 = vmatprep.subr.bf16.mxu0 0
      %2035 = vmatpush1.bf16.msra.mxu0 %v1888
      %2036 = vmatprep.subr.bf16.mxu0 0
      %2037 = vmatpush1.bf16.msra.mxu0 %v1887
      %2038 = vmatprep.subr.bf16.mxu0 0
      %2039 = vmatpush1.bf16.msra.mxu0 %v1886
      %2040 = vmatprep.subr.bf16.mxu0 0
      %2041 = vmatpush1.bf16.msra.mxu0 %v1885
      %2042 = vmatprep.subr.bf16.mxu0 0
      %2043 = vmatpush1.bf16.msra.mxu0 %v1884
      %2044 = vmatprep.subr.bf16.mxu0 0
      %2045 = vmatpush2.bf16.msra.mxu0 %v1899
      %2046 = vmatprep.subr.bf16.mxu0 0
      %2047 = vmatpush2.bf16.msra.mxu0 %v1898
      %2048 = vmatprep.subr.bf16.mxu0 0
      %2049 = vmatpush2.bf16.msra.mxu0 %v1897
      %2050 = vmatprep.subr.bf16.mxu0 0
      %2051 = vmatpush2.bf16.msra.mxu0 %v1896
      %2052 = vmatprep.subr.bf16.mxu0 0
      %2053 = vmatpush2.bf16.msra.mxu0 %v1895
      %2054 = vmatprep.subr.bf16.mxu0 0
      %2055 = vmatpush2.bf16.msra.mxu0 %v1894
      %2056 = vmatprep.subr.bf16.mxu0 0
      %2057 = vmatpush2.bf16.msra.mxu0 %v1893
      %2058 = vmatprep.subr.bf16.mxu0 0
      %2059 = vmatpush2.bf16.msra.mxu0 %v1892
      %2060 = vmatprep.mubr.bf16.mxu0 %v1525
      %2061 = vmatmul.mubr.bf16.gmra.mxu0 %v1524
      %v2062 = vpop.f32.mrf.mxu0
      %v2063 = vadd.f32 %v1410, %v2062
      %v2064 = vpop.f32.mrf.mxu0
      %v2065 = vpop.f32.mrf.mxu0
      %v2066 = vadd.f32 %v1410, %v2065
      %v2067 = vpop.f32.mrf.mxu0
      %2068 = vmatprep.mubr.bf16.mxu0 %v1534
      %2069 = vmatmul.mubr.bf16.gmra.mxu0 %v1533
      %v2070 = vpop.f32.mrf.mxu0
      %v2071 = vadd.f32 %v1410, %v2070
      %v2072 = vpop.f32.mrf.mxu0
      %v2073 = vpop.f32.mrf.mxu0
      %v2074 = vadd.f32 %v1410, %v2073
      %v2075 = vpop.f32.mrf.mxu0
      %2076 = vmatprep.mubr.bf16.mxu0 %v1543
      %2077 = vmatmul.mubr.bf16.gmra.mxu0 %v1542
      %v2078 = vpop.f32.mrf.mxu0
      %v2079 = vadd.f32 %v1410, %v2078
      %v2080 = vpop.f32.mrf.mxu0
      %v2081 = vpop.f32.mrf.mxu0
      %v2082 = vadd.f32 %v1410, %v2081
      %v2083 = vpop.f32.mrf.mxu0
      %2084 = vmatprep.mubr.bf16.mxu0 %v1552
      %2085 = vmatmul.mubr.bf16.gmra.mxu0 %v1551
      %v2086 = vpop.f32.mrf.mxu0
      %v2087 = vadd.f32 %v1410, %v2086
      %v2088 = vpop.f32.mrf.mxu0
      %v2089 = vpop.f32.mrf.mxu0
      %v2090 = vadd.f32 %v1410, %v2089
      %v2091 = vpop.f32.mrf.mxu0
      %2092 = vdwg.mxu0
      %2093 = vmatprep.subr.bf16.mxu0 0
      %2094 = vmatpush1.bf16.msra.mxu0 %v1907
      %2095 = vmatprep.subr.bf16.mxu0 0
      %2096 = vmatpush1.bf16.msra.mxu0 %v1906
      %2097 = vmatprep.subr.bf16.mxu0 0
      %2098 = vmatpush1.bf16.msra.mxu0 %v1905
      %2099 = vmatprep.subr.bf16.mxu0 0
      %2100 = vmatpush1.bf16.msra.mxu0 %v1904
      %2101 = vmatprep.subr.bf16.mxu0 0
      %2102 = vmatpush1.bf16.msra.mxu0 %v1903
      %2103 = vmatprep.subr.bf16.mxu0 0
      %2104 = vmatpush1.bf16.msra.mxu0 %v1902
      %2105 = vmatprep.subr.bf16.mxu0 0
      %2106 = vmatpush1.bf16.msra.mxu0 %v1901
      %2107 = vmatprep.subr.bf16.mxu0 0
      %2108 = vmatpush1.bf16.msra.mxu0 %v1900
      %2109 = vmatprep.subr.bf16.mxu0 0
      %2110 = vmatpush2.bf16.msra.mxu0 %v1915
      %2111 = vmatprep.subr.bf16.mxu0 0
      %2112 = vmatpush2.bf16.msra.mxu0 %v1914
      %2113 = vmatprep.subr.bf16.mxu0 0
      %2114 = vmatpush2.bf16.msra.mxu0 %v1913
      %2115 = vmatprep.subr.bf16.mxu0 0
      %2116 = vmatpush2.bf16.msra.mxu0 %v1912
      %2117 = vmatprep.subr.bf16.mxu0 0
      %2118 = vmatpush2.bf16.msra.mxu0 %v1911
      %2119 = vmatprep.subr.bf16.mxu0 0
      %2120 = vmatpush2.bf16.msra.mxu0 %v1910
      %2121 = vmatprep.subr.bf16.mxu0 0
      %2122 = vmatpush2.bf16.msra.mxu0 %v1909
      %2123 = vmatprep.subr.bf16.mxu0 0
      %2124 = vmatpush2.bf16.msra.mxu0 %v1908
      %2125 = vmatprep.mubr.bf16.mxu0 %v1527
      %2126 = vmatmul.mubr.bf16.gmra.mxu0 %v1526
      %v2127 = vpop.f32.mrf.mxu0
      %v2128 = vadd.f32 %v2063, %v2127
      %v2129 = vpop.f32.mrf.mxu0
      %v2130 = vpop.f32.mrf.mxu0
      %v2131 = vadd.f32 %v2066, %v2130
      %v2132 = vpop.f32.mrf.mxu0
      %2133 = vmatprep.mubr.bf16.mxu0 %v1536
      %2134 = vmatmul.mubr.bf16.gmra.mxu0 %v1535
      %v2135 = vpop.f32.mrf.mxu0
      %v2136 = vadd.f32 %v2071, %v2135
      %v2137 = vpop.f32.mrf.mxu0
      %v2138 = vpop.f32.mrf.mxu0
      %v2139 = vadd.f32 %v2074, %v2138
      %v2140 = vpop.f32.mrf.mxu0
      %2141 = vmatprep.mubr.bf16.mxu0 %v1545
      %2142 = vmatmul.mubr.bf16.gmra.mxu0 %v1544
      %v2143 = vpop.f32.mrf.mxu0
      %v2144 = vadd.f32 %v2079, %v2143
      %v2145 = vpop.f32.mrf.mxu0
      %v2146 = vpop.f32.mrf.mxu0
      %v2147 = vadd.f32 %v2082, %v2146
      %v2148 = vpop.f32.mrf.mxu0
      %2149 = vmatprep.mubr.bf16.mxu0 %v1554
      %2150 = vmatmul.mubr.bf16.gmra.mxu0 %v1553
      %v2151 = vpop.f32.mrf.mxu0
      %v2152 = vadd.f32 %v2087, %v2151
      %v2153 = vpop.f32.mrf.mxu0
      %v2154 = vpop.f32.mrf.mxu0
      %v2155 = vadd.f32 %v2090, %v2154
      %v2156 = vpop.f32.mrf.mxu0
      %2157 = vdwg.mxu0
      %2158 = vmatprep.subr.bf16.mxu0 0
      %2159 = vmatpush1.bf16.msra.mxu0 %v1923
      %2160 = vmatprep.subr.bf16.mxu0 0
      %2161 = vmatpush1.bf16.msra.mxu0 %v1922
      %2162 = vmatprep.subr.bf16.mxu0 0
      %2163 = vmatpush1.bf16.msra.mxu0 %v1921
      %2164 = vmatprep.subr.bf16.mxu0 0
      %2165 = vmatpush1.bf16.msra.mxu0 %v1920
      %2166 = vmatprep.subr.bf16.mxu0 0
      %2167 = vmatpush1.bf16.msra.mxu0 %v1919
      %2168 = vmatprep.subr.bf16.mxu0 0
      %2169 = vmatpush1.bf16.msra.mxu0 %v1918
      %2170 = vmatprep.subr.bf16.mxu0 0
      %2171 = vmatpush1.bf16.msra.mxu0 %v1917
      %2172 = vmatprep.subr.bf16.mxu0 0
      %2173 = vmatpush1.bf16.msra.mxu0 %v1916
      %2174 = vmatprep.subr.bf16.mxu0 0
      %2175 = vmatpush2.bf16.msra.mxu0 %v1931
      %2176 = vmatprep.subr.bf16.mxu0 0
      %2177 = vmatpush2.bf16.msra.mxu0 %v1930
      %2178 = vmatprep.subr.bf16.mxu0 0
      %2179 = vmatpush2.bf16.msra.mxu0 %v1929
      %2180 = vmatprep.subr.bf16.mxu0 0
      %2181 = vmatpush2.bf16.msra.mxu0 %v1928
      %2182 = vmatprep.subr.bf16.mxu0 0
      %2183 = vmatpush2.bf16.msra.mxu0 %v1927
      %2184 = vmatprep.subr.bf16.mxu0 0
      %2185 = vmatpush2.bf16.msra.mxu0 %v1926
      %2186 = vmatprep.subr.bf16.mxu0 0
      %2187 = vmatpush2.bf16.msra.mxu0 %v1925
      %2188 = vmatprep.subr.bf16.mxu0 0
      %2189 = vmatpush2.bf16.msra.mxu0 %v1924
      %2190 = vmatprep.mubr.bf16.mxu0 %v1529
      %2191 = vmatmul.mubr.bf16.gmra.mxu0 %v1528
      %v2192 = vpop.f32.mrf.mxu0
      %v2193 = vadd.f32 %v2128, %v2192
      %v2194 = vpop.f32.mrf.mxu0
      %v2195 = vpop.f32.mrf.mxu0
      %v2196 = vadd.f32 %v2131, %v2195
      %v2197 = vpop.f32.mrf.mxu0
      %2198 = vmatprep.mubr.bf16.mxu0 %v1538
      %2199 = vmatmul.mubr.bf16.gmra.mxu0 %v1537
      %v2200 = vpop.f32.mrf.mxu0
      %v2201 = vadd.f32 %v2136, %v2200
      %v2202 = vpop.f32.mrf.mxu0
      %v2203 = vpop.f32.mrf.mxu0
      %v2204 = vadd.f32 %v2139, %v2203
      %v2205 = vpop.f32.mrf.mxu0
      %2206 = vmatprep.mubr.bf16.mxu0 %v1547
      %2207 = vmatmul.mubr.bf16.gmra.mxu0 %v1546
      %v2208 = vpop.f32.mrf.mxu0
      %v2209 = vadd.f32 %v2144, %v2208
      %v2210 = vpop.f32.mrf.mxu0
      %v2211 = vpop.f32.mrf.mxu0
      %v2212 = vadd.f32 %v2147, %v2211
      %v2213 = vpop.f32.mrf.mxu0
      %2214 = vmatprep.mubr.bf16.mxu0 %v1556
      %2215 = vmatmul.mubr.bf16.gmra.mxu0 %v1555
      %v2216 = vpop.f32.mrf.mxu0
      %v2217 = vadd.f32 %v2152, %v2216
      %v2218 = vpop.f32.mrf.mxu0
      %v2219 = vpop.f32.mrf.mxu0
      %v2220 = vadd.f32 %v2155, %v2219
      %v2221 = vpop.f32.mrf.mxu0
      %2222 = vdwg.mxu0
      %2223 = vmatprep.subr.bf16.mxu0 0
      %2224 = vmatpush1.bf16.msra.mxu0 %v1939
      %2225 = vmatprep.subr.bf16.mxu0 0
      %2226 = vmatpush1.bf16.msra.mxu0 %v1938
      %2227 = vmatprep.subr.bf16.mxu0 0
      %2228 = vmatpush1.bf16.msra.mxu0 %v1937
      %2229 = vmatprep.subr.bf16.mxu0 0
      %2230 = vmatpush1.bf16.msra.mxu0 %v1936
      %2231 = vmatprep.subr.bf16.mxu0 0
      %2232 = vmatpush1.bf16.msra.mxu0 %v1935
      %2233 = vmatprep.subr.bf16.mxu0 0
      %2234 = vmatpush1.bf16.msra.mxu0 %v1934
      %2235 = vmatprep.subr.bf16.mxu0 0
      %2236 = vmatpush1.bf16.msra.mxu0 %v1933
      %2237 = vmatprep.subr.bf16.mxu0 0
      %2238 = vmatpush1.bf16.msra.mxu0 %v1932
      %2239 = vmatprep.subr.bf16.mxu0 0
      %2240 = vmatpush2.bf16.msra.mxu0 %v1947
      %2241 = vmatprep.subr.bf16.mxu0 0
      %2242 = vmatpush2.bf16.msra.mxu0 %v1946
      %2243 = vmatprep.subr.bf16.mxu0 0
      %2244 = vmatpush2.bf16.msra.mxu0 %v1945
      %2245 = vmatprep.subr.bf16.mxu0 0
      %2246 = vmatpush2.bf16.msra.mxu0 %v1944
      %2247 = vmatprep.subr.bf16.mxu0 0
      %2248 = vmatpush2.bf16.msra.mxu0 %v1943
      %2249 = vmatprep.subr.bf16.mxu0 0
      %2250 = vmatpush2.bf16.msra.mxu0 %v1942
      %2251 = vmatprep.subr.bf16.mxu0 0
      %2252 = vmatpush2.bf16.msra.mxu0 %v1941
      %2253 = vmatprep.subr.bf16.mxu0 0
      %2254 = vmatpush2.bf16.msra.mxu0 %v1940
      %2255 = vmatprep.mubr.bf16.mxu0 %v1531
      %2256 = vmatmul.mubr.bf16.gmra.mxu0 %v1530
      %v2257 = vpop.f32.mrf.mxu0
      %v2258 = vadd.f32 %v2193, %v2257
      %v2259 = vpop.f32.mrf.mxu0
      %v2260 = vpop.f32.mrf.mxu0
      %v2261 = vadd.f32 %v2196, %v2260
      %v2262 = vpop.f32.mrf.mxu0
      %2263 = vmatprep.mubr.bf16.mxu0 %v1540
      %2264 = vmatmul.mubr.bf16.gmra.mxu0 %v1539
      %v2265 = vpop.f32.mrf.mxu0
      %v2266 = vadd.f32 %v2201, %v2265
      %v2267 = vpop.f32.mrf.mxu0
      %v2268 = vpop.f32.mrf.mxu0
      %v2269 = vadd.f32 %v2204, %v2268
      %v2270 = vpop.f32.mrf.mxu0
      %2271 = vmatprep.mubr.bf16.mxu0 %v1549
      %2272 = vmatmul.mubr.bf16.gmra.mxu0 %v1548
      %v2273 = vpop.f32.mrf.mxu0
      %v2274 = vadd.f32 %v2209, %v2273
      %v2275 = vpop.f32.mrf.mxu0
      %v2276 = vpop.f32.mrf.mxu0
      %v2277 = vadd.f32 %v2212, %v2276
      %v2278 = vpop.f32.mrf.mxu0
      %2279 = vmatprep.mubr.bf16.mxu0 %v1558
      %2280 = vmatmul.mubr.bf16.gmra.mxu0 %v1557
      %v2281 = vpop.f32.mrf.mxu0
      %v2282 = vadd.f32 %v2217, %v2281
      %v2283 = vpop.f32.mrf.mxu0
      %v2284 = vpop.f32.mrf.mxu0
      %v2285 = vadd.f32 %v2220, %v2284
      %v2286 = vpop.f32.mrf.mxu0
      %2287 = vdwg.mxu0
      %2288 = vmatprep.subr.bf16.mxu0 0
      %2289 = vmatpush1.bf16.msra.mxu0 %v1955
      %2290 = vmatprep.subr.bf16.mxu0 0
      %2291 = vmatpush1.bf16.msra.mxu0 %v1954
      %2292 = vmatprep.subr.bf16.mxu0 0
      %2293 = vmatpush1.bf16.msra.mxu0 %v1953
      %2294 = vmatprep.subr.bf16.mxu0 0
      %2295 = vmatpush1.bf16.msra.mxu0 %v1952
      %2296 = vmatprep.subr.bf16.mxu0 0
      %2297 = vmatpush1.bf16.msra.mxu0 %v1951
      %2298 = vmatprep.subr.bf16.mxu0 0
      %2299 = vmatpush1.bf16.msra.mxu0 %v1950
      %2300 = vmatprep.subr.bf16.mxu0 0
      %2301 = vmatpush1.bf16.msra.mxu0 %v1949
      %2302 = vmatprep.subr.bf16.mxu0 0
      %2303 = vmatpush1.bf16.msra.mxu0 %v1948
      %2304 = vmatprep.subr.bf16.mxu0 0
      %2305 = vmatpush2.bf16.msra.mxu0 0
      %2306 = vmatprep.subr.bf16.mxu0 0
      %2307 = vmatpush2.bf16.msra.mxu0 0
      %2308 = vmatprep.subr.bf16.mxu0 0
      %2309 = vmatpush2.bf16.msra.mxu0 0
      %2310 = vmatprep.subr.bf16.mxu0 0
      %2311 = vmatpush2.bf16.msra.mxu0 0
      %2312 = vmatprep.subr.bf16.mxu0 0
      %2313 = vmatpush2.bf16.msra.mxu0 0
      %2314 = vmatprep.subr.bf16.mxu0 0
      %2315 = vmatpush2.bf16.msra.mxu0 0
      %2316 = vmatprep.subr.bf16.mxu0 0
      %2317 = vmatpush2.bf16.msra.mxu0 0
      %2318 = vmatprep.subr.bf16.mxu0 0
      %2319 = vmatpush2.bf16.msra.mxu0 0
      %2320 = vmatprep.mubr.bf16.mxu0 0
      %2321 = vmatmul.mubr.bf16.gmra.mxu0 %v1532
      %v2322 = vpop.f32.mrf.mxu0
      %v2323 = vadd.f32 %v2258, %v2322
      %v2324 = vpop.f32.mrf.mxu0
      %v2325 = vpop.f32.mrf.mxu0
      %v2326 = vadd.f32 %v2261, %v2325
      %v2327 = vpop.f32.mrf.mxu0
      %2328 = vmatprep.mubr.bf16.mxu0 0
      %2329 = vmatmul.mubr.bf16.gmra.mxu0 %v1541
      %v2330 = vpop.f32.mrf.mxu0
      %v2331 = vadd.f32 %v2266, %v2330
      %v2332 = vpop.f32.mrf.mxu0
      %v2333 = vpop.f32.mrf.mxu0
      %v2334 = vadd.f32 %v2269, %v2333
      %v2335 = vpop.f32.mrf.mxu0
      %2336 = vmatprep.mubr.bf16.mxu0 0
      %2337 = vmatmul.mubr.bf16.gmra.mxu0 %v1550
      %v2338 = vpop.f32.mrf.mxu0
      %v2339 = vadd.f32 %v2274, %v2338
      %v2340 = vpop.f32.mrf.mxu0
      %v2341 = vpop.f32.mrf.mxu0
      %v2342 = vadd.f32 %v2277, %v2341
      %v2343 = vpop.f32.mrf.mxu0
      %2344 = vmatprep.mubr.bf16.mxu0 0
      %2345 = vmatmul.mubr.bf16.gmra.mxu0 %v1559
      %v2346 = vpop.f32.mrf.mxu0
      %v2347 = vadd.f32 %v2282, %v2346
      %v2348 = vpop.f32.mrf.mxu0
      %v2349 = vpop.f32.mrf.mxu0
      %v2350 = vadd.f32 %v2285, %v2349
      %v2351 = vpop.f32.mrf.mxu0
      %2352 = vdwg.mxu0
      %v2353 = vmax.f32 %v2323, 0.0
      %v2354 = vmax.f32 %v2326, 0.0
      %v2355 = vmax.f32 %v2331, 0.0
      %v2356 = vmax.f32 %v2334, 0.0
      %v2357 = vmax.f32 %v2339, 0.0
      %v2358 = vmax.f32 %v2342, 0.0
      %v2359 = vmax.f32 %v2347, 0.0
      %v2360 = vmax.f32 %v2350, 0.0
      %v2361 = vpack.c.bf16 %v2354, %v2353
      %v2362 = vpack.c.bf16 %v2356, %v2355
      %v2363 = vpack.c.bf16 %v2358, %v2357
      %v2364 = vpack.c.bf16 %v2360, %v2359
      %v2365 = vld [vmem:[%s5] sm:$0xf]
      %v2366 = vld [vmem:[%s5 + $0x4] sm:$0xf]
      %v2367 = vld [vmem:[%s5 + $0x8] sm:$0xf]
      %v2368 = vld [vmem:[%s5 + $0xc] sm:$0xf]
      %v2369 = vld [vmem:[%s5 + $0x10] sm:$0xf]
      %v2370 = vld [vmem:[%s5 + $0x14] sm:$0xf]
      %v2371 = vld [vmem:[%s5 + $0x18] sm:$0xf]
      %v2372 = vld [vmem:[%s5 + $0x1c] sm:$0xf]
      %v2373 = vld [vmem:[%s5 + $0x20] sm:$0xf]
      %v2374 = vld [vmem:[%s5 + $0x24] sm:$0xf]
      %v2375 = vld [vmem:[%s5 + $0x28] sm:$0xf]
      %v2376 = vld [vmem:[%s5 + $0x2c] sm:$0xf]
      %v2377 = vld [vmem:[%s5 + $0x30] sm:$0xf]
      %v2378 = vld [vmem:[%s5 + $0x34] sm:$0xf]
      %v2379 = vld [vmem:[%s5 + $0x38] sm:$0xf]
      %v2380 = vld [vmem:[%s5 + $0x3c] sm:$0xf]
      %v2381 = vld [vmem:[%s6] sm:$0x1]
      %v2383 = vlaneseq
      %v2384 = vshrl.u32 %v2383, 7
      %v2385 = vsub.s32 0, %v2384
      %v2386 = vrot.slane %v2381, %v2385
      %v2404 = vunpack.c.l.b16 %v2365
      %v2405 = vunpack.c.l.b16 %v2366
      %v2406 = vunpack.c.l.b16 %v2367
      %v2407 = vunpack.c.l.b16 %v2368
      %v2408 = vunpack.c.l.b16 %v2369
      %v2409 = vunpack.c.l.b16 %v2370
      %v2410 = vunpack.c.l.b16 %v2371
      %v2411 = vunpack.c.l.b16 %v2372
      %v2412 = vunpack.c.l.b16 %v2373
      %v2413 = vunpack.c.l.b16 %v2374
      %v2414 = vunpack.c.l.b16 %v2375
      %v2415 = vunpack.c.l.b16 %v2376
      %v2416 = vunpack.c.l.b16 %v2377
      %v2417 = vunpack.c.l.b16 %v2378
      %v2418 = vunpack.c.l.b16 %v2379
      %v2419 = vunpack.c.l.b16 %v2380
      %v2420 = vpack.c.b16 %v2405, %v2404
      %v2421 = vpack.c.b16 %v2407, %v2406
      %v2422 = vpack.c.b16 %v2409, %v2408
      %v2423 = vpack.c.b16 %v2411, %v2410
      %v2424 = vpack.c.b16 %v2413, %v2412
      %v2425 = vpack.c.b16 %v2415, %v2414
      %v2426 = vpack.c.b16 %v2417, %v2416
      %v2427 = vpack.c.b16 %v2419, %v2418
      %2436 = vmatprep.subr.bf16.mxu0 0
      %2437 = vmatpush1.bf16.msra.mxu0 %v2427
      %2438 = vmatprep.subr.bf16.mxu0 0
      %2439 = vmatpush1.bf16.msra.mxu0 %v2426
      %2440 = vmatprep.subr.bf16.mxu0 0
      %2441 = vmatpush1.bf16.msra.mxu0 %v2425
      %2442 = vmatprep.subr.bf16.mxu0 0
      %2443 = vmatpush1.bf16.msra.mxu0 %v2424
      %2444 = vmatprep.subr.bf16.mxu0 0
      %2445 = vmatpush1.bf16.msra.mxu0 %v2423
      %2446 = vmatprep.subr.bf16.mxu0 0
      %2447 = vmatpush1.bf16.msra.mxu0 %v2422
      %2448 = vmatprep.subr.bf16.mxu0 0
      %2449 = vmatpush1.bf16.msra.mxu0 %v2421
      %2450 = vmatprep.subr.bf16.mxu0 0
      %2451 = vmatpush1.bf16.msra.mxu0 %v2420
      %2452 = vmatprep.subr.bf16.mxu0 0
      %2453 = vmatpush2.bf16.msra.mxu0 0
      %2454 = vmatprep.subr.bf16.mxu0 0
      %2455 = vmatpush2.bf16.msra.mxu0 0
      %2456 = vmatprep.subr.bf16.mxu0 0
      %2457 = vmatpush2.bf16.msra.mxu0 0
      %2458 = vmatprep.subr.bf16.mxu0 0
      %2459 = vmatpush2.bf16.msra.mxu0 0
      %2460 = vmatprep.subr.bf16.mxu0 0
      %2461 = vmatpush2.bf16.msra.mxu0 0
      %2462 = vmatprep.subr.bf16.mxu0 0
      %2463 = vmatpush2.bf16.msra.mxu0 0
      %2464 = vmatprep.subr.bf16.mxu0 0
      %2465 = vmatpush2.bf16.msra.mxu0 0
      %2466 = vmatprep.subr.bf16.mxu0 0
      %2467 = vmatpush2.bf16.msra.mxu0 0
      %2468 = vmatprep.mubr.bf16.mxu0 0
      %2469 = vmatmul.mubr.bf16.gmra.mxu0 %v2361
      %v2470 = vpop.f32.mrf.mxu0
      %v2471 = vadd.f32 %v2386, %v2470
      %v2472 = vpop.f32.mrf.mxu0
      %v2473 = vpop.f32.mrf.mxu0
      %v2474 = vadd.f32 %v2386, %v2473
      %v2475 = vpop.f32.mrf.mxu0
      %2476 = vmatprep.mubr.bf16.mxu0 0
      %2477 = vmatmul.mubr.bf16.gmra.mxu0 %v2362
      %v2478 = vpop.f32.mrf.mxu0
      %v2479 = vadd.f32 %v2386, %v2478
      %v2480 = vpop.f32.mrf.mxu0
      %v2481 = vpop.f32.mrf.mxu0
      %v2482 = vadd.f32 %v2386, %v2481
      %v2483 = vpop.f32.mrf.mxu0
      %2484 = vmatprep.mubr.bf16.mxu0 0
      %2485 = vmatmul.mubr.bf16.gmra.mxu0 %v2363
      %v2486 = vpop.f32.mrf.mxu0
      %v2487 = vadd.f32 %v2386, %v2486
      %v2488 = vpop.f32.mrf.mxu0
      %v2489 = vpop.f32.mrf.mxu0
      %v2490 = vadd.f32 %v2386, %v2489
      %v2491 = vpop.f32.mrf.mxu0
      %2492 = vmatprep.mubr.bf16.mxu0 0
      %2493 = vmatmul.mubr.bf16.gmra.mxu0 %v2364
      %v2494 = vpop.f32.mrf.mxu0
      %v2495 = vadd.f32 %v2386, %v2494
      %v2496 = vpop.f32.mrf.mxu0
      %v2497 = vpop.f32.mrf.mxu0
      %v2498 = vadd.f32 %v2386, %v2497
      %v2499 = vpop.f32.mrf.mxu0
      %2500 = vdwg.mxu0
      %v2501 = vld [vmem:[%s273] sm:$0xff]
      %v2502 = vld [vmem:[%s273 + $0x8] sm:$0xff]
      %v2503 = vld [vmem:[%s273 + $0x10] sm:$0xff]
      %v2504 = vld [vmem:[%s273 + $0x18] sm:$0xff]
      %v2505 = vld [vmem:[%s273 + $0x20] sm:$0xff]
      %v2506 = vld [vmem:[%s273 + $0x28] sm:$0xff]
      %v2507 = vld [vmem:[%s273 + $0x30] sm:$0xff]
      %v2508 = vld [vmem:[%s273 + $0x38] sm:$0xff]
      %v2509 = vadd.f32 %v2471, %v2501
      %v2510 = vadd.f32 %v2474, %v2502
      %v2511 = vadd.f32 %v2479, %v2503
      %v2512 = vadd.f32 %v2482, %v2504
      %v2513 = vadd.f32 %v2487, %v2505
      %v2514 = vadd.f32 %v2490, %v2506
      %v2515 = vadd.f32 %v2495, %v2507
      %v2516 = vadd.f32 %v2498, %v2508
      %v2517 = vmax.f32 %v2509, 0.0
      %v2518 = vmax.f32 %v2510, 0.0
      %v2519 = vmax.f32 %v2511, 0.0
      %v2520 = vmax.f32 %v2512, 0.0
      %v2521 = vmax.f32 %v2513, 0.0
      %v2522 = vmax.f32 %v2514, 0.0
      %v2523 = vmax.f32 %v2515, 0.0
      %v2524 = vmax.f32 %v2516, 0.0
      %2525 = vst [vmem:[%s278] sm:$0xff] %v2517
      %2526 = vst [vmem:[%s278 + $0x8] sm:$0xff] %v2518
      %2527 = vst [vmem:[%s278 + $0x10] sm:$0xff] %v2519
      %2528 = vst [vmem:[%s278 + $0x18] sm:$0xff] %v2520
      %2529 = vst [vmem:[%s278 + $0x20] sm:$0xff] %v2521
      %2530 = vst [vmem:[%s278 + $0x28] sm:$0xff] %v2522
      %2531 = vst [vmem:[%s278 + $0x30] sm:$0xff] %v2523
      %2532 = vst [vmem:[%s278 + $0x38] sm:$0xff] %v2524
      %p2533 = scmp.lt.s32.totalorder %s18, 1
      %s2534 = scalar_select %p2533, %s18, 1
      %s2535 = smul.addr %s2534, 8
      %s2536 = smul.addr %s2535, 8
      %s2537 = scalar_lea.vmem %s7, %s2536
      // Predicated region
      $region49: #{basic_block_forward.1} parent=47 // pred_check
        %p2538 = pneg %p188
      $region50: #{basic_block_forward.1} parent=47 // pred_check_branch
        %2540 = sbr.rel (%p2538) target = $region52
      $region51: #{basic_block_forward.1} parent=47 // pred_region
        _
      $region52: #{basic_block_forward.1} parent=47 // pred_fallthru
        _
    $region48: #{basic_block_forward.1} parent=5 // pred_fallthru
      _
    %p2541 = scmp.le.s32.totalorder 2, %s13
    // Predicated region
    $region53: #{basic_block_forward.1} parent=5 // pred_check
      %p2542 = pneg %p2541
    $region54: #{basic_block_forward.1} parent=5 // pred_check_branch
      %2544 = sbr.rel (%p2542) target = $region56
    $region55: #{basic_block_forward.1} parent=5 // pred_region
      %s2545 = ssub.s32 %s13, 2
      // Predicated region
      $region57: #{basic_block_forward.1} parent=55 // pred_check
        %p2546 = pneg %p194
      $region58: #{basic_block_forward.1} parent=55 // pred_check_branch
        %2548 = sbr.rel (%p2546) target = $region60
      $region59: #{basic_block_forward.1} parent=55 // pred_region
        %p2549 = scmp.lt.s32.totalorder %s19, 1
        %s2550 = scalar_select %p2549, %s19, 1
        %s2551 = smul.addr %s2550, 8
        %s2552 = smul.addr %s2551, 8
        %s2553 = scalar_lea.vmem %s7, %s2552
      $region60: #{basic_block_forward.1} parent=55 // pred_fallthru
        _
    $region56: #{basic_block_forward.1} parent=5 // pred_fallthru
      _
  $region6: #{basic_block_forward.1} parent=0 // loop_footer
    %s17 = sadd.s32 1, %s13
  $region7: #{basic_block_forward.1} parent=0 // loop_footer_branch
    %12 = sbr.rel target = $region3
  $region8: #{basic_block_forward.1} parent=0 // loop_exit
    _

</llo_original>
